<compile_context>
chip_gen: v5e
topology: v5e:2x2
jax: 0.10.0
libtpu: 0.0.40
codegen_flags: <defaults>
</compile_context>

<pallas_src>
import functools
import math

import jax
import jax.numpy as jnp
from jax.experimental import pallas as pl
from jax.experimental.pallas import tpu as pltpu  # noqa: F401  (TPU backend)

# ---- small synthetic configuration ----
B = 2                       # batch
SEQ_LEN = 8                 # len
C_IMG, H_IMG, W_IMG = 3, 16, 16
EXTRACTOR_DIM = 30          # extractor_dim
DIM = EXTRACTOR_DIM + 2     # dim (= extractor_dim + 2 after concat with ang)
HEADS = 4
MLP_DIM = 64
DEPTH = 2
NUM_CLASSES1 = 6
NUM_CLASSES2 = 2
LN_EPS = 1e-5
OUT_PACKED = 2 * NUM_CLASSES1 + NUM_CLASSES2


# ----------------------------------------------------------------------------
# Single fused kernel: whole forward in one invocation, no grid.
# ----------------------------------------------------------------------------
def _fused_forward_kernel(
        img_ref, ang_ref,
        bbw_ref, bbb_ref,
        ilwf_ref, ilwa_ref, ilb_ref,
        inw_ref, inb_ref, ow_ref, ob_ref,
        n1w_ref, n1b_ref, n2w_ref, n2b_ref,
        l1w_ref, l1b_ref, l2w_ref, l2b_ref,
        lnlw_ref, lnlb_ref, wl_ref, bl_ref,
        lntw_ref, lntb_ref, wt_ref, bt_ref,
        lnaw_ref, lnab_ref, wa1_ref, ba1_ref, wa2_ref, ba2_ref,
        out_ref,
        *, heads, batch, seq, depth):
    d = ilb_ref.shape[-1]
    dh = d // heads

    def ln(v, w, b):
        mu = jnp.mean(v, axis=-1, keepdims=True)
        var = jnp.mean((v - mu) ** 2, axis=-1, keepdims=True)
        return (v - mu) * jax.lax.rsqrt(var + LN_EPS) * w + b

    # ---- backbone stand-in + img_linear (lane concat avoided: split weight) --
    feat = jnp.maximum(
        jnp.dot(img_ref[...], bbw_ref[...],
                preferred_element_type=jnp.float32) + bbb_ref[...], 0.0)
    x = (jnp.dot(feat, ilwf_ref[...], preferred_element_type=jnp.float32)
         + jnp.dot(ang_ref[...], ilwa_ref[...],
                   preferred_element_type=jnp.float32)
         + ilb_ref[...])                                  # (B*L, D)

    # ---- DEPTH encoder layers, statically unrolled; x stays in registers ----
    for layer in range(depth):
        # fused QKV projection (1/sqrt(dh) pre-folded into Q weight+bias)
        qkv = (jnp.dot(x, inw_ref[layer], preferred_element_type=jnp.float32)
               + inb_ref[layer])                          # (B*L, 3D)
        qkv3 = qkv.reshape(batch, seq, 3 * d)             # leading-dim split

        head_outs = []
        for h in range(heads):                            # static, heads = 4
            qh = qkv3[:, :, h * dh:(h + 1) * dh]                    # (B,L,dh)
            kh = qkv3[:, :, d + h * dh: d + (h + 1) * dh]           # (B,L,dh)
            vh = qkv3[:, :, 2 * d + h * dh: 2 * d + (h + 1) * dh]   # (B,L,dh)
            s = jnp.einsum('bld,bmd->blm', qh, kh,
                           preferred_element_type=jnp.float32)      # (B,L,L)
            s = s - jnp.max(s, axis=-1, keepdims=True)
            p = jnp.exp(s)
            p = p * pl.reciprocal(jnp.sum(p, axis=-1, keepdims=True),
                                  approx=True)
            head_outs.append(
                jnp.einsum('blm,bmd->bld', p, vh,
                           preferred_element_type=jnp.float32))     # (B,L,dh)

        # registers -> single lane concat -> flat (B*L, D); no scratch stores
        attn = jnp.concatenate(head_outs, axis=-1).reshape(batch * seq, d)
        attn = (jnp.dot(attn, ow_ref[layer],
                        preferred_element_type=jnp.float32) + ob_ref[layer])

        # residual + norm1
        x1 = ln(x + attn, n1w_ref[layer], n1b_ref[layer])

        # feed-forward (ReLU)
        hmid = jnp.maximum(
            jnp.dot(x1, l1w_ref[layer], preferred_element_type=jnp.float32)
            + l1b_ref[layer], 0.0)
        ff = (jnp.dot(hmid, l2w_ref[layer],
                      preferred_element_type=jnp.float32) + l2b_ref[layer])

        # residual + norm2
        x = ln(x1 + ff, n2w_ref[layer], n2b_ref[layer])

    # ---- heads: last token per sequence (direct row slices) ----
    last = jnp.concatenate(
        [x[b * seq + seq - 1: b * seq + seq, :] for b in range(batch)],
        axis=0)                                           # (B, D)

    # shared LayerNorm statistics; only the affine differs per head
    mu = jnp.mean(last, axis=-1, keepdims=True)
    var = jnp.mean((last - mu) ** 2, axis=-1, keepdims=True)
    nrm = (last - mu) * jax.lax.rsqrt(var + LN_EPS)

    label = (jnp.dot(nrm * lnlw_ref[...] + lnlb_ref[...], wl_ref[...],
                     preferred_element_type=jnp.float32) + bl_ref[...])
    target = (jnp.dot(nrm * lntw_ref[...] + lntb_ref[...], wt_ref[...],
                      preferred_element_type=jnp.float32) + bt_ref[...])
    a = jnp.clip(nrm * lnaw_ref[...] + lnab_ref[...], -1.0, 1.0)
    a = jnp.clip(jnp.dot(a, wa1_ref[...],
                         preferred_element_type=jnp.float32) + ba1_ref[...],
                 -1.0, 1.0)
    angle = (jnp.dot(a, wa2_ref[...],
                     preferred_element_type=jnp.float32) + ba2_ref[...])

    # one packed lane-dense writeback: [label | target | angle]
    out_ref[...] = jnp.concatenate([label, target, angle], axis=-1)


# ----------------------------------------------------------------------------
# Full ARTransformer forward (one pallas_call, no grid, everything in VMEM).
# ----------------------------------------------------------------------------
def ar_transformer_forward(img, ang, p):
    """img: (B, len, C, H, W) float32, ang: (B, len, 2) float32."""
    img_flat = img.reshape(B * SEQ_LEN, C_IMG * H_IMG * W_IMG)
    ang_flat = ang.reshape(B * SEQ_LEN, 2)

    enc, hd = p['enc'], p['heads']
    args = [img_flat, ang_flat,
            p['bb_w'], p['bb_b'],
            p['ilw_feat'], p['ilw_ang'], p['il_b'],
            enc['in_w'], enc['in_b'], enc['out_w'], enc['out_b'],
            enc['n1_w'], enc['n1_b'], enc['n2_w'], enc['n2_b'],
            enc['l1_w'], enc['l1_b'], enc['l2_w'], enc['l2_b'],
            hd['lnl_w'], hd['lnl_b'], hd['wl'], hd['bl'],
            hd['lnt_w'], hd['lnt_b'], hd['wt'], hd['bt'],
            hd['lna_w'], hd['lna_b'], hd['wa1'], hd['ba1'],
            hd['wa2'], hd['ba2']]

    packed = pl.pallas_call(
        functools.partial(_fused_forward_kernel, heads=HEADS, batch=B,
                          seq=SEQ_LEN, depth=DEPTH),
        out_shape=jax.ShapeDtypeStruct((B, OUT_PACKED), jnp.float32),
    )(*args)

    out_label = packed[:, :NUM_CLASSES1]
    out_target = packed[:, NUM_CLASSES1:2 * NUM_CLASSES1]
    out_angle = packed[:, 2 * NUM_CLASSES1:]
    return out_label, out_target, out_angle


# ----------------------------------------------------------------------------
# Parameter initialization (deterministic, synthetic), standard (in, out)
# weight orientation so the kernel only does plain x @ W matmuls.
# ----------------------------------------------------------------------------
def init_params(key):
    def rnd(k, shape, scale=0.05):
        return scale * jax.random.normal(k, shape, jnp.float32)

    ks = iter(jax.random.split(key, 24))
    p = {}
    # synthetic backbone stand-in: flatten(NCHW) -> extractor_dim, ReLU
    p['bb_w'] = rnd(next(ks), (C_IMG * H_IMG * W_IMG, EXTRACTOR_DIM), 0.02)
    p['bb_b'] = jnp.zeros((1, EXTRACTOR_DIM), jnp.float32)
    # img_linear: (extractor_dim + 2) -> dim, split to avoid lane concat
    p['ilw_feat'] = rnd(next(ks), (EXTRACTOR_DIM, DIM))
    p['ilw_ang'] = rnd(next(ks), (2, DIM))
    p['il_b'] = rnd(next(ks), (1, DIM))

    in_w = rnd(next(ks), (DEPTH, DIM, 3 * DIM))
    in_b = rnd(next(ks), (DEPTH, 1, 3 * DIM))
    # fold the 1/sqrt(dh) attention scale into the Q columns (weight + bias)
    scale = 1.0 / math.sqrt(DIM // HEADS)
    in_w = in_w.at[:, :, :DIM].multiply(scale)
    in_b = in_b.at[:, :, :DIM].multiply(scale)

    p['enc'] = {
        'in_w': in_w,
        'in_b': in_b,
        'out_w': rnd(next(ks), (DEPTH, DIM, DIM)),
        'out_b': rnd(next(ks), (DEPTH, 1, DIM)),
        'n1_w': jnp.ones((DEPTH, 1, DIM), jnp.float32),
        'n1_b': jnp.zeros((DEPTH, 1, DIM), jnp.float32),
        'n2_w': jnp.ones((DEPTH, 1, DIM), jnp.float32),
        'n2_b': jnp.zeros((DEPTH, 1, DIM), jnp.float32),
        'l1_w': rnd(next(ks), (DEPTH, DIM, MLP_DIM)),
        'l1_b': rnd(next(ks), (DEPTH, 1, MLP_DIM)),
        'l2_w': rnd(next(ks), (DEPTH, MLP_DIM, DIM)),
        'l2_b': rnd(next(ks), (DEPTH, 1, DIM)),
    }

    p['heads'] = {
        'lnl_w': jnp.ones((1, DIM), jnp.float32),
        'lnl_b': jnp.zeros((1, DIM), jnp.float32),
        'wl': rnd(next(ks), (DIM, NUM_CLASSES1)),
        'bl': rnd(next(ks), (1, NUM_CLASSES1)),
        'lnt_w': jnp.ones((1, DIM), jnp.float32),
        'lnt_b': jnp.zeros((1, DIM), jnp.float32),
        'wt': rnd(next(ks), (DIM, NUM_CLASSES1)),
        'bt': rnd(next(ks), (1, NUM_CLASSES1)),
        'lna_w': jnp.ones((1, DIM), jnp.float32),
        'lna_b': jnp.zeros((1, DIM), jnp.float32),
        'wa1': rnd(next(ks), (DIM, DIM // 2)),
        'ba1': rnd(next(ks), (1, DIM // 2)),
        'wa2': rnd(next(ks), (DIM // 2, NUM_CLASSES2)),
        'ba2': rnd(next(ks), (1, NUM_CLASSES2)),
    }
    return p


if __name__ == "__main__":
    key = jax.random.PRNGKey(0)
    k_img, k_ang, k_p = jax.random.split(key, 3)
    img = jax.random.normal(k_img, (B, SEQ_LEN, C_IMG, H_IMG, W_IMG),
                            jnp.float32)
    ang = jax.random.normal(k_ang, (B, SEQ_LEN, 2), jnp.float32)
    params = init_params(k_p)

    fwd = jax.jit(lambda i, a: ar_transformer_forward(i, a, params))
    out_label, out_target, out_angle = fwd(img, ang)
    jax.block_until_ready((out_label, out_target, out_angle))

    assert out_label.shape == (B, NUM_CLASSES1)
    assert out_target.shape == (B, NUM_CLASSES1)
    assert out_angle.shape == (B, NUM_CLASSES2)
    assert all(bool(jnp.all(jnp.isfinite(o)))
               for o in (out_label, out_target, out_angle))
    print("KERNEL_OK")
</pallas_src>

<mosaic_0001>
module attributes {stable_mosaic.version = 11 : i64} {
  func.func @_fused_forward_kernel(%arg0: memref<16x768xf32, #tpu.memory_space<vmem>>, %arg1: memref<16x2xf32, #tpu.memory_space<vmem>>, %arg2: memref<768x30xf32, #tpu.memory_space<vmem>>, %arg3: memref<1x30xf32, #tpu.memory_space<vmem>>, %arg4: memref<30x32xf32, #tpu.memory_space<vmem>>, %arg5: memref<2x32xf32, #tpu.memory_space<vmem>>, %arg6: memref<1x32xf32, #tpu.memory_space<vmem>>, %arg7: memref<2x32x96xf32, #tpu.memory_space<vmem>>, %arg8: memref<2x1x96xf32, #tpu.memory_space<vmem>>, %arg9: memref<2x32x32xf32, #tpu.memory_space<vmem>>, %arg10: memref<2x1x32xf32, #tpu.memory_space<vmem>>, %arg11: memref<2x1x32xf32, #tpu.memory_space<vmem>>, %arg12: memref<2x1x32xf32, #tpu.memory_space<vmem>>, %arg13: memref<2x1x32xf32, #tpu.memory_space<vmem>>, %arg14: memref<2x1x32xf32, #tpu.memory_space<vmem>>, %arg15: memref<2x32x64xf32, #tpu.memory_space<vmem>>, %arg16: memref<2x1x64xf32, #tpu.memory_space<vmem>>, %arg17: memref<2x64x32xf32, #tpu.memory_space<vmem>>, %arg18: memref<2x1x32xf32, #tpu.memory_space<vmem>>, %arg19: memref<1x32xf32, #tpu.memory_space<vmem>>, %arg20: memref<1x32xf32, #tpu.memory_space<vmem>>, %arg21: memref<32x6xf32, #tpu.memory_space<vmem>>, %arg22: memref<1x6xf32, #tpu.memory_space<vmem>>, %arg23: memref<1x32xf32, #tpu.memory_space<vmem>>, %arg24: memref<1x32xf32, #tpu.memory_space<vmem>>, %arg25: memref<32x6xf32, #tpu.memory_space<vmem>>, %arg26: memref<1x6xf32, #tpu.memory_space<vmem>>, %arg27: memref<1x32xf32, #tpu.memory_space<vmem>>, %arg28: memref<1x32xf32, #tpu.memory_space<vmem>>, %arg29: memref<32x16xf32, #tpu.memory_space<vmem>>, %arg30: memref<1x16xf32, #tpu.memory_space<vmem>>, %arg31: memref<16x2xf32, #tpu.memory_space<vmem>>, %arg32: memref<1x2xf32, #tpu.memory_space<vmem>>, %arg33: memref<2x14xf32, #tpu.memory_space<vmem>>) attributes {dimension_semantics = [], scalar_prefetch = 0 : i64, scratch_operands = 0 : i64, tpu.core_type = #tpu.core_type<tc>} {
    %c0 = arith.constant 0 : index
    %c0_0 = arith.constant 0 : index
    %0 = vector.load %arg0[%c0, %c0_0] : memref<16x768xf32, #tpu.memory_space<vmem>>, vector<16x768xf32>
    %c0_1 = arith.constant 0 : index
    %c0_2 = arith.constant 0 : index
    %1 = vector.load %arg2[%c0_1, %c0_2] : memref<768x30xf32, #tpu.memory_space<vmem>>, vector<768x30xf32>
    %cst = arith.constant dense<0.000000e+00> : vector<16x30xf32>
    %2 = tpu.matmul %0, %1, %cst {dimension_numbers = #tpu.dot_dimension_numbers<[1], [0], [0], [1], [0, 0, 1, 1], [], []>} : vector<16x768xf32>, vector<768x30xf32>, vector<16x30xf32> -> vector<16x30xf32>
    %c0_3 = arith.constant 0 : index
    %c0_4 = arith.constant 0 : index
    %3 = vector.load %arg3[%c0_3, %c0_4] : memref<1x30xf32, #tpu.memory_space<vmem>>, vector<1x30xf32>
    %4 = vector.broadcast %3 : vector<1x30xf32> to vector<16x30xf32>
    %5 = arith.addf %2, %4 : vector<16x30xf32>
    %cst_5 = arith.constant 0.000000e+00 : f32
    %6 = vector.broadcast %cst_5 : f32 to vector<16x30xf32>
    %7 = arith.maximumf %5, %6 : vector<16x30xf32>
    %c0_6 = arith.constant 0 : index
    %c0_7 = arith.constant 0 : index
    %8 = vector.load %arg4[%c0_6, %c0_7] : memref<30x32xf32, #tpu.memory_space<vmem>>, vector<30x32xf32>
    %cst_8 = arith.constant dense<0.000000e+00> : vector<16x32xf32>
    %9 = tpu.matmul %7, %8, %cst_8 {dimension_numbers = #tpu.dot_dimension_numbers<[1], [0], [0], [1], [0, 0, 1, 1], [], []>} : vector<16x30xf32>, vector<30x32xf32>, vector<16x32xf32> -> vector<16x32xf32>
    %c0_9 = arith.constant 0 : index
    %c0_10 = arith.constant 0 : index
    %10 = vector.load %arg1[%c0_9, %c0_10] : memref<16x2xf32, #tpu.memory_space<vmem>>, vector<16x2xf32>
    %c0_11 = arith.constant 0 : index
    %c0_12 = arith.constant 0 : index
    %11 = vector.load %arg5[%c0_11, %c0_12] : memref<2x32xf32, #tpu.memory_space<vmem>>, vector<2x32xf32>
    %cst_13 = arith.constant dense<0.000000e+00> : vector<16x32xf32>
    %12 = tpu.matmul %10, %11, %cst_13 {dimension_numbers = #tpu.dot_dimension_numbers<[1], [0], [0], [1], [0, 0, 1, 1], [], []>} : vector<16x2xf32>, vector<2x32xf32>, vector<16x32xf32> -> vector<16x32xf32>
    %13 = arith.addf %9, %12 : vector<16x32xf32>
    %c0_14 = arith.constant 0 : index
    %c0_15 = arith.constant 0 : index
    %14 = vector.load %arg6[%c0_14, %c0_15] : memref<1x32xf32, #tpu.memory_space<vmem>>, vector<1x32xf32>
    %15 = vector.broadcast %14 : vector<1x32xf32> to vector<16x32xf32>
    %16 = arith.addf %13, %15 : vector<16x32xf32>
    %c0_16 = arith.constant 0 : index
    %c0_17 = arith.constant 0 : index
    %c0_18 = arith.constant 0 : index
    %17 = vector.load %arg7[%c0_16, %c0_17, %c0_18] : memref<2x32x96xf32, #tpu.memory_space<vmem>>, vector<1x32x96xf32>
    %18 = vector.shape_cast %17 : vector<1x32x96xf32> to vector<32x96xf32>
    %cst_19 = arith.constant dense<0.000000e+00> : vector<16x96xf32>
    %19 = tpu.matmul %16, %18, %cst_19 {dimension_numbers = #tpu.dot_dimension_numbers<[1], [0], [0], [1], [0, 0, 1, 1], [], []>} : vector<16x32xf32>, vector<32x96xf32>, vector<16x96xf32> -> vector<16x96xf32>
    %c0_20 = arith.constant 0 : index
    %c0_21 = arith.constant 0 : index
    %c0_22 = arith.constant 0 : index
    %20 = vector.load %arg8[%c0_20, %c0_21, %c0_22] : memref<2x1x96xf32, #tpu.memory_space<vmem>>, vector<1x1x96xf32>
    %21 = vector.shape_cast %20 : vector<1x1x96xf32> to vector<1x96xf32>
    %22 = vector.broadcast %21 : vector<1x96xf32> to vector<16x96xf32>
    %23 = arith.addf %19, %22 : vector<16x96xf32>
    %24 = vector.shape_cast %23 : vector<16x96xf32> to vector<2x8x96xf32>
    %25 = vector.extract_strided_slice %24 {offsets = [0, 0, 0], sizes = [2, 8, 8], strides = [1, 1, 1]} : vector<2x8x96xf32> to vector<2x8x8xf32>
    %26 = vector.extract_strided_slice %24 {offsets = [0, 0, 32], sizes = [2, 8, 8], strides = [1, 1, 1]} : vector<2x8x96xf32> to vector<2x8x8xf32>
    %27 = vector.extract_strided_slice %24 {offsets = [0, 0, 64], sizes = [2, 8, 8], strides = [1, 1, 1]} : vector<2x8x96xf32> to vector<2x8x8xf32>
    "tpu.trace_start"() <{level = 10 : i32, message = "bld,bmd->blm"}> : () -> ()
    %cst_23 = arith.constant dense<0.000000e+00> : vector<2x8x8xf32>
    %28 = tpu.matmul %25, %26, %cst_23 {dimension_numbers = #tpu.dot_dimension_numbers<[2], [2], [1], [1], [0, 0, 0, 1, 1, 1], [0], [0]>} : vector<2x8x8xf32>, vector<2x8x8xf32>, vector<2x8x8xf32> -> vector<2x8x8xf32>
    "tpu.trace_stop"() : () -> ()
    %cst_24 = arith.constant dense<0xFF800000> : vector<2x8xf32>
    %29 = vector.multi_reduction <maximumf>, %28, %cst_24 [2] : vector<2x8x8xf32> to vector<2x8xf32>
    %30 = vector.shape_cast %29 : vector<2x8xf32> to vector<2x8x1xf32>
    %31 = vector.broadcast %30 : vector<2x8x1xf32> to vector<2x8x8xf32>
    %32 = arith.subf %28, %31 : vector<2x8x8xf32>
    %33 = math.exp %32 : vector<2x8x8xf32>
    %cst_25 = arith.constant dense<0.000000e+00> : vector<2x8xf32>
    %34 = vector.multi_reduction <add>, %33, %cst_25 [2] : vector<2x8x8xf32> to vector<2x8xf32>
    %35 = vector.shape_cast %34 : vector<2x8xf32> to vector<2x8x1xf32>
    %36 = tpu.reciprocal %35 {approx = true} : vector<2x8x1xf32> -> vector<2x8x1xf32>
    %37 = vector.broadcast %36 : vector<2x8x1xf32> to vector<2x8x8xf32>
    %38 = arith.mulf %33, %37 : vector<2x8x8xf32>
    "tpu.trace_start"() <{level = 10 : i32, message = "blm,bmd->bld"}> : () -> ()
    %cst_26 = arith.constant dense<0.000000e+00> : vector<2x8x8xf32>
    %39 = tpu.matmul %38, %27, %cst_26 {dimension_numbers = #tpu.dot_dimension_numbers<[2], [1], [1], [2], [0, 0, 0, 1, 1, 2], [0], [0]>} : vector<2x8x8xf32>, vector<2x8x8xf32>, vector<2x8x8xf32> -> vector<2x8x8xf32>
    "tpu.trace_stop"() : () -> ()
    %40 = vector.extract_strided_slice %24 {offsets = [0, 0, 8], sizes = [2, 8, 8], strides = [1, 1, 1]} : vector<2x8x96xf32> to vector<2x8x8xf32>
    %41 = vector.extract_strided_slice %24 {offsets = [0, 0, 40], sizes = [2, 8, 8], strides = [1, 1, 1]} : vector<2x8x96xf32> to vector<2x8x8xf32>
    %42 = vector.extract_strided_slice %24 {offsets = [0, 0, 72], sizes = [2, 8, 8], strides = [1, 1, 1]} : vector<2x8x96xf32> to vector<2x8x8xf32>
    "tpu.trace_start"() <{level = 10 : i32, message = "bld,bmd->blm"}> : () -> ()
    %cst_27 = arith.constant dense<0.000000e+00> : vector<2x8x8xf32>
    %43 = tpu.matmul %40, %41, %cst_27 {dimension_numbers = #tpu.dot_dimension_numbers<[2], [2], [1], [1], [0, 0, 0, 1, 1, 1], [0], [0]>} : vector<2x8x8xf32>, vector<2x8x8xf32>, vector<2x8x8xf32> -> vector<2x8x8xf32>
    "tpu.trace_stop"() : () -> ()
    %cst_28 = arith.constant dense<0xFF800000> : vector<2x8xf32>
    %44 = vector.multi_reduction <maximumf>, %43, %cst_28 [2] : vector<2x8x8xf32> to vector<2x8xf32>
    %45 = vector.shape_cast %44 : vector<2x8xf32> to vector<2x8x1xf32>
    %46 = vector.broadcast %45 : vector<2x8x1xf32> to vector<2x8x8xf32>
    %47 = arith.subf %43, %46 : vector<2x8x8xf32>
    %48 = math.exp %47 : vector<2x8x8xf32>
    %cst_29 = arith.constant dense<0.000000e+00> : vector<2x8xf32>
    %49 = vector.multi_reduction <add>, %48, %cst_29 [2] : vector<2x8x8xf32> to vector<2x8xf32>
    %50 = vector.shape_cast %49 : vector<2x8xf32> to vector<2x8x1xf32>
    %51 = tpu.reciprocal %50 {approx = true} : vector<2x8x1xf32> -> vector<2x8x1xf32>
    %52 = vector.broadcast %51 : vector<2x8x1xf32> to vector<2x8x8xf32>
    %53 = arith.mulf %48, %52 : vector<2x8x8xf32>
    "tpu.trace_start"() <{level = 10 : i32, message = "blm,bmd->bld"}> : () -> ()
    %cst_30 = arith.constant dense<0.000000e+00> : vector<2x8x8xf32>
    %54 = tpu.matmul %53, %42, %cst_30 {dimension_numbers = #tpu.dot_dimension_numbers<[2], [1], [1], [2], [0, 0, 0, 1, 1, 2], [0], [0]>} : vector<2x8x8xf32>, vector<2x8x8xf32>, vector<2x8x8xf32> -> vector<2x8x8xf32>
    "tpu.trace_stop"() : () -> ()
    %55 = vector.extract_strided_slice %24 {offsets = [0, 0, 16], sizes = [2, 8, 8], strides = [1, 1, 1]} : vector<2x8x96xf32> to vector<2x8x8xf32>
    %56 = vector.extract_strided_slice %24 {offsets = [0, 0, 48], sizes = [2, 8, 8], strides = [1, 1, 1]} : vector<2x8x96xf32> to vector<2x8x8xf32>
    %57 = vector.extract_strided_slice %24 {offsets = [0, 0, 80], sizes = [2, 8, 8], strides = [1, 1, 1]} : vector<2x8x96xf32> to vector<2x8x8xf32>
    "tpu.trace_start"() <{level = 10 : i32, message = "bld,bmd->blm"}> : () -> ()
    %cst_31 = arith.constant dense<0.000000e+00> : vector<2x8x8xf32>
    %58 = tpu.matmul %55, %56, %cst_31 {dimension_numbers = #tpu.dot_dimension_numbers<[2], [2], [1], [1], [0, 0, 0, 1, 1, 1], [0], [0]>} : vector<2x8x8xf32>, vector<2x8x8xf32>, vector<2x8x8xf32> -> vector<2x8x8xf32>
    "tpu.trace_stop"() : () -> ()
    %cst_32 = arith.constant dense<0xFF800000> : vector<2x8xf32>
    %59 = vector.multi_reduction <maximumf>, %58, %cst_32 [2] : vector<2x8x8xf32> to vector<2x8xf32>
    %60 = vector.shape_cast %59 : vector<2x8xf32> to vector<2x8x1xf32>
    %61 = vector.broadcast %60 : vector<2x8x1xf32> to vector<2x8x8xf32>
    %62 = arith.subf %58, %61 : vector<2x8x8xf32>
    %63 = math.exp %62 : vector<2x8x8xf32>
    %cst_33 = arith.constant dense<0.000000e+00> : vector<2x8xf32>
    %64 = vector.multi_reduction <add>, %63, %cst_33 [2] : vector<2x8x8xf32> to vector<2x8xf32>
    %65 = vector.shape_cast %64 : vector<2x8xf32> to vector<2x8x1xf32>
    %66 = tpu.reciprocal %65 {approx = true} : vector<2x8x1xf32> -> vector<2x8x1xf32>
    %67 = vector.broadcast %66 : vector<2x8x1xf32> to vector<2x8x8xf32>
    %68 = arith.mulf %63, %67 : vector<2x8x8xf32>
    "tpu.trace_start"() <{level = 10 : i32, message = "blm,bmd->bld"}> : () -> ()
    %cst_34 = arith.constant dense<0.000000e+00> : vector<2x8x8xf32>
    %69 = tpu.matmul %68, %57, %cst_34 {dimension_numbers = #tpu.dot_dimension_numbers<[2], [1], [1], [2], [0, 0, 0, 1, 1, 2], [0], [0]>} : vector<2x8x8xf32>, vector<2x8x8xf32>, vector<2x8x8xf32> -> vector<2x8x8xf32>
    "tpu.trace_stop"() : () -> ()
    %70 = vector.extract_strided_slice %24 {offsets = [0, 0, 24], sizes = [2, 8, 8], strides = [1, 1, 1]} : vector<2x8x96xf32> to vector<2x8x8xf32>
    %71 = vector.extract_strided_slice %24 {offsets = [0, 0, 56], sizes = [2, 8, 8], strides = [1, 1, 1]} : vector<2x8x96xf32> to vector<2x8x8xf32>
    %72 = vector.extract_strided_slice %24 {offsets = [0, 0, 88], sizes = [2, 8, 8], strides = [1, 1, 1]} : vector<2x8x96xf32> to vector<2x8x8xf32>
    "tpu.trace_start"() <{level = 10 : i32, message = "bld,bmd->blm"}> : () -> ()
    %cst_35 = arith.constant dense<0.000000e+00> : vector<2x8x8xf32>
    %73 = tpu.matmul %70, %71, %cst_35 {dimension_numbers = #tpu.dot_dimension_numbers<[2], [2], [1], [1], [0, 0, 0, 1, 1, 1], [0], [0]>} : vector<2x8x8xf32>, vector<2x8x8xf32>, vector<2x8x8xf32> -> vector<2x8x8xf32>
    "tpu.trace_stop"() : () -> ()
    %cst_36 = arith.constant dense<0xFF800000> : vector<2x8xf32>
    %74 = vector.multi_reduction <maximumf>, %73, %cst_36 [2] : vector<2x8x8xf32> to vector<2x8xf32>
    %75 = vector.shape_cast %74 : vector<2x8xf32> to vector<2x8x1xf32>
    %76 = vector.broadcast %75 : vector<2x8x1xf32> to vector<2x8x8xf32>
    %77 = arith.subf %73, %76 : vector<2x8x8xf32>
    %78 = math.exp %77 : vector<2x8x8xf32>
    %cst_37 = arith.constant dense<0.000000e+00> : vector<2x8xf32>
    %79 = vector.multi_reduction <add>, %78, %cst_37 [2] : vector<2x8x8xf32> to vector<2x8xf32>
    %80 = vector.shape_cast %79 : vector<2x8xf32> to vector<2x8x1xf32>
    %81 = tpu.reciprocal %80 {approx = true} : vector<2x8x1xf32> -> vector<2x8x1xf32>
    %82 = vector.broadcast %81 : vector<2x8x1xf32> to vector<2x8x8xf32>
    %83 = arith.mulf %78, %82 : vector<2x8x8xf32>
    "tpu.trace_start"() <{level = 10 : i32, message = "blm,bmd->bld"}> : () -> ()
    %cst_38 = arith.constant dense<0.000000e+00> : vector<2x8x8xf32>
    %84 = tpu.matmul %83, %72, %cst_38 {dimension_numbers = #tpu.dot_dimension_numbers<[2], [1], [1], [2], [0, 0, 0, 1, 1, 2], [0], [0]>} : vector<2x8x8xf32>, vector<2x8x8xf32>, vector<2x8x8xf32> -> vector<2x8x8xf32>
    "tpu.trace_stop"() : () -> ()
    %85 = tpu.concatenate %39, %54, %69, %84 in 2 : vector<2x8x8xf32>, vector<2x8x8xf32>, vector<2x8x8xf32>, vector<2x8x8xf32> -> vector<2x8x32xf32>
    %86 = vector.shape_cast %85 : vector<2x8x32xf32> to vector<16x32xf32>
    %c0_39 = arith.constant 0 : index
    %c0_40 = arith.constant 0 : index
    %c0_41 = arith.constant 0 : index
    %87 = vector.load %arg9[%c0_39, %c0_40, %c0_41] : memref<2x32x32xf32, #tpu.memory_space<vmem>>, vector<1x32x32xf32>
    %88 = vector.shape_cast %87 : vector<1x32x32xf32> to vector<32x32xf32>
    %cst_42 = arith.constant dense<0.000000e+00> : vector<16x32xf32>
    %89 = tpu.matmul %86, %88, %cst_42 {dimension_numbers = #tpu.dot_dimension_numbers<[1], [0], [0], [1], [0, 0, 1, 1], [], []>} : vector<16x32xf32>, vector<32x32xf32>, vector<16x32xf32> -> vector<16x32xf32>
    %c0_43 = arith.constant 0 : index
    %c0_44 = arith.constant 0 : index
    %c0_45 = arith.constant 0 : index
    %90 = vector.load %arg10[%c0_43, %c0_44, %c0_45] : memref<2x1x32xf32, #tpu.memory_space<vmem>>, vector<1x1x32xf32>
    %91 = vector.shape_cast %90 : vector<1x1x32xf32> to vector<1x32xf32>
    %92 = vector.broadcast %91 : vector<1x32xf32> to vector<16x32xf32>
    %93 = arith.addf %89, %92 : vector<16x32xf32>
    %94 = arith.addf %16, %93 : vector<16x32xf32>
    %c0_46 = arith.constant 0 : index
    %c0_47 = arith.constant 0 : index
    %c0_48 = arith.constant 0 : index
    %95 = vector.load %arg11[%c0_46, %c0_47, %c0_48] : memref<2x1x32xf32, #tpu.memory_space<vmem>>, vector<1x1x32xf32>
    %96 = vector.shape_cast %95 : vector<1x1x32xf32> to vector<1x32xf32>
    %c0_49 = arith.constant 0 : index
    %c0_50 = arith.constant 0 : index
    %c0_51 = arith.constant 0 : index
    %97 = vector.load %arg12[%c0_49, %c0_50, %c0_51] : memref<2x1x32xf32, #tpu.memory_space<vmem>>, vector<1x1x32xf32>
    %98 = vector.shape_cast %97 : vector<1x1x32xf32> to vector<1x32xf32>
    %cst_52 = arith.constant dense<0.000000e+00> : vector<16xf32>
    %99 = vector.multi_reduction <add>, %94, %cst_52 [1] : vector<16x32xf32> to vector<16xf32>
    %100 = vector.shape_cast %99 : vector<16xf32> to vector<16x1xf32>
    %cst_53 = arith.constant 3.200000e+01 : f32
    %101 = vector.broadcast %cst_53 : f32 to vector<16x1xf32>
    %102 = arith.divf %100, %101 : vector<16x1xf32>
    %103 = vector.broadcast %102 : vector<16x1xf32> to vector<16x32xf32>
    %104 = arith.subf %94, %103 : vector<16x32xf32>
    %105 = arith.mulf %104, %104 : vector<16x32xf32>
    %cst_54 = arith.constant dense<0.000000e+00> : vector<16xf32>
    %106 = vector.multi_reduction <add>, %105, %cst_54 [1] : vector<16x32xf32> to vector<16xf32>
    %107 = vector.shape_cast %106 : vector<16xf32> to vector<16x1xf32>
    %cst_55 = arith.constant 3.200000e+01 : f32
    %108 = vector.broadcast %cst_55 : f32 to vector<16x1xf32>
    %109 = arith.divf %107, %108 : vector<16x1xf32>
    %110 = vector.broadcast %102 : vector<16x1xf32> to vector<16x32xf32>
    %111 = arith.subf %94, %110 : vector<16x32xf32>
    %cst_56 = arith.constant 9.99999974E-6 : f32
    %112 = vector.broadcast %cst_56 : f32 to vector<16x1xf32>
    %113 = arith.addf %109, %112 : vector<16x1xf32>
    %114 = math.rsqrt %113 : vector<16x1xf32>
    %115 = vector.broadcast %114 : vector<16x1xf32> to vector<16x32xf32>
    %116 = arith.mulf %111, %115 : vector<16x32xf32>
    %117 = vector.broadcast %96 : vector<1x32xf32> to vector<16x32xf32>
    %118 = arith.mulf %116, %117 : vector<16x32xf32>
    %119 = vector.broadcast %98 : vector<1x32xf32> to vector<16x32xf32>
    %120 = arith.addf %118, %119 : vector<16x32xf32>
    %c0_57 = arith.constant 0 : index
    %c0_58 = arith.constant 0 : index
    %c0_59 = arith.constant 0 : index
    %121 = vector.load %arg15[%c0_57, %c0_58, %c0_59] : memref<2x32x64xf32, #tpu.memory_space<vmem>>, vector<1x32x64xf32>
    %122 = vector.shape_cast %121 : vector<1x32x64xf32> to vector<32x64xf32>
    %cst_60 = arith.constant dense<0.000000e+00> : vector<16x64xf32>
    %123 = tpu.matmul %120, %122, %cst_60 {dimension_numbers = #tpu.dot_dimension_numbers<[1], [0], [0], [1], [0, 0, 1, 1], [], []>} : vector<16x32xf32>, vector<32x64xf32>, vector<16x64xf32> -> vector<16x64xf32>
    %c0_61 = arith.constant 0 : index
    %c0_62 = arith.constant 0 : index
    %c0_63 = arith.constant 0 : index
    %124 = vector.load %arg16[%c0_61, %c0_62, %c0_63] : memref<2x1x64xf32, #tpu.memory_space<vmem>>, vector<1x1x64xf32>
    %125 = vector.shape_cast %124 : vector<1x1x64xf32> to vector<1x64xf32>
    %126 = vector.broadcast %125 : vector<1x64xf32> to vector<16x64xf32>
    %127 = arith.addf %123, %126 : vector<16x64xf32>
    %cst_64 = arith.constant 0.000000e+00 : f32
    %128 = vector.broadcast %cst_64 : f32 to vector<16x64xf32>
    %129 = arith.maximumf %127, %128 : vector<16x64xf32>
    %c0_65 = arith.constant 0 : index
    %c0_66 = arith.constant 0 : index
    %c0_67 = arith.constant 0 : index
    %130 = vector.load %arg17[%c0_65, %c0_66, %c0_67] : memref<2x64x32xf32, #tpu.memory_space<vmem>>, vector<1x64x32xf32>
    %131 = vector.shape_cast %130 : vector<1x64x32xf32> to vector<64x32xf32>
    %cst_68 = arith.constant dense<0.000000e+00> : vector<16x32xf32>
    %132 = tpu.matmul %129, %131, %cst_68 {dimension_numbers = #tpu.dot_dimension_numbers<[1], [0], [0], [1], [0, 0, 1, 1], [], []>} : vector<16x64xf32>, vector<64x32xf32>, vector<16x32xf32> -> vector<16x32xf32>
    %c0_69 = arith.constant 0 : index
    %c0_70 = arith.constant 0 : index
    %c0_71 = arith.constant 0 : index
    %133 = vector.load %arg18[%c0_69, %c0_70, %c0_71] : memref<2x1x32xf32, #tpu.memory_space<vmem>>, vector<1x1x32xf32>
    %134 = vector.shape_cast %133 : vector<1x1x32xf32> to vector<1x32xf32>
    %135 = vector.broadcast %134 : vector<1x32xf32> to vector<16x32xf32>
    %136 = arith.addf %132, %135 : vector<16x32xf32>
    %137 = arith.addf %120, %136 : vector<16x32xf32>
    %c0_72 = arith.constant 0 : index
    %c0_73 = arith.constant 0 : index
    %c0_74 = arith.constant 0 : index
    %138 = vector.load %arg13[%c0_72, %c0_73, %c0_74] : memref<2x1x32xf32, #tpu.memory_space<vmem>>, vector<1x1x32xf32>
    %139 = vector.shape_cast %138 : vector<1x1x32xf32> to vector<1x32xf32>
    %c0_75 = arith.constant 0 : index
    %c0_76 = arith.constant 0 : index
    %c0_77 = arith.constant 0 : index
    %140 = vector.load %arg14[%c0_75, %c0_76, %c0_77] : memref<2x1x32xf32, #tpu.memory_space<vmem>>, vector<1x1x32xf32>
    %141 = vector.shape_cast %140 : vector<1x1x32xf32> to vector<1x32xf32>
    %cst_78 = arith.constant dense<0.000000e+00> : vector<16xf32>
    %142 = vector.multi_reduction <add>, %137, %cst_78 [1] : vector<16x32xf32> to vector<16xf32>
    %143 = vector.shape_cast %142 : vector<16xf32> to vector<16x1xf32>
    %cst_79 = arith.constant 3.200000e+01 : f32
    %144 = vector.broadcast %cst_79 : f32 to vector<16x1xf32>
    %145 = arith.divf %143, %144 : vector<16x1xf32>
    %146 = vector.broadcast %145 : vector<16x1xf32> to vector<16x32xf32>
    %147 = arith.subf %137, %146 : vector<16x32xf32>
    %148 = arith.mulf %147, %147 : vector<16x32xf32>
    %cst_80 = arith.constant dense<0.000000e+00> : vector<16xf32>
    %149 = vector.multi_reduction <add>, %148, %cst_80 [1] : vector<16x32xf32> to vector<16xf32>
    %150 = vector.shape_cast %149 : vector<16xf32> to vector<16x1xf32>
    %cst_81 = arith.constant 3.200000e+01 : f32
    %151 = vector.broadcast %cst_81 : f32 to vector<16x1xf32>
    %152 = arith.divf %150, %151 : vector<16x1xf32>
    %153 = vector.broadcast %145 : vector<16x1xf32> to vector<16x32xf32>
    %154 = arith.subf %137, %153 : vector<16x32xf32>
    %cst_82 = arith.constant 9.99999974E-6 : f32
    %155 = vector.broadcast %cst_82 : f32 to vector<16x1xf32>
    %156 = arith.addf %152, %155 : vector<16x1xf32>
    %157 = math.rsqrt %156 : vector<16x1xf32>
    %158 = vector.broadcast %157 : vector<16x1xf32> to vector<16x32xf32>
    %159 = arith.mulf %154, %158 : vector<16x32xf32>
    %160 = vector.broadcast %139 : vector<1x32xf32> to vector<16x32xf32>
    %161 = arith.mulf %159, %160 : vector<16x32xf32>
    %162 = vector.broadcast %141 : vector<1x32xf32> to vector<16x32xf32>
    %163 = arith.addf %161, %162 : vector<16x32xf32>
    %c1 = arith.constant 1 : index
    %c0_83 = arith.constant 0 : index
    %c0_84 = arith.constant 0 : index
    %164 = vector.load %arg7[%c1, %c0_83, %c0_84] : memref<2x32x96xf32, #tpu.memory_space<vmem>>, vector<1x32x96xf32>
    %165 = vector.shape_cast %164 : vector<1x32x96xf32> to vector<32x96xf32>
    %cst_85 = arith.constant dense<0.000000e+00> : vector<16x96xf32>
    %166 = tpu.matmul %163, %165, %cst_85 {dimension_numbers = #tpu.dot_dimension_numbers<[1], [0], [0], [1], [0, 0, 1, 1], [], []>} : vector<16x32xf32>, vector<32x96xf32>, vector<16x96xf32> -> vector<16x96xf32>
    %c1_86 = arith.constant 1 : index
    %c0_87 = arith.constant 0 : index
    %c0_88 = arith.constant 0 : index
    %167 = vector.load %arg8[%c1_86, %c0_87, %c0_88] : memref<2x1x96xf32, #tpu.memory_space<vmem>>, vector<1x1x96xf32>
    %168 = vector.shape_cast %167 : vector<1x1x96xf32> to vector<1x96xf32>
    %169 = vector.broadcast %168 : vector<1x96xf32> to vector<16x96xf32>
    %170 = arith.addf %166, %169 : vector<16x96xf32>
    %171 = vector.shape_cast %170 : vector<16x96xf32> to vector<2x8x96xf32>
    %172 = vector.extract_strided_slice %171 {offsets = [0, 0, 0], sizes = [2, 8, 8], strides = [1, 1, 1]} : vector<2x8x96xf32> to vector<2x8x8xf32>
    %173 = vector.extract_strided_slice %171 {offsets = [0, 0, 32], sizes = [2, 8, 8], strides = [1, 1, 1]} : vector<2x8x96xf32> to vector<2x8x8xf32>
    %174 = vector.extract_strided_slice %171 {offsets = [0, 0, 64], sizes = [2, 8, 8], strides = [1, 1, 1]} : vector<2x8x96xf32> to vector<2x8x8xf32>
    "tpu.trace_start"() <{level = 10 : i32, message = "bld,bmd->blm"}> : () -> ()
    %cst_89 = arith.constant dense<0.000000e+00> : vector<2x8x8xf32>
    %175 = tpu.matmul %172, %173, %cst_89 {dimension_numbers = #tpu.dot_dimension_numbers<[2], [2], [1], [1], [0, 0, 0, 1, 1, 1], [0], [0]>} : vector<2x8x8xf32>, vector<2x8x8xf32>, vector<2x8x8xf32> -> vector<2x8x8xf32>
    "tpu.trace_stop"() : () -> ()
    %cst_90 = arith.constant dense<0xFF800000> : vector<2x8xf32>
    %176 = vector.multi_reduction <maximumf>, %175, %cst_90 [2] : vector<2x8x8xf32> to vector<2x8xf32>
    %177 = vector.shape_cast %176 : vector<2x8xf32> to vector<2x8x1xf32>
    %178 = vector.broadcast %177 : vector<2x8x1xf32> to vector<2x8x8xf32>
    %179 = arith.subf %175, %178 : vector<2x8x8xf32>
    %180 = math.exp %179 : vector<2x8x8xf32>
    %cst_91 = arith.constant dense<0.000000e+00> : vector<2x8xf32>
    %181 = vector.multi_reduction <add>, %180, %cst_91 [2] : vector<2x8x8xf32> to vector<2x8xf32>
    %182 = vector.shape_cast %181 : vector<2x8xf32> to vector<2x8x1xf32>
    %183 = tpu.reciprocal %182 {approx = true} : vector<2x8x1xf32> -> vector<2x8x1xf32>
    %184 = vector.broadcast %183 : vector<2x8x1xf32> to vector<2x8x8xf32>
    %185 = arith.mulf %180, %184 : vector<2x8x8xf32>
    "tpu.trace_start"() <{level = 10 : i32, message = "blm,bmd->bld"}> : () -> ()
    %cst_92 = arith.constant dense<0.000000e+00> : vector<2x8x8xf32>
    %186 = tpu.matmul %185, %174, %cst_92 {dimension_numbers = #tpu.dot_dimension_numbers<[2], [1], [1], [2], [0, 0, 0, 1, 1, 2], [0], [0]>} : vector<2x8x8xf32>, vector<2x8x8xf32>, vector<2x8x8xf32> -> vector<2x8x8xf32>
    "tpu.trace_stop"() : () -> ()
    %187 = vector.extract_strided_slice %171 {offsets = [0, 0, 8], sizes = [2, 8, 8], strides = [1, 1, 1]} : vector<2x8x96xf32> to vector<2x8x8xf32>
    %188 = vector.extract_strided_slice %171 {offsets = [0, 0, 40], sizes = [2, 8, 8], strides = [1, 1, 1]} : vector<2x8x96xf32> to vector<2x8x8xf32>
    %189 = vector.extract_strided_slice %171 {offsets = [0, 0, 72], sizes = [2, 8, 8], strides = [1, 1, 1]} : vector<2x8x96xf32> to vector<2x8x8xf32>
    "tpu.trace_start"() <{level = 10 : i32, message = "bld,bmd->blm"}> : () -> ()
    %cst_93 = arith.constant dense<0.000000e+00> : vector<2x8x8xf32>
    %190 = tpu.matmul %187, %188, %cst_93 {dimension_numbers = #tpu.dot_dimension_numbers<[2], [2], [1], [1], [0, 0, 0, 1, 1, 1], [0], [0]>} : vector<2x8x8xf32>, vector<2x8x8xf32>, vector<2x8x8xf32> -> vector<2x8x8xf32>
    "tpu.trace_stop"() : () -> ()
    %cst_94 = arith.constant dense<0xFF800000> : vector<2x8xf32>
    %191 = vector.multi_reduction <maximumf>, %190, %cst_94 [2] : vector<2x8x8xf32> to vector<2x8xf32>
    %192 = vector.shape_cast %191 : vector<2x8xf32> to vector<2x8x1xf32>
    %193 = vector.broadcast %192 : vector<2x8x1xf32> to vector<2x8x8xf32>
    %194 = arith.subf %190, %193 : vector<2x8x8xf32>
    %195 = math.exp %194 : vector<2x8x8xf32>
    %cst_95 = arith.constant dense<0.000000e+00> : vector<2x8xf32>
    %196 = vector.multi_reduction <add>, %195, %cst_95 [2] : vector<2x8x8xf32> to vector<2x8xf32>
    %197 = vector.shape_cast %196 : vector<2x8xf32> to vector<2x8x1xf32>
    %198 = tpu.reciprocal %197 {approx = true} : vector<2x8x1xf32> -> vector<2x8x1xf32>
    %199 = vector.broadcast %198 : vector<2x8x1xf32> to vector<2x8x8xf32>
    %200 = arith.mulf %195, %199 : vector<2x8x8xf32>
    "tpu.trace_start"() <{level = 10 : i32, message = "blm,bmd->bld"}> : () -> ()
    %cst_96 = arith.constant dense<0.000000e+00> : vector<2x8x8xf32>
    %201 = tpu.matmul %200, %189, %cst_96 {dimension_numbers = #tpu.dot_dimension_numbers<[2], [1], [1], [2], [0, 0, 0, 1, 1, 2], [0], [0]>} : vector<2x8x8xf32>, vector<2x8x8xf32>, vector<2x8x8xf32> -> vector<2x8x8xf32>
    "tpu.trace_stop"() : () -> ()
    %202 = vector.extract_strided_slice %171 {offsets = [0, 0, 16], sizes = [2, 8, 8], strides = [1, 1, 1]} : vector<2x8x96xf32> to vector<2x8x8xf32>
    %203 = vector.extract_strided_slice %171 {offsets = [0, 0, 48], sizes = [2, 8, 8], strides = [1, 1, 1]} : vector<2x8x96xf32> to vector<2x8x8xf32>
    %204 = vector.extract_strided_slice %171 {offsets = [0, 0, 80], sizes = [2, 8, 8], strides = [1, 1, 1]} : vector<2x8x96xf32> to vector<2x8x8xf32>
    "tpu.trace_start"() <{level = 10 : i32, message = "bld,bmd->blm"}> : () -> ()
    %cst_97 = arith.constant dense<0.000000e+00> : vector<2x8x8xf32>
    %205 = tpu.matmul %202, %203, %cst_97 {dimension_numbers = #tpu.dot_dimension_numbers<[2], [2], [1], [1], [0, 0, 0, 1, 1, 1], [0], [0]>} : vector<2x8x8xf32>, vector<2x8x8xf32>, vector<2x8x8xf32> -> vector<2x8x8xf32>
    "tpu.trace_stop"() : () -> ()
    %cst_98 = arith.constant dense<0xFF800000> : vector<2x8xf32>
    %206 = vector.multi_reduction <maximumf>, %205, %cst_98 [2] : vector<2x8x8xf32> to vector<2x8xf32>
    %207 = vector.shape_cast %206 : vector<2x8xf32> to vector<2x8x1xf32>
    %208 = vector.broadcast %207 : vector<2x8x1xf32> to vector<2x8x8xf32>
    %209 = arith.subf %205, %208 : vector<2x8x8xf32>
    %210 = math.exp %209 : vector<2x8x8xf32>
    %cst_99 = arith.constant dense<0.000000e+00> : vector<2x8xf32>
    %211 = vector.multi_reduction <add>, %210, %cst_99 [2] : vector<2x8x8xf32> to vector<2x8xf32>
    %212 = vector.shape_cast %211 : vector<2x8xf32> to vector<2x8x1xf32>
    %213 = tpu.reciprocal %212 {approx = true} : vector<2x8x1xf32> -> vector<2x8x1xf32>
    %214 = vector.broadcast %213 : vector<2x8x1xf32> to vector<2x8x8xf32>
    %215 = arith.mulf %210, %214 : vector<2x8x8xf32>
    "tpu.trace_start"() <{level = 10 : i32, message = "blm,bmd->bld"}> : () -> ()
    %cst_100 = arith.constant dense<0.000000e+00> : vector<2x8x8xf32>
    %216 = tpu.matmul %215, %204, %cst_100 {dimension_numbers = #tpu.dot_dimension_numbers<[2], [1], [1], [2], [0, 0, 0, 1, 1, 2], [0], [0]>} : vector<2x8x8xf32>, vector<2x8x8xf32>, vector<2x8x8xf32> -> vector<2x8x8xf32>
    "tpu.trace_stop"() : () -> ()
    %217 = vector.extract_strided_slice %171 {offsets = [0, 0, 24], sizes = [2, 8, 8], strides = [1, 1, 1]} : vector<2x8x96xf32> to vector<2x8x8xf32>
    %218 = vector.extract_strided_slice %171 {offsets = [0, 0, 56], sizes = [2, 8, 8], strides = [1, 1, 1]} : vector<2x8x96xf32> to vector<2x8x8xf32>
    %219 = vector.extract_strided_slice %171 {offsets = [0, 0, 88], sizes = [2, 8, 8], strides = [1, 1, 1]} : vector<2x8x96xf32> to vector<2x8x8xf32>
    "tpu.trace_start"() <{level = 10 : i32, message = "bld,bmd->blm"}> : () -> ()
    %cst_101 = arith.constant dense<0.000000e+00> : vector<2x8x8xf32>
    %220 = tpu.matmul %217, %218, %cst_101 {dimension_numbers = #tpu.dot_dimension_numbers<[2], [2], [1], [1], [0, 0, 0, 1, 1, 1], [0], [0]>} : vector<2x8x8xf32>, vector<2x8x8xf32>, vector<2x8x8xf32> -> vector<2x8x8xf32>
    "tpu.trace_stop"() : () -> ()
    %cst_102 = arith.constant dense<0xFF800000> : vector<2x8xf32>
    %221 = vector.multi_reduction <maximumf>, %220, %cst_102 [2] : vector<2x8x8xf32> to vector<2x8xf32>
    %222 = vector.shape_cast %221 : vector<2x8xf32> to vector<2x8x1xf32>
    %223 = vector.broadcast %222 : vector<2x8x1xf32> to vector<2x8x8xf32>
    %224 = arith.subf %220, %223 : vector<2x8x8xf32>
    %225 = math.exp %224 : vector<2x8x8xf32>
    %cst_103 = arith.constant dense<0.000000e+00> : vector<2x8xf32>
    %226 = vector.multi_reduction <add>, %225, %cst_103 [2] : vector<2x8x8xf32> to vector<2x8xf32>
    %227 = vector.shape_cast %226 : vector<2x8xf32> to vector<2x8x1xf32>
    %228 = tpu.reciprocal %227 {approx = true} : vector<2x8x1xf32> -> vector<2x8x1xf32>
    %229 = vector.broadcast %228 : vector<2x8x1xf32> to vector<2x8x8xf32>
    %230 = arith.mulf %225, %229 : vector<2x8x8xf32>
    "tpu.trace_start"() <{level = 10 : i32, message = "blm,bmd->bld"}> : () -> ()
    %cst_104 = arith.constant dense<0.000000e+00> : vector<2x8x8xf32>
    %231 = tpu.matmul %230, %219, %cst_104 {dimension_numbers = #tpu.dot_dimension_numbers<[2], [1], [1], [2], [0, 0, 0, 1, 1, 2], [0], [0]>} : vector<2x8x8xf32>, vector<2x8x8xf32>, vector<2x8x8xf32> -> vector<2x8x8xf32>
    "tpu.trace_stop"() : () -> ()
    %232 = tpu.concatenate %186, %201, %216, %231 in 2 : vector<2x8x8xf32>, vector<2x8x8xf32>, vector<2x8x8xf32>, vector<2x8x8xf32> -> vector<2x8x32xf32>
    %233 = vector.shape_cast %232 : vector<2x8x32xf32> to vector<16x32xf32>
    %c1_105 = arith.constant 1 : index
    %c0_106 = arith.constant 0 : index
    %c0_107 = arith.constant 0 : index
    %234 = vector.load %arg9[%c1_105, %c0_106, %c0_107] : memref<2x32x32xf32, #tpu.memory_space<vmem>>, vector<1x32x32xf32>
    %235 = vector.shape_cast %234 : vector<1x32x32xf32> to vector<32x32xf32>
    %cst_108 = arith.constant dense<0.000000e+00> : vector<16x32xf32>
    %236 = tpu.matmul %233, %235, %cst_108 {dimension_numbers = #tpu.dot_dimension_numbers<[1], [0], [0], [1], [0, 0, 1, 1], [], []>} : vector<16x32xf32>, vector<32x32xf32>, vector<16x32xf32> -> vector<16x32xf32>
    %c1_109 = arith.constant 1 : index
    %c0_110 = arith.constant 0 : index
    %c0_111 = arith.constant 0 : index
    %237 = vector.load %arg10[%c1_109, %c0_110, %c0_111] : memref<2x1x32xf32, #tpu.memory_space<vmem>>, vector<1x1x32xf32>
    %238 = vector.shape_cast %237 : vector<1x1x32xf32> to vector<1x32xf32>
    %239 = vector.broadcast %238 : vector<1x32xf32> to vector<16x32xf32>
    %240 = arith.addf %236, %239 : vector<16x32xf32>
    %241 = arith.addf %163, %240 : vector<16x32xf32>
    %c1_112 = arith.constant 1 : index
    %c0_113 = arith.constant 0 : index
    %c0_114 = arith.constant 0 : index
    %242 = vector.load %arg11[%c1_112, %c0_113, %c0_114] : memref<2x1x32xf32, #tpu.memory_space<vmem>>, vector<1x1x32xf32>
    %243 = vector.shape_cast %242 : vector<1x1x32xf32> to vector<1x32xf32>
    %c1_115 = arith.constant 1 : index
    %c0_116 = arith.constant 0 : index
    %c0_117 = arith.constant 0 : index
    %244 = vector.load %arg12[%c1_115, %c0_116, %c0_117] : memref<2x1x32xf32, #tpu.memory_space<vmem>>, vector<1x1x32xf32>
    %245 = vector.shape_cast %244 : vector<1x1x32xf32> to vector<1x32xf32>
    %cst_118 = arith.constant dense<0.000000e+00> : vector<16xf32>
    %246 = vector.multi_reduction <add>, %241, %cst_118 [1] : vector<16x32xf32> to vector<16xf32>
    %247 = vector.shape_cast %246 : vector<16xf32> to vector<16x1xf32>
    %cst_119 = arith.constant 3.200000e+01 : f32
    %248 = vector.broadcast %cst_119 : f32 to vector<16x1xf32>
    %249 = arith.divf %247, %248 : vector<16x1xf32>
    %250 = vector.broadcast %249 : vector<16x1xf32> to vector<16x32xf32>
    %251 = arith.subf %241, %250 : vector<16x32xf32>
    %252 = arith.mulf %251, %251 : vector<16x32xf32>
    %cst_120 = arith.constant dense<0.000000e+00> : vector<16xf32>
    %253 = vector.multi_reduction <add>, %252, %cst_120 [1] : vector<16x32xf32> to vector<16xf32>
    %254 = vector.shape_cast %253 : vector<16xf32> to vector<16x1xf32>
    %cst_121 = arith.constant 3.200000e+01 : f32
    %255 = vector.broadcast %cst_121 : f32 to vector<16x1xf32>
    %256 = arith.divf %254, %255 : vector<16x1xf32>
    %257 = vector.broadcast %249 : vector<16x1xf32> to vector<16x32xf32>
    %258 = arith.subf %241, %257 : vector<16x32xf32>
    %cst_122 = arith.constant 9.99999974E-6 : f32
    %259 = vector.broadcast %cst_122 : f32 to vector<16x1xf32>
    %260 = arith.addf %256, %259 : vector<16x1xf32>
    %261 = math.rsqrt %260 : vector<16x1xf32>
    %262 = vector.broadcast %261 : vector<16x1xf32> to vector<16x32xf32>
    %263 = arith.mulf %258, %262 : vector<16x32xf32>
    %264 = vector.broadcast %243 : vector<1x32xf32> to vector<16x32xf32>
    %265 = arith.mulf %263, %264 : vector<16x32xf32>
    %266 = vector.broadcast %245 : vector<1x32xf32> to vector<16x32xf32>
    %267 = arith.addf %265, %266 : vector<16x32xf32>
    %c1_123 = arith.constant 1 : index
    %c0_124 = arith.constant 0 : index
    %c0_125 = arith.constant 0 : index
    %268 = vector.load %arg15[%c1_123, %c0_124, %c0_125] : memref<2x32x64xf32, #tpu.memory_space<vmem>>, vector<1x32x64xf32>
    %269 = vector.shape_cast %268 : vector<1x32x64xf32> to vector<32x64xf32>
    %cst_126 = arith.constant dense<0.000000e+00> : vector<16x64xf32>
    %270 = tpu.matmul %267, %269, %cst_126 {dimension_numbers = #tpu.dot_dimension_numbers<[1], [0], [0], [1], [0, 0, 1, 1], [], []>} : vector<16x32xf32>, vector<32x64xf32>, vector<16x64xf32> -> vector<16x64xf32>
    %c1_127 = arith.constant 1 : index
    %c0_128 = arith.constant 0 : index
    %c0_129 = arith.constant 0 : index
    %271 = vector.load %arg16[%c1_127, %c0_128, %c0_129] : memref<2x1x64xf32, #tpu.memory_space<vmem>>, vector<1x1x64xf32>
    %272 = vector.shape_cast %271 : vector<1x1x64xf32> to vector<1x64xf32>
    %273 = vector.broadcast %272 : vector<1x64xf32> to vector<16x64xf32>
    %274 = arith.addf %270, %273 : vector<16x64xf32>
    %cst_130 = arith.constant 0.000000e+00 : f32
    %275 = vector.broadcast %cst_130 : f32 to vector<16x64xf32>
    %276 = arith.maximumf %274, %275 : vector<16x64xf32>
    %c1_131 = arith.constant 1 : index
    %c0_132 = arith.constant 0 : index
    %c0_133 = arith.constant 0 : index
    %277 = vector.load %arg17[%c1_131, %c0_132, %c0_133] : memref<2x64x32xf32, #tpu.memory_space<vmem>>, vector<1x64x32xf32>
    %278 = vector.shape_cast %277 : vector<1x64x32xf32> to vector<64x32xf32>
    %cst_134 = arith.constant dense<0.000000e+00> : vector<16x32xf32>
    %279 = tpu.matmul %276, %278, %cst_134 {dimension_numbers = #tpu.dot_dimension_numbers<[1], [0], [0], [1], [0, 0, 1, 1], [], []>} : vector<16x64xf32>, vector<64x32xf32>, vector<16x32xf32> -> vector<16x32xf32>
    %c1_135 = arith.constant 1 : index
    %c0_136 = arith.constant 0 : index
    %c0_137 = arith.constant 0 : index
    %280 = vector.load %arg18[%c1_135, %c0_136, %c0_137] : memref<2x1x32xf32, #tpu.memory_space<vmem>>, vector<1x1x32xf32>
    %281 = vector.shape_cast %280 : vector<1x1x32xf32> to vector<1x32xf32>
    %282 = vector.broadcast %281 : vector<1x32xf32> to vector<16x32xf32>
    %283 = arith.addf %279, %282 : vector<16x32xf32>
    %284 = arith.addf %267, %283 : vector<16x32xf32>
    %c1_138 = arith.constant 1 : index
    %c0_139 = arith.constant 0 : index
    %c0_140 = arith.constant 0 : index
    %285 = vector.load %arg13[%c1_138, %c0_139, %c0_140] : memref<2x1x32xf32, #tpu.memory_space<vmem>>, vector<1x1x32xf32>
    %286 = vector.shape_cast %285 : vector<1x1x32xf32> to vector<1x32xf32>
    %c1_141 = arith.constant 1 : index
    %c0_142 = arith.constant 0 : index
    %c0_143 = arith.constant 0 : index
    %287 = vector.load %arg14[%c1_141, %c0_142, %c0_143] : memref<2x1x32xf32, #tpu.memory_space<vmem>>, vector<1x1x32xf32>
    %288 = vector.shape_cast %287 : vector<1x1x32xf32> to vector<1x32xf32>
    %cst_144 = arith.constant dense<0.000000e+00> : vector<16xf32>
    %289 = vector.multi_reduction <add>, %284, %cst_144 [1] : vector<16x32xf32> to vector<16xf32>
    %290 = vector.shape_cast %289 : vector<16xf32> to vector<16x1xf32>
    %cst_145 = arith.constant 3.200000e+01 : f32
    %291 = vector.broadcast %cst_145 : f32 to vector<16x1xf32>
    %292 = arith.divf %290, %291 : vector<16x1xf32>
    %293 = vector.broadcast %292 : vector<16x1xf32> to vector<16x32xf32>
    %294 = arith.subf %284, %293 : vector<16x32xf32>
    %295 = arith.mulf %294, %294 : vector<16x32xf32>
    %cst_146 = arith.constant dense<0.000000e+00> : vector<16xf32>
    %296 = vector.multi_reduction <add>, %295, %cst_146 [1] : vector<16x32xf32> to vector<16xf32>
    %297 = vector.shape_cast %296 : vector<16xf32> to vector<16x1xf32>
    %cst_147 = arith.constant 3.200000e+01 : f32
    %298 = vector.broadcast %cst_147 : f32 to vector<16x1xf32>
    %299 = arith.divf %297, %298 : vector<16x1xf32>
    %300 = vector.broadcast %292 : vector<16x1xf32> to vector<16x32xf32>
    %301 = arith.subf %284, %300 : vector<16x32xf32>
    %cst_148 = arith.constant 9.99999974E-6 : f32
    %302 = vector.broadcast %cst_148 : f32 to vector<16x1xf32>
    %303 = arith.addf %299, %302 : vector<16x1xf32>
    %304 = math.rsqrt %303 : vector<16x1xf32>
    %305 = vector.broadcast %304 : vector<16x1xf32> to vector<16x32xf32>
    %306 = arith.mulf %301, %305 : vector<16x32xf32>
    %307 = vector.broadcast %286 : vector<1x32xf32> to vector<16x32xf32>
    %308 = arith.mulf %306, %307 : vector<16x32xf32>
    %309 = vector.broadcast %288 : vector<1x32xf32> to vector<16x32xf32>
    %310 = arith.addf %308, %309 : vector<16x32xf32>
    %311 = vector.extract_strided_slice %310 {offsets = [7, 0], sizes = [1, 32], strides = [1, 1]} : vector<16x32xf32> to vector<1x32xf32>
    %312 = vector.extract_strided_slice %310 {offsets = [15, 0], sizes = [1, 32], strides = [1, 1]} : vector<16x32xf32> to vector<1x32xf32>
    %313 = tpu.concatenate %311, %312 in 0 : vector<1x32xf32>, vector<1x32xf32> -> vector<2x32xf32>
    %cst_149 = arith.constant dense<0.000000e+00> : vector<2xf32>
    %314 = vector.multi_reduction <add>, %313, %cst_149 [1] : vector<2x32xf32> to vector<2xf32>
    %315 = vector.shape_cast %314 : vector<2xf32> to vector<2x1xf32>
    %cst_150 = arith.constant 3.200000e+01 : f32
    %316 = vector.broadcast %cst_150 : f32 to vector<2x1xf32>
    %317 = arith.divf %315, %316 : vector<2x1xf32>
    %318 = vector.broadcast %317 : vector<2x1xf32> to vector<2x32xf32>
    %319 = arith.subf %313, %318 : vector<2x32xf32>
    %320 = arith.mulf %319, %319 : vector<2x32xf32>
    %cst_151 = arith.constant dense<0.000000e+00> : vector<2xf32>
    %321 = vector.multi_reduction <add>, %320, %cst_151 [1] : vector<2x32xf32> to vector<2xf32>
    %322 = vector.shape_cast %321 : vector<2xf32> to vector<2x1xf32>
    %cst_152 = arith.constant 3.200000e+01 : f32
    %323 = vector.broadcast %cst_152 : f32 to vector<2x1xf32>
    %324 = arith.divf %322, %323 : vector<2x1xf32>
    %325 = vector.broadcast %317 : vector<2x1xf32> to vector<2x32xf32>
    %326 = arith.subf %313, %325 : vector<2x32xf32>
    %cst_153 = arith.constant 9.99999974E-6 : f32
    %327 = vector.broadcast %cst_153 : f32 to vector<2x1xf32>
    %328 = arith.addf %324, %327 : vector<2x1xf32>
    %329 = math.rsqrt %328 : vector<2x1xf32>
    %330 = vector.broadcast %329 : vector<2x1xf32> to vector<2x32xf32>
    %331 = arith.mulf %326, %330 : vector<2x32xf32>
    %c0_154 = arith.constant 0 : index
    %c0_155 = arith.constant 0 : index
    %332 = vector.load %arg19[%c0_154, %c0_155] : memref<1x32xf32, #tpu.memory_space<vmem>>, vector<1x32xf32>
    %333 = vector.broadcast %332 : vector<1x32xf32> to vector<2x32xf32>
    %334 = arith.mulf %331, %333 : vector<2x32xf32>
    %c0_156 = arith.constant 0 : index
    %c0_157 = arith.constant 0 : index
    %335 = vector.load %arg20[%c0_156, %c0_157] : memref<1x32xf32, #tpu.memory_space<vmem>>, vector<1x32xf32>
    %336 = vector.broadcast %335 : vector<1x32xf32> to vector<2x32xf32>
    %337 = arith.addf %334, %336 : vector<2x32xf32>
    %c0_158 = arith.constant 0 : index
    %c0_159 = arith.constant 0 : index
    %338 = vector.load %arg21[%c0_158, %c0_159] : memref<32x6xf32, #tpu.memory_space<vmem>>, vector<32x6xf32>
    %cst_160 = arith.constant dense<0.000000e+00> : vector<2x6xf32>
    %339 = tpu.matmul %337, %338, %cst_160 {dimension_numbers = #tpu.dot_dimension_numbers<[1], [0], [0], [1], [0, 0, 1, 1], [], []>} : vector<2x32xf32>, vector<32x6xf32>, vector<2x6xf32> -> vector<2x6xf32>
    %c0_161 = arith.constant 0 : index
    %c0_162 = arith.constant 0 : index
    %340 = vector.load %arg22[%c0_161, %c0_162] : memref<1x6xf32, #tpu.memory_space<vmem>>, vector<1x6xf32>
    %341 = vector.broadcast %340 : vector<1x6xf32> to vector<2x6xf32>
    %342 = arith.addf %339, %341 : vector<2x6xf32>
    %c0_163 = arith.constant 0 : index
    %c0_164 = arith.constant 0 : index
    %343 = vector.load %arg23[%c0_163, %c0_164] : memref<1x32xf32, #tpu.memory_space<vmem>>, vector<1x32xf32>
    %344 = vector.broadcast %343 : vector<1x32xf32> to vector<2x32xf32>
    %345 = arith.mulf %331, %344 : vector<2x32xf32>
    %c0_165 = arith.constant 0 : index
    %c0_166 = arith.constant 0 : index
    %346 = vector.load %arg24[%c0_165, %c0_166] : memref<1x32xf32, #tpu.memory_space<vmem>>, vector<1x32xf32>
    %347 = vector.broadcast %346 : vector<1x32xf32> to vector<2x32xf32>
    %348 = arith.addf %345, %347 : vector<2x32xf32>
    %c0_167 = arith.constant 0 : index
    %c0_168 = arith.constant 0 : index
    %349 = vector.load %arg25[%c0_167, %c0_168] : memref<32x6xf32, #tpu.memory_space<vmem>>, vector<32x6xf32>
    %cst_169 = arith.constant dense<0.000000e+00> : vector<2x6xf32>
    %350 = tpu.matmul %348, %349, %cst_169 {dimension_numbers = #tpu.dot_dimension_numbers<[1], [0], [0], [1], [0, 0, 1, 1], [], []>} : vector<2x32xf32>, vector<32x6xf32>, vector<2x6xf32> -> vector<2x6xf32>
    %c0_170 = arith.constant 0 : index
    %c0_171 = arith.constant 0 : index
    %351 = vector.load %arg26[%c0_170, %c0_171] : memref<1x6xf32, #tpu.memory_space<vmem>>, vector<1x6xf32>
    %352 = vector.broadcast %351 : vector<1x6xf32> to vector<2x6xf32>
    %353 = arith.addf %350, %352 : vector<2x6xf32>
    %c0_172 = arith.constant 0 : index
    %c0_173 = arith.constant 0 : index
    %354 = vector.load %arg27[%c0_172, %c0_173] : memref<1x32xf32, #tpu.memory_space<vmem>>, vector<1x32xf32>
    %355 = vector.broadcast %354 : vector<1x32xf32> to vector<2x32xf32>
    %356 = arith.mulf %331, %355 : vector<2x32xf32>
    %c0_174 = arith.constant 0 : index
    %c0_175 = arith.constant 0 : index
    %357 = vector.load %arg28[%c0_174, %c0_175] : memref<1x32xf32, #tpu.memory_space<vmem>>, vector<1x32xf32>
    %358 = vector.broadcast %357 : vector<1x32xf32> to vector<2x32xf32>
    %359 = arith.addf %356, %358 : vector<2x32xf32>
    %cst_176 = arith.constant -1.000000e+00 : f32
    %cst_177 = arith.constant 1.000000e+00 : f32
    %360 = vector.broadcast %cst_176 : f32 to vector<2x32xf32>
    %361 = arith.maximumf %360, %359 : vector<2x32xf32>
    %362 = vector.broadcast %cst_177 : f32 to vector<2x32xf32>
    %363 = arith.minimumf %362, %361 : vector<2x32xf32>
    %c0_178 = arith.constant 0 : index
    %c0_179 = arith.constant 0 : index
    %364 = vector.load %arg29[%c0_178, %c0_179] : memref<32x16xf32, #tpu.memory_space<vmem>>, vector<32x16xf32>
    %cst_180 = arith.constant dense<0.000000e+00> : vector<2x16xf32>
    %365 = tpu.matmul %363, %364, %cst_180 {dimension_numbers = #tpu.dot_dimension_numbers<[1], [0], [0], [1], [0, 0, 1, 1], [], []>} : vector<2x32xf32>, vector<32x16xf32>, vector<2x16xf32> -> vector<2x16xf32>
    %c0_181 = arith.constant 0 : index
    %c0_182 = arith.constant 0 : index
    %366 = vector.load %arg30[%c0_181, %c0_182] : memref<1x16xf32, #tpu.memory_space<vmem>>, vector<1x16xf32>
    %367 = vector.broadcast %366 : vector<1x16xf32> to vector<2x16xf32>
    %368 = arith.addf %365, %367 : vector<2x16xf32>
    %cst_183 = arith.constant -1.000000e+00 : f32
    %cst_184 = arith.constant 1.000000e+00 : f32
    %369 = vector.broadcast %cst_183 : f32 to vector<2x16xf32>
    %370 = arith.maximumf %369, %368 : vector<2x16xf32>
    %371 = vector.broadcast %cst_184 : f32 to vector<2x16xf32>
    %372 = arith.minimumf %371, %370 : vector<2x16xf32>
    %c0_185 = arith.constant 0 : index
    %c0_186 = arith.constant 0 : index
    %373 = vector.load %arg31[%c0_185, %c0_186] : memref<16x2xf32, #tpu.memory_space<vmem>>, vector<16x2xf32>
    %cst_187 = arith.constant dense<0.000000e+00> : vector<2x2xf32>
    %374 = tpu.matmul %372, %373, %cst_187 {dimension_numbers = #tpu.dot_dimension_numbers<[1], [0], [0], [1], [0, 0, 1, 1], [], []>} : vector<2x16xf32>, vector<16x2xf32>, vector<2x2xf32> -> vector<2x2xf32>
    %c0_188 = arith.constant 0 : index
    %c0_189 = arith.constant 0 : index
    %375 = vector.load %arg32[%c0_188, %c0_189] : memref<1x2xf32, #tpu.memory_space<vmem>>, vector<1x2xf32>
    %376 = vector.broadcast %375 : vector<1x2xf32> to vector<2x2xf32>
    %377 = arith.addf %374, %376 : vector<2x2xf32>
    %378 = tpu.concatenate %342, %353, %377 in 1 : vector<2x6xf32>, vector<2x6xf32>, vector<2x2xf32> -> vector<2x14xf32>
    %c0_190 = arith.constant 0 : index
    %c0_191 = arith.constant 0 : index
    %379 = vector.load %arg33[%c0_190, %c0_191] : memref<2x14xf32, #tpu.memory_space<vmem>>, vector<2x14xf32>
    tpu.vector_store %arg33[%c0_190, %c0_191], %378 {strides = array<i32>} : memref<2x14xf32, #tpu.memory_space<vmem>>, vector<2x14xf32>,
    return
  }
}

</mosaic_0001>

<llo_original>
// kernel: _lambda_.1
$region0: #{_lambda_.1}
  #allocation0 [shape = 'u32[]', space=smem, size = 0x4, offset = 0x4, fixed_abs, tag = 'smem constant byte address 0x4 - core index']
  #allocation1 [shape = 'u32[72,128]{1,0:T(1,128)}', space=vmem, size = 0x9000, scoped, tag = 'internal scratch']
  %s0 = inlined_call_operand.smem [shape: u32[34], index: -1, kind: input, shape index: {}]
  %s1 = sld [smem:[%s0]]
  %s2 = scalar_lea.smem %s0, 1
  %s3 = sld [smem:[%s2]]
  %s4 = scalar_lea.smem %s0, 2
  %s5 = sld [smem:[%s4]]
  %s6 = scalar_lea.smem %s0, 3
  %s7 = sld [smem:[%s6]]
  %s8 = scalar_lea.smem %s0, 4
  %s9 = sld [smem:[%s8]]
  %s10 = scalar_lea.smem %s0, 5
  %s11 = sld [smem:[%s10]]
  %s12 = scalar_lea.smem %s0, 6
  %s13 = sld [smem:[%s12]]
  %s14 = scalar_lea.smem %s0, 7
  %s15 = sld [smem:[%s14]]
  %s16 = scalar_lea.smem %s0, 8
  %s17 = sld [smem:[%s16]]
  %s18 = scalar_lea.smem %s0, 9
  %s19 = sld [smem:[%s18]]
  %s20 = scalar_lea.smem %s0, 10
  %s21 = sld [smem:[%s20]]
  %s22 = scalar_lea.smem %s0, 11
  %s23 = sld [smem:[%s22]]
  %s24 = scalar_lea.smem %s0, 12
  %s25 = sld [smem:[%s24]]
  %s26 = scalar_lea.smem %s0, 13
  %s27 = sld [smem:[%s26]]
  %s28 = scalar_lea.smem %s0, 14
  %s29 = sld [smem:[%s28]]
  %s30 = scalar_lea.smem %s0, 15
  %s31 = sld [smem:[%s30]]
  %s32 = scalar_lea.smem %s0, 16
  %s33 = sld [smem:[%s32]]
  %s34 = scalar_lea.smem %s0, 17
  %s35 = sld [smem:[%s34]]
  %s36 = scalar_lea.smem %s0, 18
  %s37 = sld [smem:[%s36]]
  %s38 = scalar_lea.smem %s0, 19
  %s39 = sld [smem:[%s38]]
  %s40 = scalar_lea.smem %s0, 20
  %s41 = sld [smem:[%s40]]
  %s42 = scalar_lea.smem %s0, 21
  %s43 = sld [smem:[%s42]]
  %s44 = scalar_lea.smem %s0, 22
  %s45 = sld [smem:[%s44]]
  %s46 = scalar_lea.smem %s0, 23
  %s47 = sld [smem:[%s46]]
  %s48 = scalar_lea.smem %s0, 24
  %s49 = sld [smem:[%s48]]
  %s50 = scalar_lea.smem %s0, 25
  %s51 = sld [smem:[%s50]]
  %s52 = scalar_lea.smem %s0, 26
  %s53 = sld [smem:[%s52]]
  %s54 = scalar_lea.smem %s0, 27
  %s55 = sld [smem:[%s54]]
  %s56 = scalar_lea.smem %s0, 28
  %s57 = sld [smem:[%s56]]
  %s58 = scalar_lea.smem %s0, 29
  %s59 = sld [smem:[%s58]]
  %s60 = scalar_lea.smem %s0, 30
  %s61 = sld [smem:[%s60]]
  %s62 = scalar_lea.smem %s0, 31
  %s63 = sld [smem:[%s62]]
  %s64 = scalar_lea.smem %s0, 32
  %s65 = sld [smem:[%s64]]
  %s66 = scalar_lea.smem %s0, 33
  %s67 = sld [smem:[%s66]]
  %s68 = sld [smem:[#allocation0]]
  $region202: #{_lambda_.1} parent=0
    _
  %s70 = ssub.s32 1, %s68
  %s71 = scalar_select 0, %s70, %s68
  $region1: #{_lambda_.1} parent=0
    #allocation2 [shape = 'u8[16384]{0}', space=vmem, size = 0x4000, scoped, tag = 'input window, operand 4, single buffered']
    #allocation3 [shape = 's32[1]{0}', space=sflag, size = 0x4, scoped, tag = 'scoped memory for _lambda_.1']
    #allocation4 [shape = 'u8[1024]{0}', space=vmem, size = 0x400, scoped, tag = 'input window, operand 5, single buffered']
    #allocation5 [shape = 's32[1]{0}', space=sflag, size = 0x4, scoped, tag = 'scoped memory for _lambda_.1']
    #allocation6 [shape = 'u8[512]{0}', space=vmem, size = 0x400, scoped, tag = 'input window, operand 6, single buffered']
    #allocation7 [shape = 'u8[32768]{0}', space=vmem, size = 0x8000, scoped, tag = 'input window, operand 7, single buffered']
    #allocation8 [shape = 's32[1]{0}', space=sflag, size = 0x4, scoped, tag = 'scoped memory for _lambda_.1']
    #allocation9 [shape = 'u8[1024]{0}', space=vmem, size = 0x400, scoped, tag = 'input window, operand 8, single buffered']
    #allocation10 [shape = 'u8[32768]{0}', space=vmem, size = 0x8000, scoped, tag = 'input window, operand 9, single buffered']
    #allocation11 [shape = 's32[1]{0}', space=sflag, size = 0x4, scoped, tag = 'scoped memory for _lambda_.1']
    #allocation12 [shape = 'u8[1024]{0}', space=vmem, size = 0x400, scoped, tag = 'input window, operand 10, single buffered']
    #allocation13 [shape = 'u8[32768]{0}', space=vmem, size = 0x8000, scoped, tag = 'input window, operand 15, single buffered']
    #allocation14 [shape = 's32[1]{0}', space=sflag, size = 0x4, scoped, tag = 'scoped memory for _lambda_.1']
    #allocation15 [shape = 'u8[16384]{0}', space=vmem, size = 0x4000, scoped, tag = 'input window, operand 21, single buffered']
    #allocation16 [shape = 'u8[512]{0}', space=vmem, size = 0x400, scoped, tag = 'input window, operand 22, single buffered']
    #allocation17 [shape = 's32[1]{0}', space=sflag, size = 0x4, scoped, tag = 'scoped memory for _lambda_.1']
    #allocation18 [shape = 'u8[16384]{0}', space=vmem, size = 0x4000, scoped, tag = 'input window, operand 25, single buffered']
    #allocation19 [shape = 'u8[512]{0}', space=vmem, size = 0x400, scoped, tag = 'input window, operand 26, single buffered']
    #allocation20 [shape = 's32[1]{0}', space=sflag, size = 0x4, scoped, tag = 'scoped memory for _lambda_.1']
    #allocation21 [shape = 'u8[16384]{0}', space=vmem, size = 0x4000, scoped, tag = 'input window, operand 29, single buffered']
    #allocation22 [shape = 'u8[512]{0}', space=vmem, size = 0x400, scoped, tag = 'input window, operand 30, single buffered']
    #allocation23 [shape = 's32[1]{0}', space=sflag, size = 0x4, scoped, tag = 'scoped memory for _lambda_.1']
    #allocation24 [shape = 'u8[512]{0}', space=vmem, size = 0x400, scoped, tag = 'input window, operand 32, single buffered']
    %72 = vsyncpa [#allocation3], 0
    %73 = vsyncpa [#allocation5], 0
    %74 = vsyncpa [#allocation8], 0
    %75 = vsyncpa [#allocation11], 0
    %76 = vsyncpa [#allocation14], 0
    %77 = vsyncpa [#allocation17], 0
    %78 = vsyncpa [#allocation20], 0
    %79 = vsyncpa [#allocation23], 0
    // Predicated region
    $region2: #{_lambda_.1} parent=1 // pred_check
      _
    $region3: #{_lambda_.1} parent=1 // pred_check_branch
      %81 = sbr.rel (0) target = $region5
    $region4: #{_lambda_.1} parent=1 // pred_region
      _
    $region5: #{_lambda_.1} parent=1 // pred_fallthru
      _
    // Predicated region
    $region6: #{_lambda_.1} parent=1 // pred_check
      _
    $region7: #{_lambda_.1} parent=1 // pred_check_branch
      %83 = sbr.rel (0) target = $region9
    $region8: #{_lambda_.1} parent=1 // pred_region
      _
    $region9: #{_lambda_.1} parent=1 // pred_fallthru
      _
    // Predicated region
    $region10: #{_lambda_.1} parent=1 // pred_check
      _
    $region11: #{_lambda_.1} parent=1 // pred_check_branch
      %85 = sbr.rel (0) target = $region13
    $region12: #{_lambda_.1} parent=1 // pred_region
      _
    $region13: #{_lambda_.1} parent=1 // pred_fallthru
      _
    // Predicated region
    $region14: #{_lambda_.1} parent=1 // pred_check
      _
    $region15: #{_lambda_.1} parent=1 // pred_check_branch
      %87 = sbr.rel (0) target = $region17
    $region16: #{_lambda_.1} parent=1 // pred_region
      _
    $region17: #{_lambda_.1} parent=1 // pred_fallthru
      _
    // Predicated region
    $region18: #{_lambda_.1} parent=1 // pred_check
      _
    $region19: #{_lambda_.1} parent=1 // pred_check_branch
      %89 = sbr.rel (0) target = $region21
    $region20: #{_lambda_.1} parent=1 // pred_region
      %91 = vsyncadd [#allocation3], 0
      %s92 = sshll.u32 %s9, 4
      %s93 = int_to_ptr.hbm [resolvable:$true] %s92
      %s94 = sshll.u32 [#allocation2], 4
      %s95 = int_to_ptr.vmem [resolvable:$true] %s94
      %100 = dma.hbm_to_vmem [thread:$0]  %s93, 512, %s95, [#allocation3], 128, 128, 8
    $region21: #{_lambda_.1} parent=1 // pred_fallthru
      _
    // Predicated region
    $region22: #{_lambda_.1} parent=1 // pred_check
      _
    $region23: #{_lambda_.1} parent=1 // pred_check_branch
      %102 = sbr.rel (0) target = $region25
    $region24: #{_lambda_.1} parent=1 // pred_region
      %104 = vsyncadd [#allocation5], 0
      %s106 = sshll.u32 %s11, 4
      %s107 = int_to_ptr.hbm [resolvable:$true] %s106
      %s108 = sshll.u32 [#allocation4], 4
      %s109 = int_to_ptr.vmem [resolvable:$true] %s108
      %111 = dma.hbm_to_vmem [thread:$0]  %s107, 32, %s109, [#allocation5]
    $region25: #{_lambda_.1} parent=1 // pred_fallthru
      _
    // Predicated region
    $region26: #{_lambda_.1} parent=1 // pred_check
      _
    $region27: #{_lambda_.1} parent=1 // pred_check_branch
      %113 = sbr.rel (0) target = $region29
    $region28: #{_lambda_.1} parent=1 // pred_region
      %115 = vsyncadd [#allocation5], 0
      %s117 = sshll.u32 %s13, 4
      %s118 = int_to_ptr.hbm [resolvable:$true] %s117
      %s119 = sshll.u32 [#allocation6], 4
      %s120 = int_to_ptr.vmem [resolvable:$true] %s119
      %122 = dma.hbm_to_vmem [thread:$0]  %s118, 16, %s120, [#allocation5]
    $region29: #{_lambda_.1} parent=1 // pred_fallthru
      _
    // Predicated region
    $region30: #{_lambda_.1} parent=1 // pred_check
      _
    $region31: #{_lambda_.1} parent=1 // pred_check_branch
      %124 = sbr.rel (0) target = $region33
    $region32: #{_lambda_.1} parent=1 // pred_region
      %126 = vsyncadd [#allocation8], 0
      %s127 = sshll.u32 %s15, 4
      %s128 = int_to_ptr.hbm [resolvable:$true] %s127
      %s129 = sshll.u32 [#allocation7], 4
      %s130 = int_to_ptr.vmem [resolvable:$true] %s129
      %135 = dma.hbm_to_vmem [thread:$0]  %s128, 1024, %s130, [#allocation8], 128, 128, 8
    $region33: #{_lambda_.1} parent=1 // pred_fallthru
      _
    // Predicated region
    $region34: #{_lambda_.1} parent=1 // pred_check
      _
    $region35: #{_lambda_.1} parent=1 // pred_check_branch
      %137 = sbr.rel (0) target = $region37
    $region36: #{_lambda_.1} parent=1 // pred_region
      %139 = vsyncadd [#allocation8], 0
      %s140 = sshll.u32 %s17, 4
      %s141 = int_to_ptr.hbm [resolvable:$true] %s140
      %s142 = sshll.u32 [#allocation9], 4
      %s143 = int_to_ptr.vmem [resolvable:$true] %s142
      %148 = dma.hbm_to_vmem [thread:$0]  %s141, 32, %s143, [#allocation8], 16, 16, 1
    $region37: #{_lambda_.1} parent=1 // pred_fallthru
      _
    // Predicated region
    $region38: #{_lambda_.1} parent=1 // pred_check
      _
    $region39: #{_lambda_.1} parent=1 // pred_check_branch
      %150 = sbr.rel (0) target = $region41
    $region40: #{_lambda_.1} parent=1 // pred_region
      %152 = vsyncadd [#allocation11], 0
      %s153 = sshll.u32 %s19, 4
      %s154 = int_to_ptr.hbm [resolvable:$true] %s153
      %s155 = sshll.u32 [#allocation10], 4
      %s156 = int_to_ptr.vmem [resolvable:$true] %s155
      %161 = dma.hbm_to_vmem [thread:$0]  %s154, 1024, %s156, [#allocation11], 128, 128, 8
    $region41: #{_lambda_.1} parent=1 // pred_fallthru
      _
    // Predicated region
    $region42: #{_lambda_.1} parent=1 // pred_check
      _
    $region43: #{_lambda_.1} parent=1 // pred_check_branch
      %163 = sbr.rel (0) target = $region45
    $region44: #{_lambda_.1} parent=1 // pred_region
      %165 = vsyncadd [#allocation11], 0
      %s166 = sshll.u32 %s21, 4
      %s167 = int_to_ptr.hbm [resolvable:$true] %s166
      %s168 = sshll.u32 [#allocation12], 4
      %s169 = int_to_ptr.vmem [resolvable:$true] %s168
      %174 = dma.hbm_to_vmem [thread:$0]  %s167, 32, %s169, [#allocation11], 16, 16, 1
    $region45: #{_lambda_.1} parent=1 // pred_fallthru
      _
    // Predicated region
    $region46: #{_lambda_.1} parent=1 // pred_check
      _
    $region47: #{_lambda_.1} parent=1 // pred_check_branch
      %176 = sbr.rel (0) target = $region49
    $region48: #{_lambda_.1} parent=1 // pred_region
      _
    $region49: #{_lambda_.1} parent=1 // pred_fallthru
      _
    // Predicated region
    $region50: #{_lambda_.1} parent=1 // pred_check
      _
    $region51: #{_lambda_.1} parent=1 // pred_check_branch
      %178 = sbr.rel (0) target = $region53
    $region52: #{_lambda_.1} parent=1 // pred_region
      _
    $region53: #{_lambda_.1} parent=1 // pred_fallthru
      _
    // Predicated region
    $region54: #{_lambda_.1} parent=1 // pred_check
      _
    $region55: #{_lambda_.1} parent=1 // pred_check_branch
      %180 = sbr.rel (0) target = $region57
    $region56: #{_lambda_.1} parent=1 // pred_region
      _
    $region57: #{_lambda_.1} parent=1 // pred_fallthru
      _
    // Predicated region
    $region58: #{_lambda_.1} parent=1 // pred_check
      _
    $region59: #{_lambda_.1} parent=1 // pred_check_branch
      %182 = sbr.rel (0) target = $region61
    $region60: #{_lambda_.1} parent=1 // pred_region
      _
    $region61: #{_lambda_.1} parent=1 // pred_fallthru
      _
    // Predicated region
    $region62: #{_lambda_.1} parent=1 // pred_check
      _
    $region63: #{_lambda_.1} parent=1 // pred_check_branch
      %184 = sbr.rel (0) target = $region65
    $region64: #{_lambda_.1} parent=1 // pred_region
      %186 = vsyncadd [#allocation14], 0
      %s187 = sshll.u32 %s31, 4
      %s188 = int_to_ptr.hbm [resolvable:$true] %s187
      %s189 = sshll.u32 [#allocation13], 4
      %s190 = int_to_ptr.vmem [resolvable:$true] %s189
      %195 = dma.hbm_to_vmem [thread:$0]  %s188, 1024, %s190, [#allocation14], 128, 128, 8
    $region65: #{_lambda_.1} parent=1 // pred_fallthru
      _
    // Predicated region
    $region66: #{_lambda_.1} parent=1 // pred_check
      _
    $region67: #{_lambda_.1} parent=1 // pred_check_branch
      %197 = sbr.rel (0) target = $region69
    $region68: #{_lambda_.1} parent=1 // pred_region
      _
    $region69: #{_lambda_.1} parent=1 // pred_fallthru
      _
    // Predicated region
    $region70: #{_lambda_.1} parent=1 // pred_check
      _
    $region71: #{_lambda_.1} parent=1 // pred_check_branch
      %199 = sbr.rel (0) target = $region73
    $region72: #{_lambda_.1} parent=1 // pred_region
      _
    $region73: #{_lambda_.1} parent=1 // pred_fallthru
      _
    // Predicated region
    $region74: #{_lambda_.1} parent=1 // pred_check
      _
    $region75: #{_lambda_.1} parent=1 // pred_check_branch
      %201 = sbr.rel (0) target = $region77
    $region76: #{_lambda_.1} parent=1 // pred_region
      _
    $region77: #{_lambda_.1} parent=1 // pred_fallthru
      _
    // Predicated region
    $region78: #{_lambda_.1} parent=1 // pred_check
      _
    $region79: #{_lambda_.1} parent=1 // pred_check_branch
      %203 = sbr.rel (0) target = $region81
    $region80: #{_lambda_.1} parent=1 // pred_region
      _
    $region81: #{_lambda_.1} parent=1 // pred_fallthru
      _
    // Predicated region
    $region82: #{_lambda_.1} parent=1 // pred_check
      _
    $region83: #{_lambda_.1} parent=1 // pred_check_branch
      %205 = sbr.rel (0) target = $region85
    $region84: #{_lambda_.1} parent=1 // pred_region
      _
    $region85: #{_lambda_.1} parent=1 // pred_fallthru
      _
    // Predicated region
    $region86: #{_lambda_.1} parent=1 // pred_check
      _
    $region87: #{_lambda_.1} parent=1 // pred_check_branch
      %207 = sbr.rel (0) target = $region89
    $region88: #{_lambda_.1} parent=1 // pred_region
      %209 = vsyncadd [#allocation14], 0
      %s210 = sshll.u32 %s43, 4
      %s211 = int_to_ptr.hbm [resolvable:$true] %s210
      %s212 = sshll.u32 [#allocation15], 4
      %s213 = int_to_ptr.vmem [resolvable:$true] %s212
      %218 = dma.hbm_to_vmem [thread:$0]  %s211, 512, %s213, [#allocation14], 128, 128, 8
    $region89: #{_lambda_.1} parent=1 // pred_fallthru
      _
    // Predicated region
    $region90: #{_lambda_.1} parent=1 // pred_check
      _
    $region91: #{_lambda_.1} parent=1 // pred_check_branch
      %220 = sbr.rel (0) target = $region93
    $region92: #{_lambda_.1} parent=1 // pred_region
      %222 = vsyncadd [#allocation17], 0
      %s224 = sshll.u32 %s45, 4
      %s225 = int_to_ptr.hbm [resolvable:$true] %s224
      %s226 = sshll.u32 [#allocation16], 4
      %s227 = int_to_ptr.vmem [resolvable:$true] %s226
      %229 = dma.hbm_to_vmem [thread:$0]  %s225, 16, %s227, [#allocation17]
    $region93: #{_lambda_.1} parent=1 // pred_fallthru
      _
    // Predicated region
    $region94: #{_lambda_.1} parent=1 // pred_check
      _
    $region95: #{_lambda_.1} parent=1 // pred_check_branch
      %231 = sbr.rel (0) target = $region97
    $region96: #{_lambda_.1} parent=1 // pred_region
      _
    $region97: #{_lambda_.1} parent=1 // pred_fallthru
      _
    // Predicated region
    $region98: #{_lambda_.1} parent=1 // pred_check
      _
    $region99: #{_lambda_.1} parent=1 // pred_check_branch
      %233 = sbr.rel (0) target = $region101
    $region100: #{_lambda_.1} parent=1 // pred_region
      _
    $region101: #{_lambda_.1} parent=1 // pred_fallthru
      _
    // Predicated region
    $region102: #{_lambda_.1} parent=1 // pred_check
      _
    $region103: #{_lambda_.1} parent=1 // pred_check_branch
      %235 = sbr.rel (0) target = $region105
    $region104: #{_lambda_.1} parent=1 // pred_region
      %237 = vsyncadd [#allocation17], 0
      %s238 = sshll.u32 %s51, 4
      %s239 = int_to_ptr.hbm [resolvable:$true] %s238
      %s240 = sshll.u32 [#allocation18], 4
      %s241 = int_to_ptr.vmem [resolvable:$true] %s240
      %246 = dma.hbm_to_vmem [thread:$0]  %s239, 512, %s241, [#allocation17], 128, 128, 8
    $region105: #{_lambda_.1} parent=1 // pred_fallthru
      _
    // Predicated region
    $region106: #{_lambda_.1} parent=1 // pred_check
      _
    $region107: #{_lambda_.1} parent=1 // pred_check_branch
      %248 = sbr.rel (0) target = $region109
    $region108: #{_lambda_.1} parent=1 // pred_region
      %250 = vsyncadd [#allocation20], 0
      %s252 = sshll.u32 %s53, 4
      %s253 = int_to_ptr.hbm [resolvable:$true] %s252
      %s254 = sshll.u32 [#allocation19], 4
      %s255 = int_to_ptr.vmem [resolvable:$true] %s254
      %257 = dma.hbm_to_vmem [thread:$0]  %s253, 16, %s255, [#allocation20]
    $region109: #{_lambda_.1} parent=1 // pred_fallthru
      _
    // Predicated region
    $region110: #{_lambda_.1} parent=1 // pred_check
      _
    $region111: #{_lambda_.1} parent=1 // pred_check_branch
      %259 = sbr.rel (0) target = $region113
    $region112: #{_lambda_.1} parent=1 // pred_region
      _
    $region113: #{_lambda_.1} parent=1 // pred_fallthru
      _
    // Predicated region
    $region114: #{_lambda_.1} parent=1 // pred_check
      _
    $region115: #{_lambda_.1} parent=1 // pred_check_branch
      %261 = sbr.rel (0) target = $region117
    $region116: #{_lambda_.1} parent=1 // pred_region
      _
    $region117: #{_lambda_.1} parent=1 // pred_fallthru
      _
    // Predicated region
    $region118: #{_lambda_.1} parent=1 // pred_check
      _
    $region119: #{_lambda_.1} parent=1 // pred_check_branch
      %263 = sbr.rel (0) target = $region121
    $region120: #{_lambda_.1} parent=1 // pred_region
      %265 = vsyncadd [#allocation20], 0
      %s266 = sshll.u32 %s59, 4
      %s267 = int_to_ptr.hbm [resolvable:$true] %s266
      %s268 = sshll.u32 [#allocation21], 4
      %s269 = int_to_ptr.vmem [resolvable:$true] %s268
      %274 = dma.hbm_to_vmem [thread:$0]  %s267, 512, %s269, [#allocation20], 128, 128, 8
    $region121: #{_lambda_.1} parent=1 // pred_fallthru
      _
    // Predicated region
    $region122: #{_lambda_.1} parent=1 // pred_check
      _
    $region123: #{_lambda_.1} parent=1 // pred_check_branch
      %276 = sbr.rel (0) target = $region125
    $region124: #{_lambda_.1} parent=1 // pred_region
      %278 = vsyncadd [#allocation23], 0
      %s280 = sshll.u32 %s61, 4
      %s281 = int_to_ptr.hbm [resolvable:$true] %s280
      %s282 = sshll.u32 [#allocation22], 4
      %s283 = int_to_ptr.vmem [resolvable:$true] %s282
      %285 = dma.hbm_to_vmem [thread:$0]  %s281, 16, %s283, [#allocation23]
    $region125: #{_lambda_.1} parent=1 // pred_fallthru
      _
    // Predicated region
    $region126: #{_lambda_.1} parent=1 // pred_check
      _
    $region127: #{_lambda_.1} parent=1 // pred_check_branch
      %287 = sbr.rel (0) target = $region129
    $region128: #{_lambda_.1} parent=1 // pred_region
      _
    $region129: #{_lambda_.1} parent=1 // pred_fallthru
      _
    // Predicated region
    $region130: #{_lambda_.1} parent=1 // pred_check
      _
    $region131: #{_lambda_.1} parent=1 // pred_check_branch
      %289 = sbr.rel (0) target = $region133
    $region132: #{_lambda_.1} parent=1 // pred_region
      %291 = vsyncadd [#allocation23], 0
      %s293 = sshll.u32 %s65, 4
      %s294 = int_to_ptr.hbm [resolvable:$true] %s293
      %s295 = sshll.u32 [#allocation24], 4
      %s296 = int_to_ptr.vmem [resolvable:$true] %s295
      %298 = dma.hbm_to_vmem [thread:$0]  %s294, 16, %s296, [#allocation23]
    $region133: #{_lambda_.1} parent=1 // pred_fallthru
      _
    // Predicated region
    $region134: #{_lambda_.1} parent=1 // pred_check
      _
    $region135: #{_lambda_.1} parent=1 // pred_check_branch
      %300 = sbr.rel (0) target = $region137
    $region136: #{_lambda_.1} parent=1 // pred_region
      %302 = dma.done [#allocation3], 512
    $region137: #{_lambda_.1} parent=1 // pred_fallthru
      _
    // Predicated region
    $region138: #{_lambda_.1} parent=1 // pred_check
      _
    $region139: #{_lambda_.1} parent=1 // pred_check_branch
      %304 = sbr.rel (0) target = $region141
    $region140: #{_lambda_.1} parent=1 // pred_region
      %306 = dma.done [#allocation5], 32
    $region141: #{_lambda_.1} parent=1 // pred_fallthru
      _
    // Predicated region
    $region142: #{_lambda_.1} parent=1 // pred_check
      _
    $region143: #{_lambda_.1} parent=1 // pred_check_branch
      %308 = sbr.rel (0) target = $region145
    $region144: #{_lambda_.1} parent=1 // pred_region
      %310 = dma.done [#allocation5], 16
    $region145: #{_lambda_.1} parent=1 // pred_fallthru
      _
    // Predicated region
    $region146: #{_lambda_.1} parent=1 // pred_check
      _
    $region147: #{_lambda_.1} parent=1 // pred_check_branch
      %312 = sbr.rel (0) target = $region149
    $region148: #{_lambda_.1} parent=1 // pred_region
      %314 = dma.done [#allocation8], 1024
    $region149: #{_lambda_.1} parent=1 // pred_fallthru
      _
    // Predicated region
    $region150: #{_lambda_.1} parent=1 // pred_check
      _
    $region151: #{_lambda_.1} parent=1 // pred_check_branch
      %316 = sbr.rel (0) target = $region153
    $region152: #{_lambda_.1} parent=1 // pred_region
      %318 = dma.done [#allocation8], 32
    $region153: #{_lambda_.1} parent=1 // pred_fallthru
      _
    // Predicated region
    $region154: #{_lambda_.1} parent=1 // pred_check
      _
    $region155: #{_lambda_.1} parent=1 // pred_check_branch
      %320 = sbr.rel (0) target = $region157
    $region156: #{_lambda_.1} parent=1 // pred_region
      %322 = dma.done [#allocation11], 1024
    $region157: #{_lambda_.1} parent=1 // pred_fallthru
      _
    // Predicated region
    $region158: #{_lambda_.1} parent=1 // pred_check
      _
    $region159: #{_lambda_.1} parent=1 // pred_check_branch
      %324 = sbr.rel (0) target = $region161
    $region160: #{_lambda_.1} parent=1 // pred_region
      %326 = dma.done [#allocation11], 32
    $region161: #{_lambda_.1} parent=1 // pred_fallthru
      _
    // Predicated region
    $region162: #{_lambda_.1} parent=1 // pred_check
      _
    $region163: #{_lambda_.1} parent=1 // pred_check_branch
      %328 = sbr.rel (0) target = $region165
    $region164: #{_lambda_.1} parent=1 // pred_region
      %330 = dma.done [#allocation14], 1024
    $region165: #{_lambda_.1} parent=1 // pred_fallthru
      _
    // Predicated region
    $region166: #{_lambda_.1} parent=1 // pred_check
      _
    $region167: #{_lambda_.1} parent=1 // pred_check_branch
      %332 = sbr.rel (0) target = $region169
    $region168: #{_lambda_.1} parent=1 // pred_region
      %334 = dma.done [#allocation14], 512
    $region169: #{_lambda_.1} parent=1 // pred_fallthru
      _
    // Predicated region
    $region170: #{_lambda_.1} parent=1 // pred_check
      _
    $region171: #{_lambda_.1} parent=1 // pred_check_branch
      %336 = sbr.rel (0) target = $region173
    $region172: #{_lambda_.1} parent=1 // pred_region
      %338 = dma.done [#allocation17], 16
    $region173: #{_lambda_.1} parent=1 // pred_fallthru
      _
    // Predicated region
    $region174: #{_lambda_.1} parent=1 // pred_check
      _
    $region175: #{_lambda_.1} parent=1 // pred_check_branch
      %340 = sbr.rel (0) target = $region177
    $region176: #{_lambda_.1} parent=1 // pred_region
      %342 = dma.done [#allocation17], 512
    $region177: #{_lambda_.1} parent=1 // pred_fallthru
      _
    // Predicated region
    $region178: #{_lambda_.1} parent=1 // pred_check
      _
    $region179: #{_lambda_.1} parent=1 // pred_check_branch
      %344 = sbr.rel (0) target = $region181
    $region180: #{_lambda_.1} parent=1 // pred_region
      %346 = dma.done [#allocation20], 16
    $region181: #{_lambda_.1} parent=1 // pred_fallthru
      _
    // Predicated region
    $region182: #{_lambda_.1} parent=1 // pred_check
      _
    $region183: #{_lambda_.1} parent=1 // pred_check_branch
      %348 = sbr.rel (0) target = $region185
    $region184: #{_lambda_.1} parent=1 // pred_region
      %350 = dma.done [#allocation20], 512
    $region185: #{_lambda_.1} parent=1 // pred_fallthru
      _
    // Predicated region
    $region186: #{_lambda_.1} parent=1 // pred_check
      _
    $region187: #{_lambda_.1} parent=1 // pred_check_branch
      %352 = sbr.rel (0) target = $region189
    $region188: #{_lambda_.1} parent=1 // pred_region
      %354 = dma.done [#allocation23], 16
    $region189: #{_lambda_.1} parent=1 // pred_fallthru
      _
    // Predicated region
    $region190: #{_lambda_.1} parent=1 // pred_check
      _
    $region191: #{_lambda_.1} parent=1 // pred_check_branch
      %356 = sbr.rel (0) target = $region193
    $region192: #{_lambda_.1} parent=1 // pred_region
      %358 = dma.done [#allocation23], 16
    $region193: #{_lambda_.1} parent=1 // pred_fallthru
      _
    %v359 = vld [vmem:[%s1] sm:$0xff]
    %v360 = vld [vmem:[%s1 + $0x8] sm:$0xff]
    %v361 = vld [vmem:[%s1 + $0x10] sm:$0xff]
    %v362 = vld [vmem:[%s1 + $0x18] sm:$0xff]
    %v363 = vld [vmem:[%s1 + $0x20] sm:$0xff]
    %v364 = vld [vmem:[%s1 + $0x28] sm:$0xff]
    %v365 = vld [vmem:[%s1 + $0x30] sm:$0xff]
    %v366 = vld [vmem:[%s1 + $0x38] sm:$0xff]
    %v367 = vld [vmem:[%s1 + $0x40] sm:$0xff]
    %v368 = vld [vmem:[%s1 + $0x48] sm:$0xff]
    %v369 = vld [vmem:[%s1 + $0x50] sm:$0xff]
    %v370 = vld [vmem:[%s1 + $0x58] sm:$0xff]
    %v371 = vld [vmem:[%s5] sm:$0xff]
    %v372 = vld [vmem:[%s5 + $0x8] sm:$0xff]
    %v373 = vld [vmem:[%s5 + $0x10] sm:$0xff]
    %v374 = vld [vmem:[%s5 + $0x18] sm:$0xff]
    %v375 = vld [vmem:[%s5 + $0x20] sm:$0xff]
    %v376 = vld [vmem:[%s5 + $0x28] sm:$0xff]
    %v377 = vld [vmem:[%s5 + $0x30] sm:$0xff]
    %v378 = vld [vmem:[%s5 + $0x38] sm:$0xff]
    %v379 = vld [vmem:[%s5 + $0x40] sm:$0xff]
    %v380 = vld [vmem:[%s5 + $0x48] sm:$0xff]
    %v381 = vld [vmem:[%s5 + $0x50] sm:$0xff]
    %v382 = vld [vmem:[%s5 + $0x58] sm:$0xff]
    %v383 = vld [vmem:[%s5 + $0x60] sm:$0xff]
    %v384 = vld [vmem:[%s5 + $0x68] sm:$0xff]
    %v385 = vld [vmem:[%s5 + $0x70] sm:$0xff]
    %v386 = vld [vmem:[%s5 + $0x78] sm:$0xff]
    %v387 = vld [vmem:[%s5 + $0x80] sm:$0xff]
    %v388 = vld [vmem:[%s5 + $0x88] sm:$0xff]
    %v389 = vld [vmem:[%s5 + $0x90] sm:$0xff]
    %v390 = vld [vmem:[%s5 + $0x98] sm:$0xff]
    %v391 = vld [vmem:[%s5 + $0xa0] sm:$0xff]
    %v392 = vld [vmem:[%s5 + $0xa8] sm:$0xff]
    %v393 = vld [vmem:[%s5 + $0xb0] sm:$0xff]
    %v394 = vld [vmem:[%s5 + $0xb8] sm:$0xff]
    %v395 = vld [vmem:[%s5 + $0xc0] sm:$0xff]
    %v396 = vld [vmem:[%s5 + $0xc8] sm:$0xff]
    %v397 = vld [vmem:[%s5 + $0xd0] sm:$0xff]
    %v398 = vld [vmem:[%s5 + $0xd8] sm:$0xff]
    %v399 = vld [vmem:[%s5 + $0xe0] sm:$0xff]
    %v400 = vld [vmem:[%s5 + $0xe8] sm:$0xff]
    %v401 = vld [vmem:[%s5 + $0xf0] sm:$0xff]
    %v402 = vld [vmem:[%s5 + $0xf8] sm:$0xff]
    %v403 = vld [vmem:[%s5 + $0x100] sm:$0xff]
    %v404 = vld [vmem:[%s5 + $0x108] sm:$0xff]
    %v405 = vld [vmem:[%s5 + $0x110] sm:$0xff]
    %v406 = vld [vmem:[%s5 + $0x118] sm:$0xff]
    %v407 = vld [vmem:[%s5 + $0x120] sm:$0xff]
    %v408 = vld [vmem:[%s5 + $0x128] sm:$0xff]
    %v409 = vld [vmem:[%s5 + $0x130] sm:$0xff]
    %v410 = vld [vmem:[%s5 + $0x138] sm:$0xff]
    %v411 = vld [vmem:[%s5 + $0x140] sm:$0xff]
    %v412 = vld [vmem:[%s5 + $0x148] sm:$0xff]
    %v413 = vld [vmem:[%s5 + $0x150] sm:$0xff]
    %v414 = vld [vmem:[%s5 + $0x158] sm:$0xff]
    %v415 = vld [vmem:[%s5 + $0x160] sm:$0xff]
    %v416 = vld [vmem:[%s5 + $0x168] sm:$0xff]
    %v417 = vld [vmem:[%s5 + $0x170] sm:$0xff]
    %v418 = vld [vmem:[%s5 + $0x178] sm:$0xff]
    %v419 = vld [vmem:[%s5 + $0x180] sm:$0xff]
    %v420 = vld [vmem:[%s5 + $0x188] sm:$0xff]
    %v421 = vld [vmem:[%s5 + $0x190] sm:$0xff]
    %v422 = vld [vmem:[%s5 + $0x198] sm:$0xff]
    %v423 = vld [vmem:[%s5 + $0x1a0] sm:$0xff]
    %v424 = vld [vmem:[%s5 + $0x1a8] sm:$0xff]
    %v425 = vld [vmem:[%s5 + $0x1b0] sm:$0xff]
    %v426 = vld [vmem:[%s5 + $0x1b8] sm:$0xff]
    %v427 = vld [vmem:[%s5 + $0x1c0] sm:$0xff]
    %v428 = vld [vmem:[%s5 + $0x1c8] sm:$0xff]
    %v429 = vld [vmem:[%s5 + $0x1d0] sm:$0xff]
    %v430 = vld [vmem:[%s5 + $0x1d8] sm:$0xff]
    %v431 = vld [vmem:[%s5 + $0x1e0] sm:$0xff]
    %v432 = vld [vmem:[%s5 + $0x1e8] sm:$0xff]
    %v433 = vld [vmem:[%s5 + $0x1f0] sm:$0xff]
    %v434 = vld [vmem:[%s5 + $0x1f8] sm:$0xff]
    %v435 = vld [vmem:[%s5 + $0x200] sm:$0xff]
    %v436 = vld [vmem:[%s5 + $0x208] sm:$0xff]
    %v437 = vld [vmem:[%s5 + $0x210] sm:$0xff]
    %v438 = vld [vmem:[%s5 + $0x218] sm:$0xff]
    %v439 = vld [vmem:[%s5 + $0x220] sm:$0xff]
    %v440 = vld [vmem:[%s5 + $0x228] sm:$0xff]
    %v441 = vld [vmem:[%s5 + $0x230] sm:$0xff]
    %v442 = vld [vmem:[%s5 + $0x238] sm:$0xff]
    %v443 = vld [vmem:[%s5 + $0x240] sm:$0xff]
    %v444 = vld [vmem:[%s5 + $0x248] sm:$0xff]
    %v445 = vld [vmem:[%s5 + $0x250] sm:$0xff]
    %v446 = vld [vmem:[%s5 + $0x258] sm:$0xff]
    %v447 = vld [vmem:[%s5 + $0x260] sm:$0xff]
    %v448 = vld [vmem:[%s5 + $0x268] sm:$0xff]
    %v449 = vld [vmem:[%s5 + $0x270] sm:$0xff]
    %v450 = vld [vmem:[%s5 + $0x278] sm:$0xff]
    %v451 = vld [vmem:[%s5 + $0x280] sm:$0xff]
    %v452 = vld [vmem:[%s5 + $0x288] sm:$0xff]
    %v453 = vld [vmem:[%s5 + $0x290] sm:$0xff]
    %v454 = vld [vmem:[%s5 + $0x298] sm:$0xff]
    %v455 = vld [vmem:[%s5 + $0x2a0] sm:$0xff]
    %v456 = vld [vmem:[%s5 + $0x2a8] sm:$0xff]
    %v457 = vld [vmem:[%s5 + $0x2b0] sm:$0xff]
    %v458 = vld [vmem:[%s5 + $0x2b8] sm:$0xff]
    %v459 = vld [vmem:[%s5 + $0x2c0] sm:$0xff]
    %v460 = vld [vmem:[%s5 + $0x2c8] sm:$0xff]
    %v461 = vld [vmem:[%s5 + $0x2d0] sm:$0xff]
    %v462 = vld [vmem:[%s5 + $0x2d8] sm:$0xff]
    %v463 = vld [vmem:[%s5 + $0x2e0] sm:$0xff]
    %v464 = vld [vmem:[%s5 + $0x2e8] sm:$0xff]
    %v465 = vld [vmem:[%s5 + $0x2f0] sm:$0xff]
    %v466 = vld [vmem:[%s5 + $0x2f8] sm:$0xff]
    %v467 = vld [vmem:[%s7] sm:$0x1]
    %v469 = vperm.slane %v467, 0
    %471 = vmatpush.msra.mxu0 %v386
    %472 = vmatpush.msra.mxu0 %v385
    %473 = vmatpush.msra.mxu0 %v384
    %474 = vmatpush.msra.mxu0 %v383
    %475 = vmatpush.msra.mxu0 %v382
    %476 = vmatpush.msra.mxu0 %v381
    %477 = vmatpush.msra.mxu0 %v380
    %478 = vmatpush.msra.mxu0 %v379
    %479 = vmatpush.msra.mxu0 %v378
    %480 = vmatpush.msra.mxu0 %v377
    %481 = vmatpush.msra.mxu0 %v376
    %482 = vmatpush.msra.mxu0 %v375
    %483 = vmatpush.msra.mxu0 %v374
    %484 = vmatpush.msra.mxu0 %v373
    %485 = vmatpush.msra.mxu0 %v372
    %486 = vmatpush.msra.mxu0 %v371
    %487 = vmatmul.f32.gmra.mxu0 %v359
    %v488 = vpop.f32.mrf.mxu0
    %v489 = vadd.f32 %v469, %v488
    %490 = vmatmul.f32.gmra.mxu0 %v365
    %v491 = vpop.f32.mrf.mxu0
    %v492 = vadd.f32 %v469, %v491
    %493 = vdwg.mxu0
    %494 = vmatpush.msra.mxu0 %v402
    %495 = vmatpush.msra.mxu0 %v401
    %496 = vmatpush.msra.mxu0 %v400
    %497 = vmatpush.msra.mxu0 %v399
    %498 = vmatpush.msra.mxu0 %v398
    %499 = vmatpush.msra.mxu0 %v397
    %500 = vmatpush.msra.mxu0 %v396
    %501 = vmatpush.msra.mxu0 %v395
    %502 = vmatpush.msra.mxu0 %v394
    %503 = vmatpush.msra.mxu0 %v393
    %504 = vmatpush.msra.mxu0 %v392
    %505 = vmatpush.msra.mxu0 %v391
    %506 = vmatpush.msra.mxu0 %v390
    %507 = vmatpush.msra.mxu0 %v389
    %508 = vmatpush.msra.mxu0 %v388
    %509 = vmatpush.msra.mxu0 %v387
    %510 = vmatmul.f32.gmra.mxu0 %v360
    %v511 = vpop.f32.mrf.mxu0
    %v512 = vadd.f32 %v489, %v511
    %513 = vmatmul.f32.gmra.mxu0 %v366
    %v514 = vpop.f32.mrf.mxu0
    %v515 = vadd.f32 %v492, %v514
    %516 = vdwg.mxu0
    %517 = vmatpush.msra.mxu0 %v418
    %518 = vmatpush.msra.mxu0 %v417
    %519 = vmatpush.msra.mxu0 %v416
    %520 = vmatpush.msra.mxu0 %v415
    %521 = vmatpush.msra.mxu0 %v414
    %522 = vmatpush.msra.mxu0 %v413
    %523 = vmatpush.msra.mxu0 %v412
    %524 = vmatpush.msra.mxu0 %v411
    %525 = vmatpush.msra.mxu0 %v410
    %526 = vmatpush.msra.mxu0 %v409
    %527 = vmatpush.msra.mxu0 %v408
    %528 = vmatpush.msra.mxu0 %v407
    %529 = vmatpush.msra.mxu0 %v406
    %530 = vmatpush.msra.mxu0 %v405
    %531 = vmatpush.msra.mxu0 %v404
    %532 = vmatpush.msra.mxu0 %v403
    %533 = vmatmul.f32.gmra.mxu0 %v361
    %v534 = vpop.f32.mrf.mxu0
    %v535 = vadd.f32 %v512, %v534
    %536 = vmatmul.f32.gmra.mxu0 %v367
    %v537 = vpop.f32.mrf.mxu0
    %v538 = vadd.f32 %v515, %v537
    %539 = vdwg.mxu0
    %540 = vmatpush.msra.mxu0 %v434
    %541 = vmatpush.msra.mxu0 %v433
    %542 = vmatpush.msra.mxu0 %v432
    %543 = vmatpush.msra.mxu0 %v431
    %544 = vmatpush.msra.mxu0 %v430
    %545 = vmatpush.msra.mxu0 %v429
    %546 = vmatpush.msra.mxu0 %v428
    %547 = vmatpush.msra.mxu0 %v427
    %548 = vmatpush.msra.mxu0 %v426
    %549 = vmatpush.msra.mxu0 %v425
    %550 = vmatpush.msra.mxu0 %v424
    %551 = vmatpush.msra.mxu0 %v423
    %552 = vmatpush.msra.mxu0 %v422
    %553 = vmatpush.msra.mxu0 %v421
    %554 = vmatpush.msra.mxu0 %v420
    %555 = vmatpush.msra.mxu0 %v419
    %556 = vmatmul.f32.gmra.mxu0 %v362
    %v557 = vpop.f32.mrf.mxu0
    %v558 = vadd.f32 %v535, %v557
    %559 = vmatmul.f32.gmra.mxu0 %v368
    %v560 = vpop.f32.mrf.mxu0
    %v561 = vadd.f32 %v538, %v560
    %562 = vdwg.mxu0
    %563 = vmatpush.msra.mxu0 %v450
    %564 = vmatpush.msra.mxu0 %v449
    %565 = vmatpush.msra.mxu0 %v448
    %566 = vmatpush.msra.mxu0 %v447
    %567 = vmatpush.msra.mxu0 %v446
    %568 = vmatpush.msra.mxu0 %v445
    %569 = vmatpush.msra.mxu0 %v444
    %570 = vmatpush.msra.mxu0 %v443
    %571 = vmatpush.msra.mxu0 %v442
    %572 = vmatpush.msra.mxu0 %v441
    %573 = vmatpush.msra.mxu0 %v440
    %574 = vmatpush.msra.mxu0 %v439
    %575 = vmatpush.msra.mxu0 %v438
    %576 = vmatpush.msra.mxu0 %v437
    %577 = vmatpush.msra.mxu0 %v436
    %578 = vmatpush.msra.mxu0 %v435
    %579 = vmatmul.f32.gmra.mxu0 %v363
    %v580 = vpop.f32.mrf.mxu0
    %v581 = vadd.f32 %v558, %v580
    %582 = vmatmul.f32.gmra.mxu0 %v369
    %v583 = vpop.f32.mrf.mxu0
    %v584 = vadd.f32 %v561, %v583
    %585 = vdwg.mxu0
    %586 = vmatpush.msra.mxu0 %v466
    %587 = vmatpush.msra.mxu0 %v465
    %588 = vmatpush.msra.mxu0 %v464
    %589 = vmatpush.msra.mxu0 %v463
    %590 = vmatpush.msra.mxu0 %v462
    %591 = vmatpush.msra.mxu0 %v461
    %592 = vmatpush.msra.mxu0 %v460
    %593 = vmatpush.msra.mxu0 %v459
    %594 = vmatpush.msra.mxu0 %v458
    %595 = vmatpush.msra.mxu0 %v457
    %596 = vmatpush.msra.mxu0 %v456
    %597 = vmatpush.msra.mxu0 %v455
    %598 = vmatpush.msra.mxu0 %v454
    %599 = vmatpush.msra.mxu0 %v453
    %600 = vmatpush.msra.mxu0 %v452
    %601 = vmatpush.msra.mxu0 %v451
    %602 = vmatmul.f32.gmra.mxu0 %v364
    %v603 = vpop.f32.mrf.mxu0
    %v604 = vadd.f32 %v581, %v603
    %605 = vmatmul.f32.gmra.mxu0 %v370
    %v606 = vpop.f32.mrf.mxu0
    %v607 = vadd.f32 %v584, %v606
    %608 = vdwg.mxu0
    %v609 = vmax.f32 %v604, 0.0
    %v610 = vmax.f32 %v607, 0.0
    %v611 = vld [vmem:[#allocation2] sm:$0xff]
    %v612 = vld [vmem:[#allocation2 + $0x8] sm:$0xff]
    %v613 = vld [vmem:[#allocation2 + $0x10] sm:$0xff]
    %v614 = vld [vmem:[#allocation2 + $0x18] sm:$0x3f]
    %v615 = vld [vmem:[%s3] sm:$0xff]
    %v616 = vld [vmem:[%s3 + $0x8] sm:$0xff]
    %v617 = vld [vmem:[#allocation4] sm:$0x3]
    %vm618 = vcmask 15360
    %v620 = vsel %vm618, %v615, 0
    %v623 = vsel %vm618, %v616, 0
    %vm625 = vcmask 1041408
    %v627 = vsel %vm625, %v617, 0
    %629 = vmatpush.msra.mxu0 0.0
    %630 = vmatpush.msra.mxu0 0.0
    %631 = vmatpush.msra.mxu0 0.0
    %632 = vmatpush.msra.mxu0 0.0
    %633 = vmatpush.msra.mxu0 0.0
    %634 = vmatpush.msra.mxu0 0.0
    %635 = vmatpush.msra.mxu0 0.0
    %636 = vmatpush.msra.mxu0 0.0
    %637 = vmatpush.msra.mxu0 0.0
    %638 = vmatpush.msra.mxu0 0.0
    %639 = vmatpush.msra.mxu0 0.0
    %640 = vmatpush.msra.mxu0 0.0
    %641 = vmatpush.msra.mxu0 0.0
    %642 = vmatpush.msra.mxu0 0.0
    %643 = vmatpush.msra.mxu0 0.0
    %644 = vmatpush.msra.mxu0 %v627
    %645 = vmatmul.f32.gmra.mxu0 %v620
    %v646 = vpop.f32.mrf.mxu0
    %v647 = vadd.f32 0.0, %v646
    %648 = vmatmul.f32.gmra.mxu0 %v623
    %v649 = vpop.f32.mrf.mxu0
    %v650 = vadd.f32 0.0, %v649
    %651 = vdwg.mxu0
    %vm652 = vcmask 244736
    %v654 = vsel %vm652, %v609, 0
    %v657 = vsel %vm652, %v610, 0
    %vm659 = vcmask 1045504
    %v661 = vsel %vm659, %v614, 0
    %663 = vmatpush.msra.mxu0 0.0
    %664 = vmatpush.msra.mxu0 0.0
    %665 = vmatpush.msra.mxu0 0.0
    %666 = vmatpush.msra.mxu0 0.0
    %667 = vmatpush.msra.mxu0 0.0
    %668 = vmatpush.msra.mxu0 0.0
    %669 = vmatpush.msra.mxu0 0.0
    %670 = vmatpush.msra.mxu0 0.0
    %671 = vmatpush.msra.mxu0 0.0
    %672 = vmatpush.msra.mxu0 0.0
    %673 = vmatpush.msra.mxu0 0.0
    %674 = vmatpush.msra.mxu0 0.0
    %675 = vmatpush.msra.mxu0 %v661
    %676 = vmatpush.msra.mxu0 %v613
    %677 = vmatpush.msra.mxu0 %v612
    %678 = vmatpush.msra.mxu0 %v611
    %679 = vmatmul.f32.gmra.mxu0 %v654
    %v680 = vpop.f32.mrf.mxu0
    %v681 = vadd.f32 %v647, %v680
    %682 = vmatmul.f32.gmra.mxu0 %v657
    %v683 = vpop.f32.mrf.mxu0
    %v684 = vadd.f32 %v650, %v683
    %685 = vdwg.mxu0
    %v686 = vld [vmem:[#allocation6] sm:$0x1]
    %v688 = vperm.slane %v686, 0
    %v690 = vadd.f32 %v681, %v688
    %v691 = vadd.f32 %v684, %v688
    %v692 = vld [vmem:[#allocation7] sm:$0xff]
    %v693 = vld [vmem:[#allocation7 + $0x8] sm:$0xff]
    %v694 = vld [vmem:[#allocation7 + $0x10] sm:$0xff]
    %v695 = vld [vmem:[#allocation7 + $0x18] sm:$0xff]
    %v696 = vld [vmem:[#allocation9] sm:$0x1]
    %v698 = vperm.slane %v696, 0
    %vm700 = vcmask 261120
    %v702 = vsel %vm700, %v690, 0
    %v705 = vsel %vm700, %v691, 0
    %707 = vmatpush.msra.mxu0 0.0
    %708 = vmatpush.msra.mxu0 0.0
    %709 = vmatpush.msra.mxu0 0.0
    %710 = vmatpush.msra.mxu0 0.0
    %711 = vmatpush.msra.mxu0 0.0
    %712 = vmatpush.msra.mxu0 0.0
    %713 = vmatpush.msra.mxu0 0.0
    %714 = vmatpush.msra.mxu0 0.0
    %715 = vmatpush.msra.mxu0 0.0
    %716 = vmatpush.msra.mxu0 0.0
    %717 = vmatpush.msra.mxu0 0.0
    %718 = vmatpush.msra.mxu0 0.0
    %719 = vmatpush.msra.mxu0 %v695
    %720 = vmatpush.msra.mxu0 %v694
    %721 = vmatpush.msra.mxu0 %v693
    %722 = vmatpush.msra.mxu0 %v692
    %723 = vmatmul.f32.gmra.mxu0 %v702
    %v724 = vpop.f32.mrf.mxu0
    %v725 = vadd.f32 %v698, %v724
    %726 = vmatmul.f32.gmra.mxu0 %v705
    %v727 = vpop.f32.mrf.mxu0
    %v728 = vadd.f32 %v698, %v727
    %729 = vdwg.mxu0
    %731 = vrot.lane.b32.xlu0 %v725, 96
    %v732 = vpop.permute.xlu0 %731
    %vm733 = vcmask 64512
    %v734 = vsel %vm733, %v725, 0
    %v736 = vsel %vm733, %v732, 0
    %738 = vmatpush.xpose.msra.mxu0 0.0
    %739 = vmatpush.xpose.msra.mxu0 0.0
    %740 = vmatpush.xpose.msra.mxu0 0.0
    %741 = vmatpush.xpose.msra.mxu0 0.0
    %742 = vmatpush.xpose.msra.mxu0 0.0
    %743 = vmatpush.xpose.msra.mxu0 0.0
    %744 = vmatpush.xpose.msra.mxu0 0.0
    %745 = vmatpush.xpose.msra.mxu0 0.0
    %746 = vmatpush.xpose.msra.mxu0 0.0
    %747 = vmatpush.xpose.msra.mxu0 0.0
    %748 = vmatpush.xpose.msra.mxu0 0.0
    %749 = vmatpush.xpose.msra.mxu0 0.0
    %750 = vmatpush.xpose.msra.mxu0 0.0
    %751 = vmatpush.xpose.msra.mxu0 0.0
    %752 = vmatpush.xpose.msra.mxu0 0.0
    %753 = vmatpush.xpose.msra.mxu0 %v736
    %754 = vmatmul.f32.gmra.mxu0 %v734
    %v755 = vpop.f32.mrf.mxu0
    %v756 = vadd.f32 0.0, %v755
    %757 = vdwg.mxu0
    %759 = vrot.lane.b32.xlu0 %v728, 96
    %v760 = vpop.permute.xlu0 %759
    %v761 = vsel %vm733, %v728, 0
    %v763 = vsel %vm733, %v760, 0
    %765 = vmatpush.xpose.msra.mxu0 0.0
    %766 = vmatpush.xpose.msra.mxu0 0.0
    %767 = vmatpush.xpose.msra.mxu0 0.0
    %768 = vmatpush.xpose.msra.mxu0 0.0
    %769 = vmatpush.xpose.msra.mxu0 0.0
    %770 = vmatpush.xpose.msra.mxu0 0.0
    %771 = vmatpush.xpose.msra.mxu0 0.0
    %772 = vmatpush.xpose.msra.mxu0 0.0
    %773 = vmatpush.xpose.msra.mxu0 0.0
    %774 = vmatpush.xpose.msra.mxu0 0.0
    %775 = vmatpush.xpose.msra.mxu0 0.0
    %776 = vmatpush.xpose.msra.mxu0 0.0
    %777 = vmatpush.xpose.msra.mxu0 0.0
    %778 = vmatpush.xpose.msra.mxu0 0.0
    %779 = vmatpush.xpose.msra.mxu0 0.0
    %780 = vmatpush.xpose.msra.mxu0 %v763
    %781 = vmatmul.f32.gmra.mxu0 %v761
    %v782 = vpop.f32.mrf.mxu0
    %v783 = vadd.f32 0.0, %v782
    %784 = vdwg.mxu0
    %v785 = vsel %vm733, %v756, -inf
    %786 = vmax.xlane.f32.xlu0 %v785
    %v787 = vpop.xlane.xlu0 %786
    %v788 = vsel %vm733, %v783, -inf
    %789 = vmax.xlane.f32.xlu0 %v788
    %v790 = vpop.xlane.xlu0 %789
    %v791 = vsub.f32 %v756, %v787
    %v792 = vsub.f32 %v783, %v790
    %v793 = vmul.f32 %v791, 1.442695
    %v794 = vpow.pop %v793
    %v795 = vmul.f32 %v792, 1.442695
    %v796 = vpow.pop %v795
    %v797 = vsel %vm733, %v794, 0.0
    %798 = vadd.xlane.f32.xlu0 %v797
    %v799 = vpop.xlane.xlu0 %798
    %v800 = vsel %vm733, %v796, 0.0
    %801 = vadd.xlane.f32.xlu0 %v800
    %v802 = vpop.xlane.xlu0 %801
    %v803 = vrcp.pop %v799
    %v804 = vrcp.pop %v802
    %v805 = vmul.f32 %v794, %v803
    %v806 = vmul.f32 %v796, %v804
    %807 = vrot.lane.b32.xlu0 %v725, 64
    %v808 = vpop.permute.xlu0 %807
    %v811 = vsel %vm733, %v805, 0
    %813 = vmatpush.msra.mxu0 0.0
    %814 = vmatpush.msra.mxu0 0.0
    %815 = vmatpush.msra.mxu0 0.0
    %816 = vmatpush.msra.mxu0 0.0
    %817 = vmatpush.msra.mxu0 0.0
    %818 = vmatpush.msra.mxu0 0.0
    %819 = vmatpush.msra.mxu0 0.0
    %820 = vmatpush.msra.mxu0 0.0
    %821 = vmatpush.msra.mxu0 0.0
    %822 = vmatpush.msra.mxu0 0.0
    %823 = vmatpush.msra.mxu0 0.0
    %824 = vmatpush.msra.mxu0 0.0
    %825 = vmatpush.msra.mxu0 0.0
    %826 = vmatpush.msra.mxu0 0.0
    %827 = vmatpush.msra.mxu0 0.0
    %828 = vmatpush.msra.mxu0 %v808
    %829 = vmatmul.f32.gmra.mxu0 %v811
    %v830 = vpop.f32.mrf.mxu0
    %v831 = vadd.f32 0.0, %v830
    %832 = vdwg.mxu0
    %833 = vrot.lane.b32.xlu0 %v728, 64
    %v834 = vpop.permute.xlu0 %833
    %v837 = vsel %vm733, %v806, 0
    %839 = vmatpush.msra.mxu0 0.0
    %840 = vmatpush.msra.mxu0 0.0
    %841 = vmatpush.msra.mxu0 0.0
    %842 = vmatpush.msra.mxu0 0.0
    %843 = vmatpush.msra.mxu0 0.0
    %844 = vmatpush.msra.mxu0 0.0
    %845 = vmatpush.msra.mxu0 0.0
    %846 = vmatpush.msra.mxu0 0.0
    %847 = vmatpush.msra.mxu0 0.0
    %848 = vmatpush.msra.mxu0 0.0
    %849 = vmatpush.msra.mxu0 0.0
    %850 = vmatpush.msra.mxu0 0.0
    %851 = vmatpush.msra.mxu0 0.0
    %852 = vmatpush.msra.mxu0 0.0
    %853 = vmatpush.msra.mxu0 0.0
    %854 = vmatpush.msra.mxu0 %v834
    %855 = vmatmul.f32.gmra.mxu0 %v837
    %v856 = vpop.f32.mrf.mxu0
    %v857 = vadd.f32 0.0, %v856
    %858 = vdwg.mxu0
    %859 = vrot.lane.b32.xlu0 %v725, 120
    %v860 = vpop.permute.xlu0 %859
    %861 = vrot.lane.b32.xlu0 %v725, 88
    %v862 = vpop.permute.xlu0 %861
    %v863 = vsel %vm733, %v860, 0
    %v865 = vsel %vm733, %v862, 0
    %867 = vmatpush.xpose.msra.mxu0 0.0
    %868 = vmatpush.xpose.msra.mxu0 0.0
    %869 = vmatpush.xpose.msra.mxu0 0.0
    %870 = vmatpush.xpose.msra.mxu0 0.0
    %871 = vmatpush.xpose.msra.mxu0 0.0
    %872 = vmatpush.xpose.msra.mxu0 0.0
    %873 = vmatpush.xpose.msra.mxu0 0.0
    %874 = vmatpush.xpose.msra.mxu0 0.0
    %875 = vmatpush.xpose.msra.mxu0 0.0
    %876 = vmatpush.xpose.msra.mxu0 0.0
    %877 = vmatpush.xpose.msra.mxu0 0.0
    %878 = vmatpush.xpose.msra.mxu0 0.0
    %879 = vmatpush.xpose.msra.mxu0 0.0
    %880 = vmatpush.xpose.msra.mxu0 0.0
    %881 = vmatpush.xpose.msra.mxu0 0.0
    %882 = vmatpush.xpose.msra.mxu0 %v865
    %883 = vmatmul.f32.gmra.mxu0 %v863
    %v884 = vpop.f32.mrf.mxu0
    %v885 = vadd.f32 0.0, %v884
    %886 = vdwg.mxu0
    %887 = vrot.lane.b32.xlu0 %v728, 120
    %v888 = vpop.permute.xlu0 %887
    %889 = vrot.lane.b32.xlu0 %v728, 88
    %v890 = vpop.permute.xlu0 %889
    %v891 = vsel %vm733, %v888, 0
    %v893 = vsel %vm733, %v890, 0
    %895 = vmatpush.xpose.msra.mxu0 0.0
    %896 = vmatpush.xpose.msra.mxu0 0.0
    %897 = vmatpush.xpose.msra.mxu0 0.0
    %898 = vmatpush.xpose.msra.mxu0 0.0
    %899 = vmatpush.xpose.msra.mxu0 0.0
    %900 = vmatpush.xpose.msra.mxu0 0.0
    %901 = vmatpush.xpose.msra.mxu0 0.0
    %902 = vmatpush.xpose.msra.mxu0 0.0
    %903 = vmatpush.xpose.msra.mxu0 0.0
    %904 = vmatpush.xpose.msra.mxu0 0.0
    %905 = vmatpush.xpose.msra.mxu0 0.0
    %906 = vmatpush.xpose.msra.mxu0 0.0
    %907 = vmatpush.xpose.msra.mxu0 0.0
    %908 = vmatpush.xpose.msra.mxu0 0.0
    %909 = vmatpush.xpose.msra.mxu0 0.0
    %910 = vmatpush.xpose.msra.mxu0 %v893
    %911 = vmatmul.f32.gmra.mxu0 %v891
    %v912 = vpop.f32.mrf.mxu0
    %v913 = vadd.f32 0.0, %v912
    %914 = vdwg.mxu0
    %v915 = vsel %vm733, %v885, -inf
    %916 = vmax.xlane.f32.xlu0 %v915
    %v917 = vpop.xlane.xlu0 %916
    %v918 = vsel %vm733, %v913, -inf
    %919 = vmax.xlane.f32.xlu0 %v918
    %v920 = vpop.xlane.xlu0 %919
    %v921 = vsub.f32 %v885, %v917
    %v922 = vsub.f32 %v913, %v920
    %v923 = vmul.f32 %v921, 1.442695
    %v924 = vpow.pop %v923
    %v925 = vmul.f32 %v922, 1.442695
    %v926 = vpow.pop %v925
    %v927 = vsel %vm733, %v924, 0.0
    %928 = vadd.xlane.f32.xlu0 %v927
    %v929 = vpop.xlane.xlu0 %928
    %v930 = vsel %vm733, %v926, 0.0
    %931 = vadd.xlane.f32.xlu0 %v930
    %v932 = vpop.xlane.xlu0 %931
    %v933 = vrcp.pop %v929
    %v934 = vrcp.pop %v932
    %v935 = vmul.f32 %v924, %v933
    %v936 = vmul.f32 %v926, %v934
    %937 = vrot.lane.b32.xlu0 %v725, 56
    %v938 = vpop.permute.xlu0 %937
    %v941 = vsel %vm733, %v935, 0
    %943 = vmatpush.msra.mxu0 0.0
    %944 = vmatpush.msra.mxu0 0.0
    %945 = vmatpush.msra.mxu0 0.0
    %946 = vmatpush.msra.mxu0 0.0
    %947 = vmatpush.msra.mxu0 0.0
    %948 = vmatpush.msra.mxu0 0.0
    %949 = vmatpush.msra.mxu0 0.0
    %950 = vmatpush.msra.mxu0 0.0
    %951 = vmatpush.msra.mxu0 0.0
    %952 = vmatpush.msra.mxu0 0.0
    %953 = vmatpush.msra.mxu0 0.0
    %954 = vmatpush.msra.mxu0 0.0
    %955 = vmatpush.msra.mxu0 0.0
    %956 = vmatpush.msra.mxu0 0.0
    %957 = vmatpush.msra.mxu0 0.0
    %958 = vmatpush.msra.mxu0 %v938
    %959 = vmatmul.f32.gmra.mxu0 %v941
    %v960 = vpop.f32.mrf.mxu0
    %v961 = vadd.f32 0.0, %v960
    %962 = vdwg.mxu0
    %963 = vrot.lane.b32.xlu0 %v728, 56
    %v964 = vpop.permute.xlu0 %963
    %v967 = vsel %vm733, %v936, 0
    %969 = vmatpush.msra.mxu0 0.0
    %970 = vmatpush.msra.mxu0 0.0
    %971 = vmatpush.msra.mxu0 0.0
    %972 = vmatpush.msra.mxu0 0.0
    %973 = vmatpush.msra.mxu0 0.0
    %974 = vmatpush.msra.mxu0 0.0
    %975 = vmatpush.msra.mxu0 0.0
    %976 = vmatpush.msra.mxu0 0.0
    %977 = vmatpush.msra.mxu0 0.0
    %978 = vmatpush.msra.mxu0 0.0
    %979 = vmatpush.msra.mxu0 0.0
    %980 = vmatpush.msra.mxu0 0.0
    %981 = vmatpush.msra.mxu0 0.0
    %982 = vmatpush.msra.mxu0 0.0
    %983 = vmatpush.msra.mxu0 0.0
    %984 = vmatpush.msra.mxu0 %v964
    %985 = vmatmul.f32.gmra.mxu0 %v967
    %v986 = vpop.f32.mrf.mxu0
    %v987 = vadd.f32 0.0, %v986
    %988 = vdwg.mxu0
    %989 = vrot.lane.b32.xlu0 %v725, 112
    %v990 = vpop.permute.xlu0 %989
    %991 = vrot.lane.b32.xlu0 %v725, 80
    %v992 = vpop.permute.xlu0 %991
    %v993 = vsel %vm733, %v990, 0
    %v995 = vsel %vm733, %v992, 0
    %997 = vmatpush.xpose.msra.mxu0 0.0
    %998 = vmatpush.xpose.msra.mxu0 0.0
    %999 = vmatpush.xpose.msra.mxu0 0.0
    %1000 = vmatpush.xpose.msra.mxu0 0.0
    %1001 = vmatpush.xpose.msra.mxu0 0.0
    %1002 = vmatpush.xpose.msra.mxu0 0.0
    %1003 = vmatpush.xpose.msra.mxu0 0.0
    %1004 = vmatpush.xpose.msra.mxu0 0.0
    %1005 = vmatpush.xpose.msra.mxu0 0.0
    %1006 = vmatpush.xpose.msra.mxu0 0.0
    %1007 = vmatpush.xpose.msra.mxu0 0.0
    %1008 = vmatpush.xpose.msra.mxu0 0.0
    %1009 = vmatpush.xpose.msra.mxu0 0.0
    %1010 = vmatpush.xpose.msra.mxu0 0.0
    %1011 = vmatpush.xpose.msra.mxu0 0.0
    %1012 = vmatpush.xpose.msra.mxu0 %v995
    %1013 = vmatmul.f32.gmra.mxu0 %v993
    %v1014 = vpop.f32.mrf.mxu0
    %v1015 = vadd.f32 0.0, %v1014
    %1016 = vdwg.mxu0
    %1017 = vrot.lane.b32.xlu0 %v728, 112
    %v1018 = vpop.permute.xlu0 %1017
    %1019 = vrot.lane.b32.xlu0 %v728, 80
    %v1020 = vpop.permute.xlu0 %1019
    %v1021 = vsel %vm733, %v1018, 0
    %v1023 = vsel %vm733, %v1020, 0
    %1025 = vmatpush.xpose.msra.mxu0 0.0
    %1026 = vmatpush.xpose.msra.mxu0 0.0
    %1027 = vmatpush.xpose.msra.mxu0 0.0
    %1028 = vmatpush.xpose.msra.mxu0 0.0
    %1029 = vmatpush.xpose.msra.mxu0 0.0
    %1030 = vmatpush.xpose.msra.mxu0 0.0
    %1031 = vmatpush.xpose.msra.mxu0 0.0
    %1032 = vmatpush.xpose.msra.mxu0 0.0
    %1033 = vmatpush.xpose.msra.mxu0 0.0
    %1034 = vmatpush.xpose.msra.mxu0 0.0
    %1035 = vmatpush.xpose.msra.mxu0 0.0
    %1036 = vmatpush.xpose.msra.mxu0 0.0
    %1037 = vmatpush.xpose.msra.mxu0 0.0
    %1038 = vmatpush.xpose.msra.mxu0 0.0
    %1039 = vmatpush.xpose.msra.mxu0 0.0
    %1040 = vmatpush.xpose.msra.mxu0 %v1023
    %1041 = vmatmul.f32.gmra.mxu0 %v1021
    %v1042 = vpop.f32.mrf.mxu0
    %v1043 = vadd.f32 0.0, %v1042
    %1044 = vdwg.mxu0
    %v1045 = vsel %vm733, %v1015, -inf
    %1046 = vmax.xlane.f32.xlu0 %v1045
    %v1047 = vpop.xlane.xlu0 %1046
    %v1048 = vsel %vm733, %v1043, -inf
    %1049 = vmax.xlane.f32.xlu0 %v1048
    %v1050 = vpop.xlane.xlu0 %1049
    %v1051 = vsub.f32 %v1015, %v1047
    %v1052 = vsub.f32 %v1043, %v1050
    %v1053 = vmul.f32 %v1051, 1.442695
    %v1054 = vpow.pop %v1053
    %v1055 = vmul.f32 %v1052, 1.442695
    %v1056 = vpow.pop %v1055
    %v1057 = vsel %vm733, %v1054, 0.0
    %1058 = vadd.xlane.f32.xlu0 %v1057
    %v1059 = vpop.xlane.xlu0 %1058
    %v1060 = vsel %vm733, %v1056, 0.0
    %1061 = vadd.xlane.f32.xlu0 %v1060
    %v1062 = vpop.xlane.xlu0 %1061
    %v1063 = vrcp.pop %v1059
    %v1064 = vrcp.pop %v1062
    %v1065 = vmul.f32 %v1054, %v1063
    %v1066 = vmul.f32 %v1056, %v1064
    %1067 = vrot.lane.b32.xlu0 %v725, 48
    %v1068 = vpop.permute.xlu0 %1067
    %v1071 = vsel %vm733, %v1065, 0
    %1073 = vmatpush.msra.mxu0 0.0
    %1074 = vmatpush.msra.mxu0 0.0
    %1075 = vmatpush.msra.mxu0 0.0
    %1076 = vmatpush.msra.mxu0 0.0
    %1077 = vmatpush.msra.mxu0 0.0
    %1078 = vmatpush.msra.mxu0 0.0
    %1079 = vmatpush.msra.mxu0 0.0
    %1080 = vmatpush.msra.mxu0 0.0
    %1081 = vmatpush.msra.mxu0 0.0
    %1082 = vmatpush.msra.mxu0 0.0
    %1083 = vmatpush.msra.mxu0 0.0
    %1084 = vmatpush.msra.mxu0 0.0
    %1085 = vmatpush.msra.mxu0 0.0
    %1086 = vmatpush.msra.mxu0 0.0
    %1087 = vmatpush.msra.mxu0 0.0
    %1088 = vmatpush.msra.mxu0 %v1068
    %1089 = vmatmul.f32.gmra.mxu0 %v1071
    %v1090 = vpop.f32.mrf.mxu0
    %v1091 = vadd.f32 0.0, %v1090
    %1092 = vdwg.mxu0
    %1093 = vrot.lane.b32.xlu0 %v728, 48
    %v1094 = vpop.permute.xlu0 %1093
    %v1097 = vsel %vm733, %v1066, 0
    %1099 = vmatpush.msra.mxu0 0.0
    %1100 = vmatpush.msra.mxu0 0.0
    %1101 = vmatpush.msra.mxu0 0.0
    %1102 = vmatpush.msra.mxu0 0.0
    %1103 = vmatpush.msra.mxu0 0.0
    %1104 = vmatpush.msra.mxu0 0.0
    %1105 = vmatpush.msra.mxu0 0.0
    %1106 = vmatpush.msra.mxu0 0.0
    %1107 = vmatpush.msra.mxu0 0.0
    %1108 = vmatpush.msra.mxu0 0.0
    %1109 = vmatpush.msra.mxu0 0.0
    %1110 = vmatpush.msra.mxu0 0.0
    %1111 = vmatpush.msra.mxu0 0.0
    %1112 = vmatpush.msra.mxu0 0.0
    %1113 = vmatpush.msra.mxu0 0.0
    %1114 = vmatpush.msra.mxu0 %v1094
    %1115 = vmatmul.f32.gmra.mxu0 %v1097
    %v1116 = vpop.f32.mrf.mxu0
    %v1117 = vadd.f32 0.0, %v1116
    %1118 = vdwg.mxu0
    %1119 = vrot.lane.b32.xlu0 %v725, 104
    %v1120 = vpop.permute.xlu0 %1119
    %1121 = vrot.lane.b32.xlu0 %v725, 72
    %v1122 = vpop.permute.xlu0 %1121
    %v1123 = vsel %vm733, %v1120, 0
    %v1125 = vsel %vm733, %v1122, 0
    %1127 = vmatpush.xpose.msra.mxu0 0.0
    %1128 = vmatpush.xpose.msra.mxu0 0.0
    %1129 = vmatpush.xpose.msra.mxu0 0.0
    %1130 = vmatpush.xpose.msra.mxu0 0.0
    %1131 = vmatpush.xpose.msra.mxu0 0.0
    %1132 = vmatpush.xpose.msra.mxu0 0.0
    %1133 = vmatpush.xpose.msra.mxu0 0.0
    %1134 = vmatpush.xpose.msra.mxu0 0.0
    %1135 = vmatpush.xpose.msra.mxu0 0.0
    %1136 = vmatpush.xpose.msra.mxu0 0.0
    %1137 = vmatpush.xpose.msra.mxu0 0.0
    %1138 = vmatpush.xpose.msra.mxu0 0.0
    %1139 = vmatpush.xpose.msra.mxu0 0.0
    %1140 = vmatpush.xpose.msra.mxu0 0.0
    %1141 = vmatpush.xpose.msra.mxu0 0.0
    %1142 = vmatpush.xpose.msra.mxu0 %v1125
    %1143 = vmatmul.f32.gmra.mxu0 %v1123
    %v1144 = vpop.f32.mrf.mxu0
    %v1145 = vadd.f32 0.0, %v1144
    %1146 = vdwg.mxu0
    %1147 = vrot.lane.b32.xlu0 %v728, 104
    %v1148 = vpop.permute.xlu0 %1147
    %1149 = vrot.lane.b32.xlu0 %v728, 72
    %v1150 = vpop.permute.xlu0 %1149
    %v1151 = vsel %vm733, %v1148, 0
    %v1153 = vsel %vm733, %v1150, 0
    %1155 = vmatpush.xpose.msra.mxu0 0.0
    %1156 = vmatpush.xpose.msra.mxu0 0.0
    %1157 = vmatpush.xpose.msra.mxu0 0.0
    %1158 = vmatpush.xpose.msra.mxu0 0.0
    %1159 = vmatpush.xpose.msra.mxu0 0.0
    %1160 = vmatpush.xpose.msra.mxu0 0.0
    %1161 = vmatpush.xpose.msra.mxu0 0.0
    %1162 = vmatpush.xpose.msra.mxu0 0.0
    %1163 = vmatpush.xpose.msra.mxu0 0.0
    %1164 = vmatpush.xpose.msra.mxu0 0.0
    %1165 = vmatpush.xpose.msra.mxu0 0.0
    %1166 = vmatpush.xpose.msra.mxu0 0.0
    %1167 = vmatpush.xpose.msra.mxu0 0.0
    %1168 = vmatpush.xpose.msra.mxu0 0.0
    %1169 = vmatpush.xpose.msra.mxu0 0.0
    %1170 = vmatpush.xpose.msra.mxu0 %v1153
    %1171 = vmatmul.f32.gmra.mxu0 %v1151
    %v1172 = vpop.f32.mrf.mxu0
    %v1173 = vadd.f32 0.0, %v1172
    %1174 = vdwg.mxu0
    %v1175 = vsel %vm733, %v1145, -inf
    %1176 = vmax.xlane.f32.xlu0 %v1175
    %v1177 = vpop.xlane.xlu0 %1176
    %v1178 = vsel %vm733, %v1173, -inf
    %1179 = vmax.xlane.f32.xlu0 %v1178
    %v1180 = vpop.xlane.xlu0 %1179
    %v1181 = vsub.f32 %v1145, %v1177
    %v1182 = vsub.f32 %v1173, %v1180
    %v1183 = vmul.f32 %v1181, 1.442695
    %v1184 = vpow.pop %v1183
    %v1185 = vmul.f32 %v1182, 1.442695
    %v1186 = vpow.pop %v1185
    %v1187 = vsel %vm733, %v1184, 0.0
    %1188 = vadd.xlane.f32.xlu0 %v1187
    %v1189 = vpop.xlane.xlu0 %1188
    %v1190 = vsel %vm733, %v1186, 0.0
    %1191 = vadd.xlane.f32.xlu0 %v1190
    %v1192 = vpop.xlane.xlu0 %1191
    %v1193 = vrcp.pop %v1189
    %v1194 = vrcp.pop %v1192
    %v1195 = vmul.f32 %v1184, %v1193
    %v1196 = vmul.f32 %v1186, %v1194
    %1197 = vrot.lane.b32.xlu0 %v725, 40
    %v1198 = vpop.permute.xlu0 %1197
    %v1201 = vsel %vm733, %v1195, 0
    %1203 = vmatpush.msra.mxu0 0.0
    %1204 = vmatpush.msra.mxu0 0.0
    %1205 = vmatpush.msra.mxu0 0.0
    %1206 = vmatpush.msra.mxu0 0.0
    %1207 = vmatpush.msra.mxu0 0.0
    %1208 = vmatpush.msra.mxu0 0.0
    %1209 = vmatpush.msra.mxu0 0.0
    %1210 = vmatpush.msra.mxu0 0.0
    %1211 = vmatpush.msra.mxu0 0.0
    %1212 = vmatpush.msra.mxu0 0.0
    %1213 = vmatpush.msra.mxu0 0.0
    %1214 = vmatpush.msra.mxu0 0.0
    %1215 = vmatpush.msra.mxu0 0.0
    %1216 = vmatpush.msra.mxu0 0.0
    %1217 = vmatpush.msra.mxu0 0.0
    %1218 = vmatpush.msra.mxu0 %v1198
    %1219 = vmatmul.f32.gmra.mxu0 %v1201
    %v1220 = vpop.f32.mrf.mxu0
    %v1221 = vadd.f32 0.0, %v1220
    %1222 = vdwg.mxu0
    %1223 = vrot.lane.b32.xlu0 %v728, 40
    %v1224 = vpop.permute.xlu0 %1223
    %v1227 = vsel %vm733, %v1196, 0
    %1229 = vmatpush.msra.mxu0 0.0
    %1230 = vmatpush.msra.mxu0 0.0
    %1231 = vmatpush.msra.mxu0 0.0
    %1232 = vmatpush.msra.mxu0 0.0
    %1233 = vmatpush.msra.mxu0 0.0
    %1234 = vmatpush.msra.mxu0 0.0
    %1235 = vmatpush.msra.mxu0 0.0
    %1236 = vmatpush.msra.mxu0 0.0
    %1237 = vmatpush.msra.mxu0 0.0
    %1238 = vmatpush.msra.mxu0 0.0
    %1239 = vmatpush.msra.mxu0 0.0
    %1240 = vmatpush.msra.mxu0 0.0
    %1241 = vmatpush.msra.mxu0 0.0
    %1242 = vmatpush.msra.mxu0 0.0
    %1243 = vmatpush.msra.mxu0 0.0
    %1244 = vmatpush.msra.mxu0 %v1224
    %1245 = vmatmul.f32.gmra.mxu0 %v1227
    %v1246 = vpop.f32.mrf.mxu0
    %v1247 = vadd.f32 0.0, %v1246
    %1248 = vdwg.mxu0
    %1251 = vrot.lane.b32.xlu0 %v961, 8
    %v1252 = vpop.permute.xlu0 %1251
    %1253 = vrot.lane.b32.xlu0 %v987, 8
    %v1254 = vpop.permute.xlu0 %1253
    %1259 = vrot.lane.b32.xlu0 %v1091, 16
    %v1260 = vpop.permute.xlu0 %1259
    %1261 = vrot.lane.b32.xlu0 %v1117, 16
    %v1262 = vpop.permute.xlu0 %1261
    %1267 = vrot.lane.b32.xlu0 %v1221, 24
    %v1268 = vpop.permute.xlu0 %1267
    %1269 = vrot.lane.b32.xlu0 %v1247, 24
    %v1270 = vpop.permute.xlu0 %1269
    %v1273 = vsel %vm733, %v831, %v1252
    %v1274 = vsel %vm733, %v857, %v1254
    %vm1275 = vcmask 130048
    %v1276 = vsel %vm1275, %v1273, %v1260
    %v1277 = vsel %vm1275, %v1274, %v1262
    %vm1278 = vcmask 195584
    %v1279 = vsel %vm1278, %v1276, %v1268
    %v1280 = vsel %vm1278, %v1277, %v1270
    %v1281 = vld [vmem:[#allocation10] sm:$0xff]
    %v1282 = vld [vmem:[#allocation10 + $0x8] sm:$0xff]
    %v1283 = vld [vmem:[#allocation10 + $0x10] sm:$0xff]
    %v1284 = vld [vmem:[#allocation10 + $0x18] sm:$0xff]
    %v1285 = vld [vmem:[#allocation12] sm:$0x1]
    %v1287 = vperm.slane %v1285, 0
    %v1290 = vsel %vm700, %v1279, 0
    %v1293 = vsel %vm700, %v1280, 0
    %1295 = vmatpush.msra.mxu0 0.0
    %1296 = vmatpush.msra.mxu0 0.0
    %1297 = vmatpush.msra.mxu0 0.0
    %1298 = vmatpush.msra.mxu0 0.0
    %1299 = vmatpush.msra.mxu0 0.0
    %1300 = vmatpush.msra.mxu0 0.0
    %1301 = vmatpush.msra.mxu0 0.0
    %1302 = vmatpush.msra.mxu0 0.0
    %1303 = vmatpush.msra.mxu0 0.0
    %1304 = vmatpush.msra.mxu0 0.0
    %1305 = vmatpush.msra.mxu0 0.0
    %1306 = vmatpush.msra.mxu0 0.0
    %1307 = vmatpush.msra.mxu0 %v1284
    %1308 = vmatpush.msra.mxu0 %v1283
    %1309 = vmatpush.msra.mxu0 %v1282
    %1310 = vmatpush.msra.mxu0 %v1281
    %1311 = vmatmul.f32.gmra.mxu0 %v1290
    %v1312 = vpop.f32.mrf.mxu0
    %v1313 = vadd.f32 %v1287, %v1312
    %1314 = vmatmul.f32.gmra.mxu0 %v1293
    %v1315 = vpop.f32.mrf.mxu0
    %v1316 = vadd.f32 %v1287, %v1315
    %1317 = vdwg.mxu0
    %v1318 = vadd.f32 %v690, %v1313
    %v1319 = vadd.f32 %v691, %v1316
    %v1320 = vld [vmem:[%s23] sm:$0x1]
    %v1321 = vld [vmem:[%s25] sm:$0x1]
    %v1322 = vsel %vm700, %v1318, 0.0
    %1323 = vadd.xlane.f32.xlu0 %v1322
    %v1324 = vpop.xlane.xlu0 %1323
    %v1325 = vsel %vm700, %v1319, 0.0
    %1326 = vadd.xlane.f32.xlu0 %v1325
    %v1327 = vpop.xlane.xlu0 %1326
    %v1328 = vrcp.pop 32.0
    %v1329 = vmul.f32 32.0, %v1328
    %v1330 = vsub.f32 1.0, %v1329
    %v1331 = vmul.f32 %v1328, %v1330
    %v1332 = vadd.f32 %v1328, %v1331
    %vm1333 = vweird.f32 %v1328
    %v1334 = vsel %vm1333, %v1328, %v1332
    %v1335 = vmul.f32 %v1324, %v1334
    %v1336 = vmul.f32 %v1327, %v1334
    %v1337 = vsub.f32 %v1318, %v1335
    %v1338 = vsub.f32 %v1319, %v1336
    %v1339 = vmul.f32 %v1337, %v1337
    %v1340 = vmul.f32 %v1338, %v1338
    %v1341 = vsel %vm700, %v1339, 0.0
    %1342 = vadd.xlane.f32.xlu0 %v1341
    %v1343 = vpop.xlane.xlu0 %1342
    %v1344 = vsel %vm700, %v1340, 0.0
    %1345 = vadd.xlane.f32.xlu0 %v1344
    %v1346 = vpop.xlane.xlu0 %1345
    %v1347 = vmul.f32 %v1343, %v1334
    %v1348 = vmul.f32 %v1346, %v1334
    %v1349 = vadd.f32 %v1347, 1e-05
    %v1350 = vadd.f32 %v1348, 1e-05
    %v1351 = vrsqrt.pop %v1349
    %v1352 = vmul.f32 %v1351, %v1349
    %v1353 = vmul.f32 %v1352, %v1351
    %v1354 = vmul.f32 0.5, %v1353
    %v1355 = vsub.f32 1.5, %v1354
    %v1356 = vmul.f32 %v1351, %v1355
    %vm1357 = vweird.f32 %v1349
    %vm1358 = vweird.f32 %v1351
    %vm1359 = vmor %vm1357, %vm1358
    %v1360 = vsel %vm1359, %v1351, %v1356
    %v1361 = vrsqrt.pop %v1350
    %v1362 = vmul.f32 %v1361, %v1350
    %v1363 = vmul.f32 %v1362, %v1361
    %v1364 = vmul.f32 0.5, %v1363
    %v1365 = vsub.f32 1.5, %v1364
    %v1366 = vmul.f32 %v1361, %v1365
    %vm1367 = vweird.f32 %v1350
    %vm1368 = vweird.f32 %v1361
    %vm1369 = vmor %vm1367, %vm1368
    %v1370 = vsel %vm1369, %v1361, %v1366
    %v1371 = vmul.f32 %v1337, %v1360
    %v1372 = vmul.f32 %v1338, %v1370
    %v1374 = vperm.slane %v1320, 0
    %v1376 = vmul.f32 %v1371, %v1374
    %v1377 = vmul.f32 %v1372, %v1374
    %v1379 = vperm.slane %v1321, 0
    %v1381 = vadd.f32 %v1376, %v1379
    %v1382 = vadd.f32 %v1377, %v1379
    %v1383 = vld [vmem:[#allocation13] sm:$0xff]
    %v1384 = vld [vmem:[#allocation13 + $0x8] sm:$0xff]
    %v1385 = vld [vmem:[#allocation13 + $0x10] sm:$0xff]
    %v1386 = vld [vmem:[#allocation13 + $0x18] sm:$0xff]
    %v1387 = vld [vmem:[%s33] sm:$0x1]
    %v1389 = vperm.slane %v1387, 0
    %v1392 = vsel %vm700, %v1381, 0
    %v1395 = vsel %vm700, %v1382, 0
    %1397 = vmatpush.msra.mxu0 0.0
    %1398 = vmatpush.msra.mxu0 0.0
    %1399 = vmatpush.msra.mxu0 0.0
    %1400 = vmatpush.msra.mxu0 0.0
    %1401 = vmatpush.msra.mxu0 0.0
    %1402 = vmatpush.msra.mxu0 0.0
    %1403 = vmatpush.msra.mxu0 0.0
    %1404 = vmatpush.msra.mxu0 0.0
    %1405 = vmatpush.msra.mxu0 0.0
    %1406 = vmatpush.msra.mxu0 0.0
    %1407 = vmatpush.msra.mxu0 0.0
    %1408 = vmatpush.msra.mxu0 0.0
    %1409 = vmatpush.msra.mxu0 %v1386
    %1410 = vmatpush.msra.mxu0 %v1385
    %1411 = vmatpush.msra.mxu0 %v1384
    %1412 = vmatpush.msra.mxu0 %v1383
    %1413 = vmatmul.f32.gmra.mxu0 %v1392
    %v1414 = vpop.f32.mrf.mxu0
    %v1415 = vadd.f32 %v1389, %v1414
    %1416 = vmatmul.f32.gmra.mxu0 %v1395
    %v1417 = vpop.f32.mrf.mxu0
    %v1418 = vadd.f32 %v1389, %v1417
    %1419 = vdwg.mxu0
    %v1420 = vmax.f32 %v1415, 0.0
    %v1421 = vmax.f32 %v1418, 0.0
    %v1422 = vld [vmem:[%s35] sm:$0xff]
    %v1423 = vld [vmem:[%s35 + $0x8] sm:$0xff]
    %v1424 = vld [vmem:[%s35 + $0x10] sm:$0xff]
    %v1425 = vld [vmem:[%s35 + $0x18] sm:$0xff]
    %v1426 = vld [vmem:[%s35 + $0x20] sm:$0xff]
    %v1427 = vld [vmem:[%s35 + $0x28] sm:$0xff]
    %v1428 = vld [vmem:[%s35 + $0x30] sm:$0xff]
    %v1429 = vld [vmem:[%s35 + $0x38] sm:$0xff]
    %v1430 = vld [vmem:[%s37] sm:$0x1]
    %v1432 = vperm.slane %v1430, 0
    %vm1434 = vcmask 523264
    %v1436 = vsel %vm1434, %v1420, 0
    %v1439 = vsel %vm1434, %v1421, 0
    %1441 = vmatpush.msra.mxu0 0.0
    %1442 = vmatpush.msra.mxu0 0.0
    %1443 = vmatpush.msra.mxu0 0.0
    %1444 = vmatpush.msra.mxu0 0.0
    %1445 = vmatpush.msra.mxu0 0.0
    %1446 = vmatpush.msra.mxu0 0.0
    %1447 = vmatpush.msra.mxu0 0.0
    %1448 = vmatpush.msra.mxu0 0.0
    %1449 = vmatpush.msra.mxu0 %v1429
    %1450 = vmatpush.msra.mxu0 %v1428
    %1451 = vmatpush.msra.mxu0 %v1427
    %1452 = vmatpush.msra.mxu0 %v1426
    %1453 = vmatpush.msra.mxu0 %v1425
    %1454 = vmatpush.msra.mxu0 %v1424
    %1455 = vmatpush.msra.mxu0 %v1423
    %1456 = vmatpush.msra.mxu0 %v1422
    %1457 = vmatmul.f32.gmra.mxu0 %v1436
    %v1458 = vpop.f32.mrf.mxu0
    %v1459 = vadd.f32 %v1432, %v1458
    %1460 = vmatmul.f32.gmra.mxu0 %v1439
    %v1461 = vpop.f32.mrf.mxu0
    %v1462 = vadd.f32 %v1432, %v1461
    %1463 = vdwg.mxu0
    %v1464 = vadd.f32 %v1381, %v1459
    %v1465 = vadd.f32 %v1382, %v1462
    %v1466 = vld [vmem:[%s27] sm:$0x1]
    %v1467 = vld [vmem:[%s29] sm:$0x1]
    %v1468 = vsel %vm700, %v1464, 0.0
    %1469 = vadd.xlane.f32.xlu0 %v1468
    %v1470 = vpop.xlane.xlu0 %1469
    %v1471 = vsel %vm700, %v1465, 0.0
    %1472 = vadd.xlane.f32.xlu0 %v1471
    %v1473 = vpop.xlane.xlu0 %1472
    %v1474 = vmul.f32 %v1470, %v1334
    %v1475 = vmul.f32 %v1473, %v1334
    %v1476 = vsub.f32 %v1464, %v1474
    %v1477 = vsub.f32 %v1465, %v1475
    %v1478 = vmul.f32 %v1476, %v1476
    %v1479 = vmul.f32 %v1477, %v1477
    %v1480 = vsel %vm700, %v1478, 0.0
    %1481 = vadd.xlane.f32.xlu0 %v1480
    %v1482 = vpop.xlane.xlu0 %1481
    %v1483 = vsel %vm700, %v1479, 0.0
    %1484 = vadd.xlane.f32.xlu0 %v1483
    %v1485 = vpop.xlane.xlu0 %1484
    %v1486 = vmul.f32 %v1482, %v1334
    %v1487 = vmul.f32 %v1485, %v1334
    %v1488 = vadd.f32 %v1486, 1e-05
    %v1489 = vadd.f32 %v1487, 1e-05
    %v1490 = vrsqrt.pop %v1488
    %v1491 = vmul.f32 %v1490, %v1488
    %v1492 = vmul.f32 %v1491, %v1490
    %v1493 = vmul.f32 0.5, %v1492
    %v1494 = vsub.f32 1.5, %v1493
    %v1495 = vmul.f32 %v1490, %v1494
    %vm1496 = vweird.f32 %v1488
    %vm1497 = vweird.f32 %v1490
    %vm1498 = vmor %vm1496, %vm1497
    %v1499 = vsel %vm1498, %v1490, %v1495
    %v1500 = vrsqrt.pop %v1489
    %v1501 = vmul.f32 %v1500, %v1489
    %v1502 = vmul.f32 %v1501, %v1500
    %v1503 = vmul.f32 0.5, %v1502
    %v1504 = vsub.f32 1.5, %v1503
    %v1505 = vmul.f32 %v1500, %v1504
    %vm1506 = vweird.f32 %v1489
    %vm1507 = vweird.f32 %v1500
    %vm1508 = vmor %vm1506, %vm1507
    %v1509 = vsel %vm1508, %v1500, %v1505
    %v1510 = vmul.f32 %v1476, %v1499
    %v1511 = vmul.f32 %v1477, %v1509
    %v1513 = vperm.slane %v1466, 0
    %v1515 = vmul.f32 %v1510, %v1513
    %v1516 = vmul.f32 %v1511, %v1513
    %v1518 = vperm.slane %v1467, 0
    %v1520 = vadd.f32 %v1515, %v1518
    %v1521 = vadd.f32 %v1516, %v1518
    %s1522 = scalar_lea.vmem [#allocation7], 32
    %v1523 = vld [vmem:[%s1522] sm:$0xff]
    %v1524 = vld [vmem:[%s1522 + $0x8] sm:$0xff]
    %v1525 = vld [vmem:[%s1522 + $0x10] sm:$0xff]
    %v1526 = vld [vmem:[%s1522 + $0x18] sm:$0xff]
    %s1527 = scalar_lea.vmem [#allocation9], 1
    %v1528 = vld [vmem:[%s1527] sm:$0x1]
    %v1530 = vperm.slane %v1528, 0
    %v1533 = vsel %vm700, %v1520, 0
    %v1536 = vsel %vm700, %v1521, 0
    %1538 = vmatpush.msra.mxu0 0.0
    %1539 = vmatpush.msra.mxu0 0.0
    %1540 = vmatpush.msra.mxu0 0.0
    %1541 = vmatpush.msra.mxu0 0.0
    %1542 = vmatpush.msra.mxu0 0.0
    %1543 = vmatpush.msra.mxu0 0.0
    %1544 = vmatpush.msra.mxu0 0.0
    %1545 = vmatpush.msra.mxu0 0.0
    %1546 = vmatpush.msra.mxu0 0.0
    %1547 = vmatpush.msra.mxu0 0.0
    %1548 = vmatpush.msra.mxu0 0.0
    %1549 = vmatpush.msra.mxu0 0.0
    %1550 = vmatpush.msra.mxu0 %v1526
    %1551 = vmatpush.msra.mxu0 %v1525
    %1552 = vmatpush.msra.mxu0 %v1524
    %1553 = vmatpush.msra.mxu0 %v1523
    %1554 = vmatmul.f32.gmra.mxu0 %v1533
    %v1555 = vpop.f32.mrf.mxu0
    %v1556 = vadd.f32 %v1530, %v1555
    %1557 = vmatmul.f32.gmra.mxu0 %v1536
    %v1558 = vpop.f32.mrf.mxu0
    %v1559 = vadd.f32 %v1530, %v1558
    %1560 = vdwg.mxu0
    %1562 = vrot.lane.b32.xlu0 %v1556, 96
    %v1563 = vpop.permute.xlu0 %1562
    %v1564 = vsel %vm733, %v1556, 0
    %v1566 = vsel %vm733, %v1563, 0
    %1568 = vmatpush.xpose.msra.mxu0 0.0
    %1569 = vmatpush.xpose.msra.mxu0 0.0
    %1570 = vmatpush.xpose.msra.mxu0 0.0
    %1571 = vmatpush.xpose.msra.mxu0 0.0
    %1572 = vmatpush.xpose.msra.mxu0 0.0
    %1573 = vmatpush.xpose.msra.mxu0 0.0
    %1574 = vmatpush.xpose.msra.mxu0 0.0
    %1575 = vmatpush.xpose.msra.mxu0 0.0
    %1576 = vmatpush.xpose.msra.mxu0 0.0
    %1577 = vmatpush.xpose.msra.mxu0 0.0
    %1578 = vmatpush.xpose.msra.mxu0 0.0
    %1579 = vmatpush.xpose.msra.mxu0 0.0
    %1580 = vmatpush.xpose.msra.mxu0 0.0
    %1581 = vmatpush.xpose.msra.mxu0 0.0
    %1582 = vmatpush.xpose.msra.mxu0 0.0
    %1583 = vmatpush.xpose.msra.mxu0 %v1566
    %1584 = vmatmul.f32.gmra.mxu0 %v1564
    %v1585 = vpop.f32.mrf.mxu0
    %v1586 = vadd.f32 0.0, %v1585
    %1587 = vdwg.mxu0
    %1589 = vrot.lane.b32.xlu0 %v1559, 96
    %v1590 = vpop.permute.xlu0 %1589
    %v1591 = vsel %vm733, %v1559, 0
    %v1593 = vsel %vm733, %v1590, 0
    %1595 = vmatpush.xpose.msra.mxu0 0.0
    %1596 = vmatpush.xpose.msra.mxu0 0.0
    %1597 = vmatpush.xpose.msra.mxu0 0.0
    %1598 = vmatpush.xpose.msra.mxu0 0.0
    %1599 = vmatpush.xpose.msra.mxu0 0.0
    %1600 = vmatpush.xpose.msra.mxu0 0.0
    %1601 = vmatpush.xpose.msra.mxu0 0.0
    %1602 = vmatpush.xpose.msra.mxu0 0.0
    %1603 = vmatpush.xpose.msra.mxu0 0.0
    %1604 = vmatpush.xpose.msra.mxu0 0.0
    %1605 = vmatpush.xpose.msra.mxu0 0.0
    %1606 = vmatpush.xpose.msra.mxu0 0.0
    %1607 = vmatpush.xpose.msra.mxu0 0.0
    %1608 = vmatpush.xpose.msra.mxu0 0.0
    %1609 = vmatpush.xpose.msra.mxu0 0.0
    %1610 = vmatpush.xpose.msra.mxu0 %v1593
    %1611 = vmatmul.f32.gmra.mxu0 %v1591
    %v1612 = vpop.f32.mrf.mxu0
    %v1613 = vadd.f32 0.0, %v1612
    %1614 = vdwg.mxu0
    %v1615 = vsel %vm733, %v1586, -inf
    %1616 = vmax.xlane.f32.xlu0 %v1615
    %v1617 = vpop.xlane.xlu0 %1616
    %v1618 = vsel %vm733, %v1613, -inf
    %1619 = vmax.xlane.f32.xlu0 %v1618
    %v1620 = vpop.xlane.xlu0 %1619
    %v1621 = vsub.f32 %v1586, %v1617
    %v1622 = vsub.f32 %v1613, %v1620
    %v1623 = vmul.f32 %v1621, 1.442695
    %v1624 = vpow.pop %v1623
    %v1625 = vmul.f32 %v1622, 1.442695
    %v1626 = vpow.pop %v1625
    %v1627 = vsel %vm733, %v1624, 0.0
    %1628 = vadd.xlane.f32.xlu0 %v1627
    %v1629 = vpop.xlane.xlu0 %1628
    %v1630 = vsel %vm733, %v1626, 0.0
    %1631 = vadd.xlane.f32.xlu0 %v1630
    %v1632 = vpop.xlane.xlu0 %1631
    %v1633 = vrcp.pop %v1629
    %v1634 = vrcp.pop %v1632
    %v1635 = vmul.f32 %v1624, %v1633
    %v1636 = vmul.f32 %v1626, %v1634
    %1637 = vrot.lane.b32.xlu0 %v1556, 64
    %v1638 = vpop.permute.xlu0 %1637
    %v1641 = vsel %vm733, %v1635, 0
    %1643 = vmatpush.msra.mxu0 0.0
    %1644 = vmatpush.msra.mxu0 0.0
    %1645 = vmatpush.msra.mxu0 0.0
    %1646 = vmatpush.msra.mxu0 0.0
    %1647 = vmatpush.msra.mxu0 0.0
    %1648 = vmatpush.msra.mxu0 0.0
    %1649 = vmatpush.msra.mxu0 0.0
    %1650 = vmatpush.msra.mxu0 0.0
    %1651 = vmatpush.msra.mxu0 0.0
    %1652 = vmatpush.msra.mxu0 0.0
    %1653 = vmatpush.msra.mxu0 0.0
    %1654 = vmatpush.msra.mxu0 0.0
    %1655 = vmatpush.msra.mxu0 0.0
    %1656 = vmatpush.msra.mxu0 0.0
    %1657 = vmatpush.msra.mxu0 0.0
    %1658 = vmatpush.msra.mxu0 %v1638
    %1659 = vmatmul.f32.gmra.mxu0 %v1641
    %v1660 = vpop.f32.mrf.mxu0
    %v1661 = vadd.f32 0.0, %v1660
    %1662 = vdwg.mxu0
    %1663 = vrot.lane.b32.xlu0 %v1559, 64
    %v1664 = vpop.permute.xlu0 %1663
    %v1667 = vsel %vm733, %v1636, 0
    %1669 = vmatpush.msra.mxu0 0.0
    %1670 = vmatpush.msra.mxu0 0.0
    %1671 = vmatpush.msra.mxu0 0.0
    %1672 = vmatpush.msra.mxu0 0.0
    %1673 = vmatpush.msra.mxu0 0.0
    %1674 = vmatpush.msra.mxu0 0.0
    %1675 = vmatpush.msra.mxu0 0.0
    %1676 = vmatpush.msra.mxu0 0.0
    %1677 = vmatpush.msra.mxu0 0.0
    %1678 = vmatpush.msra.mxu0 0.0
    %1679 = vmatpush.msra.mxu0 0.0
    %1680 = vmatpush.msra.mxu0 0.0
    %1681 = vmatpush.msra.mxu0 0.0
    %1682 = vmatpush.msra.mxu0 0.0
    %1683 = vmatpush.msra.mxu0 0.0
    %1684 = vmatpush.msra.mxu0 %v1664
    %1685 = vmatmul.f32.gmra.mxu0 %v1667
    %v1686 = vpop.f32.mrf.mxu0
    %v1687 = vadd.f32 0.0, %v1686
    %1688 = vdwg.mxu0
    %1689 = vrot.lane.b32.xlu0 %v1556, 120
    %v1690 = vpop.permute.xlu0 %1689
    %1691 = vrot.lane.b32.xlu0 %v1556, 88
    %v1692 = vpop.permute.xlu0 %1691
    %v1693 = vsel %vm733, %v1690, 0
    %v1695 = vsel %vm733, %v1692, 0
    %1697 = vmatpush.xpose.msra.mxu0 0.0
    %1698 = vmatpush.xpose.msra.mxu0 0.0
    %1699 = vmatpush.xpose.msra.mxu0 0.0
    %1700 = vmatpush.xpose.msra.mxu0 0.0
    %1701 = vmatpush.xpose.msra.mxu0 0.0
    %1702 = vmatpush.xpose.msra.mxu0 0.0
    %1703 = vmatpush.xpose.msra.mxu0 0.0
    %1704 = vmatpush.xpose.msra.mxu0 0.0
    %1705 = vmatpush.xpose.msra.mxu0 0.0
    %1706 = vmatpush.xpose.msra.mxu0 0.0
    %1707 = vmatpush.xpose.msra.mxu0 0.0
    %1708 = vmatpush.xpose.msra.mxu0 0.0
    %1709 = vmatpush.xpose.msra.mxu0 0.0
    %1710 = vmatpush.xpose.msra.mxu0 0.0
    %1711 = vmatpush.xpose.msra.mxu0 0.0
    %1712 = vmatpush.xpose.msra.mxu0 %v1695
    %1713 = vmatmul.f32.gmra.mxu0 %v1693
    %v1714 = vpop.f32.mrf.mxu0
    %v1715 = vadd.f32 0.0, %v1714
    %1716 = vdwg.mxu0
    %1717 = vrot.lane.b32.xlu0 %v1559, 120
    %v1718 = vpop.permute.xlu0 %1717
    %1719 = vrot.lane.b32.xlu0 %v1559, 88
    %v1720 = vpop.permute.xlu0 %1719
    %v1721 = vsel %vm733, %v1718, 0
    %v1723 = vsel %vm733, %v1720, 0
    %1725 = vmatpush.xpose.msra.mxu0 0.0
    %1726 = vmatpush.xpose.msra.mxu0 0.0
    %1727 = vmatpush.xpose.msra.mxu0 0.0
    %1728 = vmatpush.xpose.msra.mxu0 0.0
    %1729 = vmatpush.xpose.msra.mxu0 0.0
    %1730 = vmatpush.xpose.msra.mxu0 0.0
    %1731 = vmatpush.xpose.msra.mxu0 0.0
    %1732 = vmatpush.xpose.msra.mxu0 0.0
    %1733 = vmatpush.xpose.msra.mxu0 0.0
    %1734 = vmatpush.xpose.msra.mxu0 0.0
    %1735 = vmatpush.xpose.msra.mxu0 0.0
    %1736 = vmatpush.xpose.msra.mxu0 0.0
    %1737 = vmatpush.xpose.msra.mxu0 0.0
    %1738 = vmatpush.xpose.msra.mxu0 0.0
    %1739 = vmatpush.xpose.msra.mxu0 0.0
    %1740 = vmatpush.xpose.msra.mxu0 %v1723
    %1741 = vmatmul.f32.gmra.mxu0 %v1721
    %v1742 = vpop.f32.mrf.mxu0
    %v1743 = vadd.f32 0.0, %v1742
    %1744 = vdwg.mxu0
    %v1745 = vsel %vm733, %v1715, -inf
    %1746 = vmax.xlane.f32.xlu0 %v1745
    %v1747 = vpop.xlane.xlu0 %1746
    %v1748 = vsel %vm733, %v1743, -inf
    %1749 = vmax.xlane.f32.xlu0 %v1748
    %v1750 = vpop.xlane.xlu0 %1749
    %v1751 = vsub.f32 %v1715, %v1747
    %v1752 = vsub.f32 %v1743, %v1750
    %v1753 = vmul.f32 %v1751, 1.442695
    %v1754 = vpow.pop %v1753
    %v1755 = vmul.f32 %v1752, 1.442695
    %v1756 = vpow.pop %v1755
    %v1757 = vsel %vm733, %v1754, 0.0
    %1758 = vadd.xlane.f32.xlu0 %v1757
    %v1759 = vpop.xlane.xlu0 %1758
    %v1760 = vsel %vm733, %v1756, 0.0
    %1761 = vadd.xlane.f32.xlu0 %v1760
    %v1762 = vpop.xlane.xlu0 %1761
    %v1763 = vrcp.pop %v1759
    %v1764 = vrcp.pop %v1762
    %v1765 = vmul.f32 %v1754, %v1763
    %v1766 = vmul.f32 %v1756, %v1764
    %1767 = vrot.lane.b32.xlu0 %v1556, 56
    %v1768 = vpop.permute.xlu0 %1767
    %v1771 = vsel %vm733, %v1765, 0
    %1773 = vmatpush.msra.mxu0 0.0
    %1774 = vmatpush.msra.mxu0 0.0
    %1775 = vmatpush.msra.mxu0 0.0
    %1776 = vmatpush.msra.mxu0 0.0
    %1777 = vmatpush.msra.mxu0 0.0
    %1778 = vmatpush.msra.mxu0 0.0
    %1779 = vmatpush.msra.mxu0 0.0
    %1780 = vmatpush.msra.mxu0 0.0
    %1781 = vmatpush.msra.mxu0 0.0
    %1782 = vmatpush.msra.mxu0 0.0
    %1783 = vmatpush.msra.mxu0 0.0
    %1784 = vmatpush.msra.mxu0 0.0
    %1785 = vmatpush.msra.mxu0 0.0
    %1786 = vmatpush.msra.mxu0 0.0
    %1787 = vmatpush.msra.mxu0 0.0
    %1788 = vmatpush.msra.mxu0 %v1768
    %1789 = vmatmul.f32.gmra.mxu0 %v1771
    %v1790 = vpop.f32.mrf.mxu0
    %v1791 = vadd.f32 0.0, %v1790
    %1792 = vdwg.mxu0
    %1793 = vrot.lane.b32.xlu0 %v1559, 56
    %v1794 = vpop.permute.xlu0 %1793
    %v1797 = vsel %vm733, %v1766, 0
    %1799 = vmatpush.msra.mxu0 0.0
    %1800 = vmatpush.msra.mxu0 0.0
    %1801 = vmatpush.msra.mxu0 0.0
    %1802 = vmatpush.msra.mxu0 0.0
    %1803 = vmatpush.msra.mxu0 0.0
    %1804 = vmatpush.msra.mxu0 0.0
    %1805 = vmatpush.msra.mxu0 0.0
    %1806 = vmatpush.msra.mxu0 0.0
    %1807 = vmatpush.msra.mxu0 0.0
    %1808 = vmatpush.msra.mxu0 0.0
    %1809 = vmatpush.msra.mxu0 0.0
    %1810 = vmatpush.msra.mxu0 0.0
    %1811 = vmatpush.msra.mxu0 0.0
    %1812 = vmatpush.msra.mxu0 0.0
    %1813 = vmatpush.msra.mxu0 0.0
    %1814 = vmatpush.msra.mxu0 %v1794
    %1815 = vmatmul.f32.gmra.mxu0 %v1797
    %v1816 = vpop.f32.mrf.mxu0
    %v1817 = vadd.f32 0.0, %v1816
    %1818 = vdwg.mxu0
    %1819 = vrot.lane.b32.xlu0 %v1556, 112
    %v1820 = vpop.permute.xlu0 %1819
    %1821 = vrot.lane.b32.xlu0 %v1556, 80
    %v1822 = vpop.permute.xlu0 %1821
    %v1823 = vsel %vm733, %v1820, 0
    %v1825 = vsel %vm733, %v1822, 0
    %1827 = vmatpush.xpose.msra.mxu0 0.0
    %1828 = vmatpush.xpose.msra.mxu0 0.0
    %1829 = vmatpush.xpose.msra.mxu0 0.0
    %1830 = vmatpush.xpose.msra.mxu0 0.0
    %1831 = vmatpush.xpose.msra.mxu0 0.0
    %1832 = vmatpush.xpose.msra.mxu0 0.0
    %1833 = vmatpush.xpose.msra.mxu0 0.0
    %1834 = vmatpush.xpose.msra.mxu0 0.0
    %1835 = vmatpush.xpose.msra.mxu0 0.0
    %1836 = vmatpush.xpose.msra.mxu0 0.0
    %1837 = vmatpush.xpose.msra.mxu0 0.0
    %1838 = vmatpush.xpose.msra.mxu0 0.0
    %1839 = vmatpush.xpose.msra.mxu0 0.0
    %1840 = vmatpush.xpose.msra.mxu0 0.0
    %1841 = vmatpush.xpose.msra.mxu0 0.0
    %1842 = vmatpush.xpose.msra.mxu0 %v1825
    %1843 = vmatmul.f32.gmra.mxu0 %v1823
    %v1844 = vpop.f32.mrf.mxu0
    %v1845 = vadd.f32 0.0, %v1844
    %1846 = vdwg.mxu0
    %1847 = vrot.lane.b32.xlu0 %v1559, 112
    %v1848 = vpop.permute.xlu0 %1847
    %1849 = vrot.lane.b32.xlu0 %v1559, 80
    %v1850 = vpop.permute.xlu0 %1849
    %v1851 = vsel %vm733, %v1848, 0
    %v1853 = vsel %vm733, %v1850, 0
    %1855 = vmatpush.xpose.msra.mxu0 0.0
    %1856 = vmatpush.xpose.msra.mxu0 0.0
    %1857 = vmatpush.xpose.msra.mxu0 0.0
    %1858 = vmatpush.xpose.msra.mxu0 0.0
    %1859 = vmatpush.xpose.msra.mxu0 0.0
    %1860 = vmatpush.xpose.msra.mxu0 0.0
    %1861 = vmatpush.xpose.msra.mxu0 0.0
    %1862 = vmatpush.xpose.msra.mxu0 0.0
    %1863 = vmatpush.xpose.msra.mxu0 0.0
    %1864 = vmatpush.xpose.msra.mxu0 0.0
    %1865 = vmatpush.xpose.msra.mxu0 0.0
    %1866 = vmatpush.xpose.msra.mxu0 0.0
    %1867 = vmatpush.xpose.msra.mxu0 0.0
    %1868 = vmatpush.xpose.msra.mxu0 0.0
    %1869 = vmatpush.xpose.msra.mxu0 0.0
    %1870 = vmatpush.xpose.msra.mxu0 %v1853
    %1871 = vmatmul.f32.gmra.mxu0 %v1851
    %v1872 = vpop.f32.mrf.mxu0
    %v1873 = vadd.f32 0.0, %v1872
    %1874 = vdwg.mxu0
    %v1875 = vsel %vm733, %v1845, -inf
    %1876 = vmax.xlane.f32.xlu0 %v1875
    %v1877 = vpop.xlane.xlu0 %1876
    %v1878 = vsel %vm733, %v1873, -inf
    %1879 = vmax.xlane.f32.xlu0 %v1878
    %v1880 = vpop.xlane.xlu0 %1879
    %v1881 = vsub.f32 %v1845, %v1877
    %v1882 = vsub.f32 %v1873, %v1880
    %v1883 = vmul.f32 %v1881, 1.442695
    %v1884 = vpow.pop %v1883
    %v1885 = vmul.f32 %v1882, 1.442695
    %v1886 = vpow.pop %v1885
    %v1887 = vsel %vm733, %v1884, 0.0
    %1888 = vadd.xlane.f32.xlu0 %v1887
    %v1889 = vpop.xlane.xlu0 %1888
    %v1890 = vsel %vm733, %v1886, 0.0
    %1891 = vadd.xlane.f32.xlu0 %v1890
    %v1892 = vpop.xlane.xlu0 %1891
    %v1893 = vrcp.pop %v1889
    %v1894 = vrcp.pop %v1892
    %v1895 = vmul.f32 %v1884, %v1893
    %v1896 = vmul.f32 %v1886, %v1894
    %1897 = vrot.lane.b32.xlu0 %v1556, 48
    %v1898 = vpop.permute.xlu0 %1897
    %v1901 = vsel %vm733, %v1895, 0
    %1903 = vmatpush.msra.mxu0 0.0
    %1904 = vmatpush.msra.mxu0 0.0
    %1905 = vmatpush.msra.mxu0 0.0
    %1906 = vmatpush.msra.mxu0 0.0
    %1907 = vmatpush.msra.mxu0 0.0
    %1908 = vmatpush.msra.mxu0 0.0
    %1909 = vmatpush.msra.mxu0 0.0
    %1910 = vmatpush.msra.mxu0 0.0
    %1911 = vmatpush.msra.mxu0 0.0
    %1912 = vmatpush.msra.mxu0 0.0
    %1913 = vmatpush.msra.mxu0 0.0
    %1914 = vmatpush.msra.mxu0 0.0
    %1915 = vmatpush.msra.mxu0 0.0
    %1916 = vmatpush.msra.mxu0 0.0
    %1917 = vmatpush.msra.mxu0 0.0
    %1918 = vmatpush.msra.mxu0 %v1898
    %1919 = vmatmul.f32.gmra.mxu0 %v1901
    %v1920 = vpop.f32.mrf.mxu0
    %v1921 = vadd.f32 0.0, %v1920
    %1922 = vdwg.mxu0
    %1923 = vrot.lane.b32.xlu0 %v1559, 48
    %v1924 = vpop.permute.xlu0 %1923
    %v1927 = vsel %vm733, %v1896, 0
    %1929 = vmatpush.msra.mxu0 0.0
    %1930 = vmatpush.msra.mxu0 0.0
    %1931 = vmatpush.msra.mxu0 0.0
    %1932 = vmatpush.msra.mxu0 0.0
    %1933 = vmatpush.msra.mxu0 0.0
    %1934 = vmatpush.msra.mxu0 0.0
    %1935 = vmatpush.msra.mxu0 0.0
    %1936 = vmatpush.msra.mxu0 0.0
    %1937 = vmatpush.msra.mxu0 0.0
    %1938 = vmatpush.msra.mxu0 0.0
    %1939 = vmatpush.msra.mxu0 0.0
    %1940 = vmatpush.msra.mxu0 0.0
    %1941 = vmatpush.msra.mxu0 0.0
    %1942 = vmatpush.msra.mxu0 0.0
    %1943 = vmatpush.msra.mxu0 0.0
    %1944 = vmatpush.msra.mxu0 %v1924
    %1945 = vmatmul.f32.gmra.mxu0 %v1927
    %v1946 = vpop.f32.mrf.mxu0
    %v1947 = vadd.f32 0.0, %v1946
    %1948 = vdwg.mxu0
    %1949 = vrot.lane.b32.xlu0 %v1556, 104
    %v1950 = vpop.permute.xlu0 %1949
    %1951 = vrot.lane.b32.xlu0 %v1556, 72
    %v1952 = vpop.permute.xlu0 %1951
    %v1953 = vsel %vm733, %v1950, 0
    %v1955 = vsel %vm733, %v1952, 0
    %1957 = vmatpush.xpose.msra.mxu0 0.0
    %1958 = vmatpush.xpose.msra.mxu0 0.0
    %1959 = vmatpush.xpose.msra.mxu0 0.0
    %1960 = vmatpush.xpose.msra.mxu0 0.0
    %1961 = vmatpush.xpose.msra.mxu0 0.0
    %1962 = vmatpush.xpose.msra.mxu0 0.0
    %1963 = vmatpush.xpose.msra.mxu0 0.0
    %1964 = vmatpush.xpose.msra.mxu0 0.0
    %1965 = vmatpush.xpose.msra.mxu0 0.0
    %1966 = vmatpush.xpose.msra.mxu0 0.0
    %1967 = vmatpush.xpose.msra.mxu0 0.0
    %1968 = vmatpush.xpose.msra.mxu0 0.0
    %1969 = vmatpush.xpose.msra.mxu0 0.0
    %1970 = vmatpush.xpose.msra.mxu0 0.0
    %1971 = vmatpush.xpose.msra.mxu0 0.0
    %1972 = vmatpush.xpose.msra.mxu0 %v1955
    %1973 = vmatmul.f32.gmra.mxu0 %v1953
    %v1974 = vpop.f32.mrf.mxu0
    %v1975 = vadd.f32 0.0, %v1974
    %1976 = vdwg.mxu0
    %1977 = vrot.lane.b32.xlu0 %v1559, 104
    %v1978 = vpop.permute.xlu0 %1977
    %1979 = vrot.lane.b32.xlu0 %v1559, 72
    %v1980 = vpop.permute.xlu0 %1979
    %v1981 = vsel %vm733, %v1978, 0
    %v1983 = vsel %vm733, %v1980, 0
    %1985 = vmatpush.xpose.msra.mxu0 0.0
    %1986 = vmatpush.xpose.msra.mxu0 0.0
    %1987 = vmatpush.xpose.msra.mxu0 0.0
    %1988 = vmatpush.xpose.msra.mxu0 0.0
    %1989 = vmatpush.xpose.msra.mxu0 0.0
    %1990 = vmatpush.xpose.msra.mxu0 0.0
    %1991 = vmatpush.xpose.msra.mxu0 0.0
    %1992 = vmatpush.xpose.msra.mxu0 0.0
    %1993 = vmatpush.xpose.msra.mxu0 0.0
    %1994 = vmatpush.xpose.msra.mxu0 0.0
    %1995 = vmatpush.xpose.msra.mxu0 0.0
    %1996 = vmatpush.xpose.msra.mxu0 0.0
    %1997 = vmatpush.xpose.msra.mxu0 0.0
    %1998 = vmatpush.xpose.msra.mxu0 0.0
    %1999 = vmatpush.xpose.msra.mxu0 0.0
    %2000 = vmatpush.xpose.msra.mxu0 %v1983
    %2001 = vmatmul.f32.gmra.mxu0 %v1981
    %v2002 = vpop.f32.mrf.mxu0
    %v2003 = vadd.f32 0.0, %v2002
    %2004 = vdwg.mxu0
    %v2005 = vsel %vm733, %v1975, -inf
    %2006 = vmax.xlane.f32.xlu0 %v2005
    %v2007 = vpop.xlane.xlu0 %2006
    %v2008 = vsel %vm733, %v2003, -inf
    %2009 = vmax.xlane.f32.xlu0 %v2008
    %v2010 = vpop.xlane.xlu0 %2009
    %v2011 = vsub.f32 %v1975, %v2007
    %v2012 = vsub.f32 %v2003, %v2010
    %v2013 = vmul.f32 %v2011, 1.442695
    %v2014 = vpow.pop %v2013
    %v2015 = vmul.f32 %v2012, 1.442695
    %v2016 = vpow.pop %v2015
    %v2017 = vsel %vm733, %v2014, 0.0
    %2018 = vadd.xlane.f32.xlu0 %v2017
    %v2019 = vpop.xlane.xlu0 %2018
    %v2020 = vsel %vm733, %v2016, 0.0
    %2021 = vadd.xlane.f32.xlu0 %v2020
    %v2022 = vpop.xlane.xlu0 %2021
    %v2023 = vrcp.pop %v2019
    %v2024 = vrcp.pop %v2022
    %v2025 = vmul.f32 %v2014, %v2023
    %v2026 = vmul.f32 %v2016, %v2024
    %2027 = vrot.lane.b32.xlu0 %v1556, 40
    %v2028 = vpop.permute.xlu0 %2027
    %v2031 = vsel %vm733, %v2025, 0
    %2033 = vmatpush.msra.mxu0 0.0
    %2034 = vmatpush.msra.mxu0 0.0
    %2035 = vmatpush.msra.mxu0 0.0
    %2036 = vmatpush.msra.mxu0 0.0
    %2037 = vmatpush.msra.mxu0 0.0
    %2038 = vmatpush.msra.mxu0 0.0
    %2039 = vmatpush.msra.mxu0 0.0
    %2040 = vmatpush.msra.mxu0 0.0
    %2041 = vmatpush.msra.mxu0 0.0
    %2042 = vmatpush.msra.mxu0 0.0
    %2043 = vmatpush.msra.mxu0 0.0
    %2044 = vmatpush.msra.mxu0 0.0
    %2045 = vmatpush.msra.mxu0 0.0
    %2046 = vmatpush.msra.mxu0 0.0
    %2047 = vmatpush.msra.mxu0 0.0
    %2048 = vmatpush.msra.mxu0 %v2028
    %2049 = vmatmul.f32.gmra.mxu0 %v2031
    %v2050 = vpop.f32.mrf.mxu0
    %v2051 = vadd.f32 0.0, %v2050
    %2052 = vdwg.mxu0
    %2053 = vrot.lane.b32.xlu0 %v1559, 40
    %v2054 = vpop.permute.xlu0 %2053
    %v2057 = vsel %vm733, %v2026, 0
    %2059 = vmatpush.msra.mxu0 0.0
    %2060 = vmatpush.msra.mxu0 0.0
    %2061 = vmatpush.msra.mxu0 0.0
    %2062 = vmatpush.msra.mxu0 0.0
    %2063 = vmatpush.msra.mxu0 0.0
    %2064 = vmatpush.msra.mxu0 0.0
    %2065 = vmatpush.msra.mxu0 0.0
    %2066 = vmatpush.msra.mxu0 0.0
    %2067 = vmatpush.msra.mxu0 0.0
    %2068 = vmatpush.msra.mxu0 0.0
    %2069 = vmatpush.msra.mxu0 0.0
    %2070 = vmatpush.msra.mxu0 0.0
    %2071 = vmatpush.msra.mxu0 0.0
    %2072 = vmatpush.msra.mxu0 0.0
    %2073 = vmatpush.msra.mxu0 0.0
    %2074 = vmatpush.msra.mxu0 %v2054
    %2075 = vmatmul.f32.gmra.mxu0 %v2057
    %v2076 = vpop.f32.mrf.mxu0
    %v2077 = vadd.f32 0.0, %v2076
    %2078 = vdwg.mxu0
    %2081 = vrot.lane.b32.xlu0 %v1791, 8
    %v2082 = vpop.permute.xlu0 %2081
    %2083 = vrot.lane.b32.xlu0 %v1817, 8
    %v2084 = vpop.permute.xlu0 %2083
    %2089 = vrot.lane.b32.xlu0 %v1921, 16
    %v2090 = vpop.permute.xlu0 %2089
    %2091 = vrot.lane.b32.xlu0 %v1947, 16
    %v2092 = vpop.permute.xlu0 %2091
    %2097 = vrot.lane.b32.xlu0 %v2051, 24
    %v2098 = vpop.permute.xlu0 %2097
    %2099 = vrot.lane.b32.xlu0 %v2077, 24
    %v2100 = vpop.permute.xlu0 %2099
    %v2103 = vsel %vm733, %v1661, %v2082
    %v2104 = vsel %vm733, %v1687, %v2084
    %v2105 = vsel %vm1275, %v2103, %v2090
    %v2106 = vsel %vm1275, %v2104, %v2092
    %v2107 = vsel %vm1278, %v2105, %v2098
    %v2108 = vsel %vm1278, %v2106, %v2100
    %s2109 = scalar_lea.vmem [#allocation10], 32
    %v2110 = vld [vmem:[%s2109] sm:$0xff]
    %v2111 = vld [vmem:[%s2109 + $0x8] sm:$0xff]
    %v2112 = vld [vmem:[%s2109 + $0x10] sm:$0xff]
    %v2113 = vld [vmem:[%s2109 + $0x18] sm:$0xff]
    %s2114 = scalar_lea.vmem [#allocation12], 1
    %v2115 = vld [vmem:[%s2114] sm:$0x1]
    %v2117 = vperm.slane %v2115, 0
    %v2120 = vsel %vm700, %v2107, 0
    %v2123 = vsel %vm700, %v2108, 0
    %2125 = vmatpush.msra.mxu0 0.0
    %2126 = vmatpush.msra.mxu0 0.0
    %2127 = vmatpush.msra.mxu0 0.0
    %2128 = vmatpush.msra.mxu0 0.0
    %2129 = vmatpush.msra.mxu0 0.0
    %2130 = vmatpush.msra.mxu0 0.0
    %2131 = vmatpush.msra.mxu0 0.0
    %2132 = vmatpush.msra.mxu0 0.0
    %2133 = vmatpush.msra.mxu0 0.0
    %2134 = vmatpush.msra.mxu0 0.0
    %2135 = vmatpush.msra.mxu0 0.0
    %2136 = vmatpush.msra.mxu0 0.0
    %2137 = vmatpush.msra.mxu0 %v2113
    %2138 = vmatpush.msra.mxu0 %v2112
    %2139 = vmatpush.msra.mxu0 %v2111
    %2140 = vmatpush.msra.mxu0 %v2110
    %2141 = vmatmul.f32.gmra.mxu0 %v2120
    %v2142 = vpop.f32.mrf.mxu0
    %v2143 = vadd.f32 %v2117, %v2142
    %2144 = vmatmul.f32.gmra.mxu0 %v2123
    %v2145 = vpop.f32.mrf.mxu0
    %v2146 = vadd.f32 %v2117, %v2145
    %2147 = vdwg.mxu0
    %v2148 = vadd.f32 %v1520, %v2143
    %v2149 = vadd.f32 %v1521, %v2146
    %s2150 = scalar_lea.vmem %s23, 1
    %v2151 = vld [vmem:[%s2150] sm:$0x1]
    %s2152 = scalar_lea.vmem %s25, 1
    %v2153 = vld [vmem:[%s2152] sm:$0x1]
    %v2154 = vsel %vm700, %v2148, 0.0
    %2155 = vadd.xlane.f32.xlu0 %v2154
    %v2156 = vpop.xlane.xlu0 %2155
    %v2157 = vsel %vm700, %v2149, 0.0
    %2158 = vadd.xlane.f32.xlu0 %v2157
    %v2159 = vpop.xlane.xlu0 %2158
    %v2160 = vmul.f32 %v2156, %v1334
    %v2161 = vmul.f32 %v2159, %v1334
    %v2162 = vsub.f32 %v2148, %v2160
    %v2163 = vsub.f32 %v2149, %v2161
    %v2164 = vmul.f32 %v2162, %v2162
    %v2165 = vmul.f32 %v2163, %v2163
    %v2166 = vsel %vm700, %v2164, 0.0
    %2167 = vadd.xlane.f32.xlu0 %v2166
    %v2168 = vpop.xlane.xlu0 %2167
    %v2169 = vsel %vm700, %v2165, 0.0
    %2170 = vadd.xlane.f32.xlu0 %v2169
    %v2171 = vpop.xlane.xlu0 %2170
    %v2172 = vmul.f32 %v2168, %v1334
    %v2173 = vmul.f32 %v2171, %v1334
    %v2174 = vadd.f32 %v2172, 1e-05
    %v2175 = vadd.f32 %v2173, 1e-05
    %v2176 = vrsqrt.pop %v2174
    %v2177 = vmul.f32 %v2176, %v2174
    %v2178 = vmul.f32 %v2177, %v2176
    %v2179 = vmul.f32 0.5, %v2178
    %v2180 = vsub.f32 1.5, %v2179
    %v2181 = vmul.f32 %v2176, %v2180
    %vm2182 = vweird.f32 %v2174
    %vm2183 = vweird.f32 %v2176
    %vm2184 = vmor %vm2182, %vm2183
    %v2185 = vsel %vm2184, %v2176, %v2181
    %v2186 = vrsqrt.pop %v2175
    %v2187 = vmul.f32 %v2186, %v2175
    %v2188 = vmul.f32 %v2187, %v2186
    %v2189 = vmul.f32 0.5, %v2188
    %v2190 = vsub.f32 1.5, %v2189
    %v2191 = vmul.f32 %v2186, %v2190
    %vm2192 = vweird.f32 %v2175
    %vm2193 = vweird.f32 %v2186
    %vm2194 = vmor %vm2192, %vm2193
    %v2195 = vsel %vm2194, %v2186, %v2191
    %v2196 = vmul.f32 %v2162, %v2185
    %v2197 = vmul.f32 %v2163, %v2195
    %v2199 = vperm.slane %v2151, 0
    %v2201 = vmul.f32 %v2196, %v2199
    %v2202 = vmul.f32 %v2197, %v2199
    %v2204 = vperm.slane %v2153, 0
    %v2206 = vadd.f32 %v2201, %v2204
    %v2207 = vadd.f32 %v2202, %v2204
    %s2208 = scalar_lea.vmem [#allocation13], 32
    %v2209 = vld [vmem:[%s2208] sm:$0xff]
    %v2210 = vld [vmem:[%s2208 + $0x8] sm:$0xff]
    %v2211 = vld [vmem:[%s2208 + $0x10] sm:$0xff]
    %v2212 = vld [vmem:[%s2208 + $0x18] sm:$0xff]
    %s2213 = scalar_lea.vmem %s33, 1
    %v2214 = vld [vmem:[%s2213] sm:$0x1]
    %v2216 = vperm.slane %v2214, 0
    %v2219 = vsel %vm700, %v2206, 0
    %v2222 = vsel %vm700, %v2207, 0
    %2224 = vmatpush.msra.mxu0 0.0
    %2225 = vmatpush.msra.mxu0 0.0
    %2226 = vmatpush.msra.mxu0 0.0
    %2227 = vmatpush.msra.mxu0 0.0
    %2228 = vmatpush.msra.mxu0 0.0
    %2229 = vmatpush.msra.mxu0 0.0
    %2230 = vmatpush.msra.mxu0 0.0
    %2231 = vmatpush.msra.mxu0 0.0
    %2232 = vmatpush.msra.mxu0 0.0
    %2233 = vmatpush.msra.mxu0 0.0
    %2234 = vmatpush.msra.mxu0 0.0
    %2235 = vmatpush.msra.mxu0 0.0
    %2236 = vmatpush.msra.mxu0 %v2212
    %2237 = vmatpush.msra.mxu0 %v2211
    %2238 = vmatpush.msra.mxu0 %v2210
    %2239 = vmatpush.msra.mxu0 %v2209
    %2240 = vmatmul.f32.gmra.mxu0 %v2219
    %v2241 = vpop.f32.mrf.mxu0
    %v2242 = vadd.f32 %v2216, %v2241
    %2243 = vmatmul.f32.gmra.mxu0 %v2222
    %v2244 = vpop.f32.mrf.mxu0
    %v2245 = vadd.f32 %v2216, %v2244
    %2246 = vdwg.mxu0
    %v2247 = vmax.f32 %v2242, 0.0
    %v2248 = vmax.f32 %v2245, 0.0
    %s2249 = scalar_lea.vmem %s35, 64
    %v2250 = vld [vmem:[%s2249] sm:$0xff]
    %v2251 = vld [vmem:[%s2249 + $0x8] sm:$0xff]
    %v2252 = vld [vmem:[%s2249 + $0x10] sm:$0xff]
    %v2253 = vld [vmem:[%s2249 + $0x18] sm:$0xff]
    %v2254 = vld [vmem:[%s2249 + $0x20] sm:$0xff]
    %v2255 = vld [vmem:[%s2249 + $0x28] sm:$0xff]
    %v2256 = vld [vmem:[%s2249 + $0x30] sm:$0xff]
    %v2257 = vld [vmem:[%s2249 + $0x38] sm:$0xff]
    %s2258 = scalar_lea.vmem %s37, 1
    %v2259 = vld [vmem:[%s2258] sm:$0x1]
    %v2261 = vperm.slane %v2259, 0
    %v2264 = vsel %vm1434, %v2247, 0
    %v2267 = vsel %vm1434, %v2248, 0
    %2269 = vmatpush.msra.mxu0 0.0
    %2270 = vmatpush.msra.mxu0 0.0
    %2271 = vmatpush.msra.mxu0 0.0
    %2272 = vmatpush.msra.mxu0 0.0
    %2273 = vmatpush.msra.mxu0 0.0
    %2274 = vmatpush.msra.mxu0 0.0
    %2275 = vmatpush.msra.mxu0 0.0
    %2276 = vmatpush.msra.mxu0 0.0
    %2277 = vmatpush.msra.mxu0 %v2257
    %2278 = vmatpush.msra.mxu0 %v2256
    %2279 = vmatpush.msra.mxu0 %v2255
    %2280 = vmatpush.msra.mxu0 %v2254
    %2281 = vmatpush.msra.mxu0 %v2253
    %2282 = vmatpush.msra.mxu0 %v2252
    %2283 = vmatpush.msra.mxu0 %v2251
    %2284 = vmatpush.msra.mxu0 %v2250
    %2285 = vmatmul.f32.gmra.mxu0 %v2264
    %v2286 = vpop.f32.mrf.mxu0
    %v2287 = vadd.f32 %v2261, %v2286
    %2288 = vmatmul.f32.gmra.mxu0 %v2267
    %v2289 = vpop.f32.mrf.mxu0
    %v2290 = vadd.f32 %v2261, %v2289
    %2291 = vdwg.mxu0
    %v2292 = vadd.f32 %v2206, %v2287
    %v2293 = vadd.f32 %v2207, %v2290
    %s2294 = scalar_lea.vmem %s27, 1
    %v2295 = vld [vmem:[%s2294] sm:$0x1]
    %s2296 = scalar_lea.vmem %s29, 1
    %v2297 = vld [vmem:[%s2296] sm:$0x1]
    %v2298 = vsel %vm700, %v2292, 0.0
    %2299 = vadd.xlane.f32.xlu0 %v2298
    %v2300 = vpop.xlane.xlu0 %2299
    %v2301 = vsel %vm700, %v2293, 0.0
    %2302 = vadd.xlane.f32.xlu0 %v2301
    %v2303 = vpop.xlane.xlu0 %2302
    %v2304 = vmul.f32 %v2300, %v1334
    %v2305 = vmul.f32 %v2303, %v1334
    %v2306 = vsub.f32 %v2292, %v2304
    %v2307 = vsub.f32 %v2293, %v2305
    %v2308 = vmul.f32 %v2306, %v2306
    %v2309 = vmul.f32 %v2307, %v2307
    %v2310 = vsel %vm700, %v2308, 0.0
    %2311 = vadd.xlane.f32.xlu0 %v2310
    %v2312 = vpop.xlane.xlu0 %2311
    %v2313 = vsel %vm700, %v2309, 0.0
    %2314 = vadd.xlane.f32.xlu0 %v2313
    %v2315 = vpop.xlane.xlu0 %2314
    %v2316 = vmul.f32 %v2312, %v1334
    %v2317 = vmul.f32 %v2315, %v1334
    %v2318 = vadd.f32 %v2316, 1e-05
    %v2319 = vadd.f32 %v2317, 1e-05
    %v2320 = vrsqrt.pop %v2318
    %v2321 = vmul.f32 %v2320, %v2318
    %v2322 = vmul.f32 %v2321, %v2320
    %v2323 = vmul.f32 0.5, %v2322
    %v2324 = vsub.f32 1.5, %v2323
    %v2325 = vmul.f32 %v2320, %v2324
    %vm2326 = vweird.f32 %v2318
    %vm2327 = vweird.f32 %v2320
    %vm2328 = vmor %vm2326, %vm2327
    %v2329 = vsel %vm2328, %v2320, %v2325
    %v2330 = vrsqrt.pop %v2319
    %v2331 = vmul.f32 %v2330, %v2319
    %v2332 = vmul.f32 %v2331, %v2330
    %v2333 = vmul.f32 0.5, %v2332
    %v2334 = vsub.f32 1.5, %v2333
    %v2335 = vmul.f32 %v2330, %v2334
    %vm2336 = vweird.f32 %v2319
    %vm2337 = vweird.f32 %v2330
    %vm2338 = vmor %vm2336, %vm2337
    %v2339 = vsel %vm2338, %v2330, %v2335
    %v2340 = vmul.f32 %v2306, %v2329
    %v2341 = vmul.f32 %v2307, %v2339
    %v2343 = vperm.slane %v2295, 0
    %v2345 = vmul.f32 %v2340, %v2343
    %v2346 = vmul.f32 %v2341, %v2343
    %v2348 = vperm.slane %v2297, 0
    %v2350 = vadd.f32 %v2345, %v2348
    %v2351 = vadd.f32 %v2346, %v2348
    %v2353 = vrot.slane %v2350, 7
    %v2356 = vrot.slane %v2351, 6
    %vm2358 = vcmask 1040384
    %v2359 = vsel %vm2358, %v2353, %v2356
    %vm2360 = vcmask 254976
    %v2361 = vsel %vm2360, %v2359, 0.0
    %2362 = vadd.xlane.f32.xlu0 %v2361
    %v2363 = vpop.xlane.xlu0 %2362
    %v2364 = vmul.f32 %v2363, %v1334
    %v2365 = vsub.f32 %v2359, %v2364
    %v2366 = vmul.f32 %v2365, %v2365
    %v2367 = vsel %vm2360, %v2366, 0.0
    %2368 = vadd.xlane.f32.xlu0 %v2367
    %v2369 = vpop.xlane.xlu0 %2368
    %v2370 = vmul.f32 %v2369, %v1334
    %v2371 = vadd.f32 %v2370, 1e-05
    %v2372 = vrsqrt.pop %v2371
    %v2373 = vmul.f32 %v2372, %v2371
    %v2374 = vmul.f32 %v2373, %v2372
    %v2375 = vmul.f32 0.5, %v2374
    %v2376 = vsub.f32 1.5, %v2375
    %v2377 = vmul.f32 %v2372, %v2376
    %vm2378 = vweird.f32 %v2371
    %vm2379 = vweird.f32 %v2372
    %vm2380 = vmor %vm2378, %vm2379
    %v2381 = vsel %vm2380, %v2372, %v2377
    %v2382 = vmul.f32 %v2365, %v2381
    %v2383 = vld [vmem:[%s39] sm:$0x1]
    %v2385 = vperm.slane %v2383, 0
    %v2387 = vmul.f32 %v2382, %v2385
    %v2388 = vld [vmem:[%s41] sm:$0x1]
    %v2390 = vperm.slane %v2388, 0
    %v2392 = vadd.f32 %v2387, %v2390
    %v2393 = vld [vmem:[#allocation15] sm:$0xff]
    %v2394 = vld [vmem:[#allocation15 + $0x8] sm:$0xff]
    %v2395 = vld [vmem:[#allocation15 + $0x10] sm:$0xff]
    %v2396 = vld [vmem:[#allocation15 + $0x18] sm:$0xff]
    %v2397 = vld [vmem:[#allocation16] sm:$0x1]
    %v2399 = vperm.slane %v2397, 0
    %v2402 = vsel %vm700, %v2392, 0
    %2404 = vmatpush.msra.mxu0 0.0
    %2405 = vmatpush.msra.mxu0 0.0
    %2406 = vmatpush.msra.mxu0 0.0
    %2407 = vmatpush.msra.mxu0 0.0
    %2408 = vmatpush.msra.mxu0 0.0
    %2409 = vmatpush.msra.mxu0 0.0
    %2410 = vmatpush.msra.mxu0 0.0
    %2411 = vmatpush.msra.mxu0 0.0
    %2412 = vmatpush.msra.mxu0 0.0
    %2413 = vmatpush.msra.mxu0 0.0
    %2414 = vmatpush.msra.mxu0 0.0
    %2415 = vmatpush.msra.mxu0 0.0
    %2416 = vmatpush.msra.mxu0 %v2396
    %2417 = vmatpush.msra.mxu0 %v2395
    %2418 = vmatpush.msra.mxu0 %v2394
    %2419 = vmatpush.msra.mxu0 %v2393
    %2420 = vmatmul.f32.gmra.mxu0 %v2402
    %v2421 = vpop.f32.mrf.mxu0
    %v2422 = vadd.f32 %v2399, %v2421
    %2423 = vdwg.mxu0
    %v2424 = vld [vmem:[%s47] sm:$0x1]
    %v2426 = vperm.slane %v2424, 0
    %v2428 = vmul.f32 %v2382, %v2426
    %v2429 = vld [vmem:[%s49] sm:$0x1]
    %v2431 = vperm.slane %v2429, 0
    %v2433 = vadd.f32 %v2428, %v2431
    %v2434 = vld [vmem:[#allocation18] sm:$0xff]
    %v2435 = vld [vmem:[#allocation18 + $0x8] sm:$0xff]
    %v2436 = vld [vmem:[#allocation18 + $0x10] sm:$0xff]
    %v2437 = vld [vmem:[#allocation18 + $0x18] sm:$0xff]
    %v2438 = vld [vmem:[#allocation19] sm:$0x1]
    %v2440 = vperm.slane %v2438, 0
    %v2443 = vsel %vm700, %v2433, 0
    %2445 = vmatpush.msra.mxu0 0.0
    %2446 = vmatpush.msra.mxu0 0.0
    %2447 = vmatpush.msra.mxu0 0.0
    %2448 = vmatpush.msra.mxu0 0.0
    %2449 = vmatpush.msra.mxu0 0.0
    %2450 = vmatpush.msra.mxu0 0.0
    %2451 = vmatpush.msra.mxu0 0.0
    %2452 = vmatpush.msra.mxu0 0.0
    %2453 = vmatpush.msra.mxu0 0.0
    %2454 = vmatpush.msra.mxu0 0.0
    %2455 = vmatpush.msra.mxu0 0.0
    %2456 = vmatpush.msra.mxu0 0.0
    %2457 = vmatpush.msra.mxu0 %v2437
    %2458 = vmatpush.msra.mxu0 %v2436
    %2459 = vmatpush.msra.mxu0 %v2435
    %2460 = vmatpush.msra.mxu0 %v2434
    %2461 = vmatmul.f32.gmra.mxu0 %v2443
    %v2462 = vpop.f32.mrf.mxu0
    %v2463 = vadd.f32 %v2440, %v2462
    %2464 = vdwg.mxu0
    %v2465 = vld [vmem:[%s55] sm:$0x1]
    %v2467 = vperm.slane %v2465, 0
    %v2469 = vmul.f32 %v2382, %v2467
    %v2470 = vld [vmem:[%s57] sm:$0x1]
    %v2472 = vperm.slane %v2470, 0
    %v2474 = vadd.f32 %v2469, %v2472
    %v2475 = vmax.f32 %v2474, -1.0
    %v2476 = vmin.f32 %v2475, 1.0
    %v2477 = vld [vmem:[#allocation21] sm:$0xff]
    %v2478 = vld [vmem:[#allocation21 + $0x8] sm:$0xff]
    %v2479 = vld [vmem:[#allocation21 + $0x10] sm:$0xff]
    %v2480 = vld [vmem:[#allocation21 + $0x18] sm:$0xff]
    %v2481 = vld [vmem:[#allocation22] sm:$0x1]
    %v2483 = vperm.slane %v2481, 0
    %v2486 = vsel %vm700, %v2476, 0
    %2488 = vmatpush.msra.mxu0 0.0
    %2489 = vmatpush.msra.mxu0 0.0
    %2490 = vmatpush.msra.mxu0 0.0
    %2491 = vmatpush.msra.mxu0 0.0
    %2492 = vmatpush.msra.mxu0 0.0
    %2493 = vmatpush.msra.mxu0 0.0
    %2494 = vmatpush.msra.mxu0 0.0
    %2495 = vmatpush.msra.mxu0 0.0
    %2496 = vmatpush.msra.mxu0 0.0
    %2497 = vmatpush.msra.mxu0 0.0
    %2498 = vmatpush.msra.mxu0 0.0
    %2499 = vmatpush.msra.mxu0 0.0
    %2500 = vmatpush.msra.mxu0 %v2480
    %2501 = vmatpush.msra.mxu0 %v2479
    %2502 = vmatpush.msra.mxu0 %v2478
    %2503 = vmatpush.msra.mxu0 %v2477
    %2504 = vmatmul.f32.gmra.mxu0 %v2486
    %v2505 = vpop.f32.mrf.mxu0
    %v2506 = vadd.f32 %v2483, %v2505
    %2507 = vdwg.mxu0
    %v2508 = vmax.f32 %v2506, -1.0
    %v2509 = vmin.f32 %v2508, 1.0
    %v2510 = vld [vmem:[%s63] sm:$0xff]
    %v2511 = vld [vmem:[%s63 + $0x8] sm:$0xff]
    %v2512 = vld [vmem:[#allocation24] sm:$0x1]
    %v2514 = vperm.slane %v2512, 0
    %v2517 = vsel %vm1275, %v2509, 0
    %2519 = vmatpush.msra.mxu0 0.0
    %2520 = vmatpush.msra.mxu0 0.0
    %2521 = vmatpush.msra.mxu0 0.0
    %2522 = vmatpush.msra.mxu0 0.0
    %2523 = vmatpush.msra.mxu0 0.0
    %2524 = vmatpush.msra.mxu0 0.0
    %2525 = vmatpush.msra.mxu0 0.0
    %2526 = vmatpush.msra.mxu0 0.0
    %2527 = vmatpush.msra.mxu0 0.0
    %2528 = vmatpush.msra.mxu0 0.0
    %2529 = vmatpush.msra.mxu0 0.0
    %2530 = vmatpush.msra.mxu0 0.0
    %2531 = vmatpush.msra.mxu0 0.0
    %2532 = vmatpush.msra.mxu0 0.0
    %2533 = vmatpush.msra.mxu0 %v2511
    %2534 = vmatpush.msra.mxu0 %v2510
    %2535 = vmatmul.f32.gmra.mxu0 %v2517
    %v2536 = vpop.f32.mrf.mxu0
    %v2537 = vadd.f32 %v2514, %v2536
    %2538 = vdwg.mxu0
    %2540 = vrot.lane.b32.xlu0 %v2463, 6
    %v2541 = vpop.permute.xlu0 %2540
    %2544 = vrot.lane.b32.xlu0 %v2537, 12
    %v2545 = vpop.permute.xlu0 %2544
    %vm2547 = vcmask 48128
    %v2548 = vsel %vm2547, %v2422, %v2541
    %vm2549 = vcmask 97280
    %v2550 = vsel %vm2549, %v2548, %v2545
    %vm2551 = vcmask 107520
    %2552 = vst.msk [vmem:[%s67] sm:$0x3] %vm2551, %v2550
    // Predicated region
    $region194: #{_lambda_.1} parent=1 // pred_check
      _
    $region195: #{_lambda_.1} parent=1 // pred_check_branch
      %2554 = sbr.rel (0) target = $region197
    $region196: #{_lambda_.1} parent=1 // pred_region
      _
    $region197: #{_lambda_.1} parent=1 // pred_fallthru
      _
    // Predicated region
    $region198: #{_lambda_.1} parent=1 // pred_check
      _
    $region199: #{_lambda_.1} parent=1 // pred_check_branch
      %2556 = sbr.rel (0) target = $region201
    $region200: #{_lambda_.1} parent=1 // pred_region
      _
    $region201: #{_lambda_.1} parent=1 // pred_fallthru
      _
    %2557 = vsyncpa [#allocation3], 1
    %2558 = vsyncpa [#allocation5], 1
    %2559 = vsyncpa [#allocation8], 1
    %2560 = vsyncpa [#allocation11], 1
    %2561 = vsyncpa [#allocation14], 1
    %2562 = vsyncpa [#allocation17], 1
    %2563 = vsyncpa [#allocation20], 1
    %2564 = vsyncpa [#allocation23], 1

</llo_original>
